<compile_context>
chip_gen: v6e
topology: v6e:2x2x1
jax: 0.10.0
libtpu: 0.0.40
codegen_flags: <defaults>
</compile_context>

<pallas_src>
import jax
import jax.numpy as jnp
import numpy as np
from jax.experimental import pallas as pl
from jax.experimental.pallas import tpu as pltpu

BN_EPS = 1e-5
LEAKY_SLOPE = 0.01
LANE = 128


# ---------------------------------------------------------------------------
# Pallas kernel (whole forward pass)
# ---------------------------------------------------------------------------
def _conv_block(x, s_ref, w_ref, g_ref, b_ref, xcat_ref):
    """Conv1d(K=3, pad=1) + BatchNorm1d(batch stats) + LeakyReLU, channels-last.

    x:        (M_in, C_in)      f32 activation rows (row = (sample, position))
    s_ref:    (3, M_out, M_in)  f32 0/1 per-tap row-selection (shift + zero pad)
    w_ref:    (3*C_in, C_out)   bf16 vertically stacked per-tap weights
    g_ref/b_ref: (1, C_out)     f32 BN affine params
    xcat_ref: (M_out, 3*C_in)   bf16 scratch (im2col'd rows, lane-aligned slices)
    """
    ksize = s_ref.shape[0]
    c_in = x.shape[-1]
    for k in range(ksize):  # static unroll: 3 tiny row-selection matmuls
        tap = jnp.dot(s_ref[k], x, preferred_element_type=jnp.float32)
        xcat_ref[:, k * c_in:(k + 1) * c_in] = tap.astype(jnp.bfloat16)
    # One MXU push per conv layer (K = 3*C_in), f32 accumulation.
    acc = jnp.dot(xcat_ref[...], w_ref[...], preferred_element_type=jnp.float32)
    # Training-mode BatchNorm folded into a single per-channel scale/shift.
    # (Conv bias intentionally omitted: it cancels in the mean subtraction.)
    mean = jnp.mean(acc, axis=0, keepdims=True)
    var = jnp.maximum(jnp.mean(acc * acc, axis=0, keepdims=True) - mean * mean, 0.0)
    scale = g_ref[...] * jax.lax.rsqrt(var + BN_EPS)
    shift = b_ref[...] - mean * scale
    y = acc * scale + shift
    return jnp.where(y >= 0, y, LEAKY_SLOPE * y)


def _fused_forward_kernel(
    x_ref,
    s1_ref, w1_ref, g1_ref, be1_ref,
    s2_ref, w2_ref, g2_ref, be2_ref,
    s3_ref, w3_ref, g3_ref, be3_ref,
    lw1_ref, lb1_ref, lw2_ref, lb2_ref,
    lin_ref, conv3_ref, conv2_ref,
    xcat1_ref, xcat2_ref, xcat3_ref,
):
    act1 = _conv_block(x_ref[...], s1_ref, w1_ref, g1_ref, be1_ref, xcat1_ref)  # (N*L1, 512)
    act2 = _conv_block(act1, s2_ref, w2_ref, g2_ref, be2_ref, xcat2_ref)        # (N*L2, 256)
    act3 = _conv_block(act2, s3_ref, w3_ref, g3_ref, be3_ref, xcat3_ref)        # (N*L3, 128)
    conv2_ref[...] = act2
    conv3_ref[...] = act3
    # MLP head: Linear(128->256) + ReLU + Linear(256->O_pad)
    h = jnp.dot(act3.astype(jnp.bfloat16), lw1_ref[...],
                preferred_element_type=jnp.float32)
    h = jnp.maximum(h + lb1_ref[...], 0.0)
    out = jnp.dot(h.astype(jnp.bfloat16), lw2_ref[...],
                  preferred_element_type=jnp.float32)
    lin_ref[...] = out + lb2_ref[...]


# ---------------------------------------------------------------------------
# Wrapper: boundary layout work + pallas_call plumbing
# ---------------------------------------------------------------------------
def _conv_out_len(l_in, stride, pad=1, ksize=3):
    return (l_in + 2 * pad - ksize) // stride + 1


def _tap_selectors(n, l_in, l_out, stride, pad=1, ksize=3):
    """0/1 matrices S[k] (N*L_out, N*L_in): S[k] @ act selects input row l*stride+k-pad
    for each output row (zero row when the tap falls in the padding)."""
    s = np.zeros((ksize, n * l_out, n * l_in), np.float32)
    for k in range(ksize):
        for b in range(n):
            for l in range(l_out):
                j = l * stride + k - pad
                if 0 <= j < l_in:
                    s[k, b * l_out + l, b * l_in + j] = 1.0
    return jnp.asarray(s)


def _stacked_taps(w, c_in_pad=None):
    """torch (C_out, C_in, K) -> (K*C_in[_pad], C_out) bf16 vertically stacked taps."""
    c_out, c_in, ksize = w.shape
    taps = jnp.transpose(w, (2, 1, 0))                       # (K, C_in, C_out)
    if c_in_pad is not None and c_in_pad > c_in:
        taps = jnp.pad(taps, ((0, 0), (0, c_in_pad - c_in), (0, 0)))
    return taps.reshape(ksize * taps.shape[1], c_out).astype(jnp.bfloat16)


@jax.jit
def gripper_fe_forward(params, x):
    """Reproduces gripperFE.forward. x: (N, input_dim, L) -> (linear2, conv3, conv2)."""
    n, c_in, l = x.shape
    l1 = _conv_out_len(l, 1)
    l2 = _conv_out_len(l1, 2)
    l3 = _conv_out_len(l2, 2)
    assert l3 == 1, "Linear(128, 256) after Flatten requires conv3 output length == 1"

    c_in_pad = ((c_in + LANE - 1) // LANE) * LANE

    # Channels-last, lane-padded input: (N*L, C_in_pad)
    x_cl = jnp.transpose(x, (0, 2, 1)).reshape(n * l, c_in).astype(jnp.float32)
    x_cl = jnp.pad(x_cl, ((0, 0), (0, c_in_pad - c_in)))

    s1 = _tap_selectors(n, l, l1, stride=1)
    s2 = _tap_selectors(n, l1, l2, stride=2)
    s3 = _tap_selectors(n, l2, l3, stride=2)

    w1 = _stacked_taps(params["conv1_w"], c_in_pad)   # (3*C_in_pad, 512)
    w2 = _stacked_taps(params["conv2_w"])             # (3*512, 256)
    w3 = _stacked_taps(params["conv3_w"])             # (3*256, 128)

    g1, be1 = params["bn1_g"].reshape(1, -1), params["bn1_b"].reshape(1, -1)
    g2, be2 = params["bn2_g"].reshape(1, -1), params["bn2_b"].reshape(1, -1)
    g3, be3 = params["bn3_g"].reshape(1, -1), params["bn3_b"].reshape(1, -1)

    lw1 = params["lin1_w"].T.astype(jnp.bfloat16)                # (128, 256)
    lb1 = params["lin1_b"].reshape(1, -1)
    o = params["lin2_w"].shape[0]
    o_pad = ((o + LANE - 1) // LANE) * LANE
    lw2 = jnp.pad(params["lin2_w"].T, ((0, 0), (0, o_pad - o))).astype(jnp.bfloat16)
    lb2 = jnp.pad(params["lin2_b"], (0, o_pad - o)).reshape(1, -1)

    inputs = (x_cl, s1, w1, g1, be1, s2, w2, g2, be2, s3, w3, g3, be3,
              lw1, lb1, lw2, lb2)
    vmem_spec = pl.BlockSpec(memory_space=pltpu.MemorySpace.VMEM)

    lin_pad, conv3_cl, conv2_cl = pl.pallas_call(
        _fused_forward_kernel,
        out_shape=(
            jax.ShapeDtypeStruct((n, o_pad), jnp.float32),
            jax.ShapeDtypeStruct((n * l3, 128), jnp.float32),
            jax.ShapeDtypeStruct((n * l2, 256), jnp.float32),
        ),
        in_specs=[vmem_spec] * len(inputs),
        out_specs=(vmem_spec, vmem_spec, vmem_spec),
        scratch_shapes=[
            pltpu.VMEM((n * l1, 3 * c_in_pad), jnp.bfloat16),
            pltpu.VMEM((n * l2, 3 * 512), jnp.bfloat16),
            pltpu.VMEM((n * l3, 3 * 256), jnp.bfloat16),
        ],
    )(*inputs)

    linear2 = lin_pad[:, :o]
    conv3 = conv3_cl.reshape(n, l3, 128).transpose(0, 2, 1)
    conv2 = conv2_cl.reshape(n, l2, 256).transpose(0, 2, 1)
    return linear2, conv3, conv2


# ---------------------------------------------------------------------------
# Deterministic parameter init (PyTorch-style uniform fan-in bounds)
# ---------------------------------------------------------------------------
def init_params(key, input_dim, output_dim):
    ks = jax.random.split(key, 10)

    def u(k, shape, fan_in):
        bound = 1.0 / jnp.sqrt(jnp.float32(fan_in))
        return jax.random.uniform(k, shape, jnp.float32, -bound, bound)

    return {
        "conv1_w": u(ks[0], (512, input_dim, 3), input_dim * 3),
        "conv1_b": u(ks[1], (512,), input_dim * 3),   # unused: cancels under training-mode BN
        "bn1_g": jnp.ones((512,), jnp.float32),
        "bn1_b": jnp.zeros((512,), jnp.float32),
        "conv2_w": u(ks[2], (256, 512, 3), 512 * 3),
        "conv2_b": u(ks[3], (256,), 512 * 3),         # unused: cancels under training-mode BN
        "bn2_g": jnp.ones((256,), jnp.float32),
        "bn2_b": jnp.zeros((256,), jnp.float32),
        "conv3_w": u(ks[4], (128, 256, 3), 256 * 3),
        "conv3_b": u(ks[5], (128,), 256 * 3),         # unused: cancels under training-mode BN
        "bn3_g": jnp.ones((128,), jnp.float32),
        "bn3_b": jnp.zeros((128,), jnp.float32),
        "lin1_w": u(ks[6], (256, 128), 128),
        "lin1_b": u(ks[7], (256,), 128),
        "lin2_w": u(ks[8], (output_dim, 256), 256),
        "lin2_b": u(ks[9], (output_dim,), 256),
    }


if __name__ == "__main__":
    # The Linear(128, 256) after Flatten implies conv3's spatial length must be 1,
    # so pick L = 4 (4 -> conv1:4 -> conv2(stride2):2 -> conv3(stride2):1).
    N, input_dim, L = 2, 8, 4
    output_dim = 16

    key = jax.random.PRNGKey(0)
    kx, kp = jax.random.split(key)
    x = jax.random.normal(kx, (N, input_dim, L), dtype=jnp.float32)
    params = init_params(kp, input_dim, output_dim)

    linear2, conv3, conv2 = gripper_fe_forward(params, x)
    jax.block_until_ready((linear2, conv3, conv2))

    assert linear2.shape == (N, output_dim)
    assert conv3.shape == (N, 128, 1)
    assert conv2.shape == (N, 256, 2)
    assert all(bool(jnp.all(jnp.isfinite(t))) for t in (linear2, conv3, conv2))

    print("KERNEL_OK")
</pallas_src>

<mosaic_0001>
module attributes {stable_mosaic.version = 11 : i64} {
  func.func @_fused_forward_kernel(%arg0: memref<8x128xf32, #tpu.memory_space<vmem>>, %arg1: memref<3x8x8xf32, #tpu.memory_space<vmem>>, %arg2: memref<384x512xbf16, #tpu.memory_space<vmem>>, %arg3: memref<1x512xf32, #tpu.memory_space<vmem>>, %arg4: memref<1x512xf32, #tpu.memory_space<vmem>>, %arg5: memref<3x4x8xf32, #tpu.memory_space<vmem>>, %arg6: memref<1536x256xbf16, #tpu.memory_space<vmem>>, %arg7: memref<1x256xf32, #tpu.memory_space<vmem>>, %arg8: memref<1x256xf32, #tpu.memory_space<vmem>>, %arg9: memref<3x2x4xf32, #tpu.memory_space<vmem>>, %arg10: memref<768x128xbf16, #tpu.memory_space<vmem>>, %arg11: memref<1x128xf32, #tpu.memory_space<vmem>>, %arg12: memref<1x128xf32, #tpu.memory_space<vmem>>, %arg13: memref<128x256xbf16, #tpu.memory_space<vmem>>, %arg14: memref<1x256xf32, #tpu.memory_space<vmem>>, %arg15: memref<256x128xbf16, #tpu.memory_space<vmem>>, %arg16: memref<1x128xf32, #tpu.memory_space<vmem>>, %arg17: memref<2x128xf32, #tpu.memory_space<vmem>>, %arg18: memref<2x128xf32, #tpu.memory_space<vmem>>, %arg19: memref<4x256xf32, #tpu.memory_space<vmem>>, %arg20: memref<8x384xbf16, #tpu.memory_space<vmem>>, %arg21: memref<4x1536xbf16, #tpu.memory_space<vmem>>, %arg22: memref<2x768xbf16, #tpu.memory_space<vmem>>) attributes {dimension_semantics = [], scalar_prefetch = 0 : i64, scratch_operands = 3 : i64, tpu.core_type = #tpu.core_type<tc>} {
    %c0 = arith.constant 0 : index
    %c0_0 = arith.constant 0 : index
    %0 = vector.load %arg0[%c0, %c0_0] : memref<8x128xf32, #tpu.memory_space<vmem>>, vector<8x128xf32>
    %c0_1 = arith.constant 0 : index
    %c0_2 = arith.constant 0 : index
    %c0_3 = arith.constant 0 : index
    %1 = vector.load %arg1[%c0_1, %c0_2, %c0_3] : memref<3x8x8xf32, #tpu.memory_space<vmem>>, vector<1x8x8xf32>
    %2 = vector.shape_cast %1 : vector<1x8x8xf32> to vector<8x8xf32>
    %cst = arith.constant dense<0.000000e+00> : vector<8x128xf32>
    %3 = tpu.matmul %2, %0, %cst {dimension_numbers = #tpu.dot_dimension_numbers<[1], [0], [0], [1], [0, 0, 1, 1], [], []>} : vector<8x8xf32>, vector<8x128xf32>, vector<8x128xf32> -> vector<8x128xf32>
    %4 = arith.truncf %3 : vector<8x128xf32> to vector<8x128xbf16>
    %c0_4 = arith.constant 0 : index
    %c0_5 = arith.constant 0 : index
    %5 = vector.load %arg20[%c0_4, %c0_5] : memref<8x384xbf16, #tpu.memory_space<vmem>>, vector<8x128xbf16>
    tpu.vector_store %arg20[%c0_4, %c0_5], %4 {strides = array<i32>} : memref<8x384xbf16, #tpu.memory_space<vmem>>, vector<8x128xbf16>,
    %c1 = arith.constant 1 : index
    %c0_6 = arith.constant 0 : index
    %c0_7 = arith.constant 0 : index
    %6 = vector.load %arg1[%c1, %c0_6, %c0_7] : memref<3x8x8xf32, #tpu.memory_space<vmem>>, vector<1x8x8xf32>
    %7 = vector.shape_cast %6 : vector<1x8x8xf32> to vector<8x8xf32>
    %cst_8 = arith.constant dense<0.000000e+00> : vector<8x128xf32>
    %8 = tpu.matmul %7, %0, %cst_8 {dimension_numbers = #tpu.dot_dimension_numbers<[1], [0], [0], [1], [0, 0, 1, 1], [], []>} : vector<8x8xf32>, vector<8x128xf32>, vector<8x128xf32> -> vector<8x128xf32>
    %9 = arith.truncf %8 : vector<8x128xf32> to vector<8x128xbf16>
    %c0_9 = arith.constant 0 : index
    %c128 = arith.constant 128 : index
    %10 = vector.load %arg20[%c0_9, %c128] : memref<8x384xbf16, #tpu.memory_space<vmem>>, vector<8x128xbf16>
    tpu.vector_store %arg20[%c0_9, %c128], %9 {strides = array<i32>} : memref<8x384xbf16, #tpu.memory_space<vmem>>, vector<8x128xbf16>,
    %c2 = arith.constant 2 : index
    %c0_10 = arith.constant 0 : index
    %c0_11 = arith.constant 0 : index
    %11 = vector.load %arg1[%c2, %c0_10, %c0_11] : memref<3x8x8xf32, #tpu.memory_space<vmem>>, vector<1x8x8xf32>
    %12 = vector.shape_cast %11 : vector<1x8x8xf32> to vector<8x8xf32>
    %cst_12 = arith.constant dense<0.000000e+00> : vector<8x128xf32>
    %13 = tpu.matmul %12, %0, %cst_12 {dimension_numbers = #tpu.dot_dimension_numbers<[1], [0], [0], [1], [0, 0, 1, 1], [], []>} : vector<8x8xf32>, vector<8x128xf32>, vector<8x128xf32> -> vector<8x128xf32>
    %14 = arith.truncf %13 : vector<8x128xf32> to vector<8x128xbf16>
    %c0_13 = arith.constant 0 : index
    %c256 = arith.constant 256 : index
    %15 = vector.load %arg20[%c0_13, %c256] : memref<8x384xbf16, #tpu.memory_space<vmem>>, vector<8x128xbf16>
    tpu.vector_store %arg20[%c0_13, %c256], %14 {strides = array<i32>} : memref<8x384xbf16, #tpu.memory_space<vmem>>, vector<8x128xbf16>,
    %c0_14 = arith.constant 0 : index
    %c0_15 = arith.constant 0 : index
    %16 = vector.load %arg20[%c0_14, %c0_15] : memref<8x384xbf16, #tpu.memory_space<vmem>>, vector<8x384xbf16>
    %c0_16 = arith.constant 0 : index
    %c0_17 = arith.constant 0 : index
    %17 = vector.load %arg2[%c0_16, %c0_17] : memref<384x512xbf16, #tpu.memory_space<vmem>>, vector<384x512xbf16>
    %cst_18 = arith.constant dense<0.000000e+00> : vector<8x512xf32>
    %18 = tpu.matmul %16, %17, %cst_18 {dimension_numbers = #tpu.dot_dimension_numbers<[1], [0], [0], [1], [0, 0, 1, 1], [], []>} : vector<8x384xbf16>, vector<384x512xbf16>, vector<8x512xf32> -> vector<8x512xf32>
    %cst_19 = arith.constant dense<0.000000e+00> : vector<512xf32>
    %19 = vector.multi_reduction <add>, %18, %cst_19 [0] : vector<8x512xf32> to vector<512xf32>
    %20 = vector.shape_cast %19 : vector<512xf32> to vector<1x512xf32>
    %cst_20 = arith.constant 8.000000e+00 : f32
    %21 = vector.broadcast %cst_20 : f32 to vector<1x512xf32>
    %22 = arith.divf %20, %21 : vector<1x512xf32>
    %23 = arith.mulf %18, %18 : vector<8x512xf32>
    %cst_21 = arith.constant dense<0.000000e+00> : vector<512xf32>
    %24 = vector.multi_reduction <add>, %23, %cst_21 [0] : vector<8x512xf32> to vector<512xf32>
    %25 = vector.shape_cast %24 : vector<512xf32> to vector<1x512xf32>
    %cst_22 = arith.constant 8.000000e+00 : f32
    %26 = vector.broadcast %cst_22 : f32 to vector<1x512xf32>
    %27 = arith.divf %25, %26 : vector<1x512xf32>
    %28 = arith.mulf %22, %22 : vector<1x512xf32>
    %29 = arith.subf %27, %28 : vector<1x512xf32>
    %cst_23 = arith.constant 0.000000e+00 : f32
    %30 = vector.broadcast %cst_23 : f32 to vector<1x512xf32>
    %31 = arith.maximumf %29, %30 : vector<1x512xf32>
    %c0_24 = arith.constant 0 : index
    %c0_25 = arith.constant 0 : index
    %32 = vector.load %arg3[%c0_24, %c0_25] : memref<1x512xf32, #tpu.memory_space<vmem>>, vector<1x512xf32>
    %cst_26 = arith.constant 9.99999974E-6 : f32
    %33 = vector.broadcast %cst_26 : f32 to vector<1x512xf32>
    %34 = arith.addf %31, %33 : vector<1x512xf32>
    %35 = math.rsqrt %34 : vector<1x512xf32>
    %36 = arith.mulf %32, %35 : vector<1x512xf32>
    %c0_27 = arith.constant 0 : index
    %c0_28 = arith.constant 0 : index
    %37 = vector.load %arg4[%c0_27, %c0_28] : memref<1x512xf32, #tpu.memory_space<vmem>>, vector<1x512xf32>
    %38 = arith.mulf %22, %36 : vector<1x512xf32>
    %39 = arith.subf %37, %38 : vector<1x512xf32>
    %40 = vector.broadcast %36 : vector<1x512xf32> to vector<8x512xf32>
    %41 = arith.mulf %18, %40 : vector<8x512xf32>
    %42 = vector.broadcast %39 : vector<1x512xf32> to vector<8x512xf32>
    %43 = arith.addf %41, %42 : vector<8x512xf32>
    %cst_29 = arith.constant 0.000000e+00 : f32
    %44 = vector.broadcast %cst_29 : f32 to vector<8x512xf32>
    %45 = arith.cmpf oge, %43, %44 : vector<8x512xf32>
    %cst_30 = arith.constant 0.00999999977 : f32
    %46 = vector.broadcast %cst_30 : f32 to vector<8x512xf32>
    %47 = arith.mulf %46, %43 : vector<8x512xf32>
    %48 = arith.select %45, %43, %47 : vector<8x512xi1>, vector<8x512xf32>
    %c0_31 = arith.constant 0 : index
    %c0_32 = arith.constant 0 : index
    %c0_33 = arith.constant 0 : index
    %49 = vector.load %arg5[%c0_31, %c0_32, %c0_33] : memref<3x4x8xf32, #tpu.memory_space<vmem>>, vector<1x4x8xf32>
    %50 = vector.shape_cast %49 : vector<1x4x8xf32> to vector<4x8xf32>
    %cst_34 = arith.constant dense<0.000000e+00> : vector<4x512xf32>
    %51 = tpu.matmul %50, %48, %cst_34 {dimension_numbers = #tpu.dot_dimension_numbers<[1], [0], [0], [1], [0, 0, 1, 1], [], []>} : vector<4x8xf32>, vector<8x512xf32>, vector<4x512xf32> -> vector<4x512xf32>
    %52 = arith.truncf %51 : vector<4x512xf32> to vector<4x512xbf16>
    %c0_35 = arith.constant 0 : index
    %c0_36 = arith.constant 0 : index
    %53 = vector.load %arg21[%c0_35, %c0_36] : memref<4x1536xbf16, #tpu.memory_space<vmem>>, vector<4x512xbf16>
    tpu.vector_store %arg21[%c0_35, %c0_36], %52 {strides = array<i32>} : memref<4x1536xbf16, #tpu.memory_space<vmem>>, vector<4x512xbf16>,
    %c1_37 = arith.constant 1 : index
    %c0_38 = arith.constant 0 : index
    %c0_39 = arith.constant 0 : index
    %54 = vector.load %arg5[%c1_37, %c0_38, %c0_39] : memref<3x4x8xf32, #tpu.memory_space<vmem>>, vector<1x4x8xf32>
    %55 = vector.shape_cast %54 : vector<1x4x8xf32> to vector<4x8xf32>
    %cst_40 = arith.constant dense<0.000000e+00> : vector<4x512xf32>
    %56 = tpu.matmul %55, %48, %cst_40 {dimension_numbers = #tpu.dot_dimension_numbers<[1], [0], [0], [1], [0, 0, 1, 1], [], []>} : vector<4x8xf32>, vector<8x512xf32>, vector<4x512xf32> -> vector<4x512xf32>
    %57 = arith.truncf %56 : vector<4x512xf32> to vector<4x512xbf16>
    %c0_41 = arith.constant 0 : index
    %c512 = arith.constant 512 : index
    %58 = vector.load %arg21[%c0_41, %c512] : memref<4x1536xbf16, #tpu.memory_space<vmem>>, vector<4x512xbf16>
    tpu.vector_store %arg21[%c0_41, %c512], %57 {strides = array<i32>} : memref<4x1536xbf16, #tpu.memory_space<vmem>>, vector<4x512xbf16>,
    %c2_42 = arith.constant 2 : index
    %c0_43 = arith.constant 0 : index
    %c0_44 = arith.constant 0 : index
    %59 = vector.load %arg5[%c2_42, %c0_43, %c0_44] : memref<3x4x8xf32, #tpu.memory_space<vmem>>, vector<1x4x8xf32>
    %60 = vector.shape_cast %59 : vector<1x4x8xf32> to vector<4x8xf32>
    %cst_45 = arith.constant dense<0.000000e+00> : vector<4x512xf32>
    %61 = tpu.matmul %60, %48, %cst_45 {dimension_numbers = #tpu.dot_dimension_numbers<[1], [0], [0], [1], [0, 0, 1, 1], [], []>} : vector<4x8xf32>, vector<8x512xf32>, vector<4x512xf32> -> vector<4x512xf32>
    %62 = arith.truncf %61 : vector<4x512xf32> to vector<4x512xbf16>
    %c0_46 = arith.constant 0 : index
    %c1024 = arith.constant 1024 : index
    %63 = vector.load %arg21[%c0_46, %c1024] : memref<4x1536xbf16, #tpu.memory_space<vmem>>, vector<4x512xbf16>
    tpu.vector_store %arg21[%c0_46, %c1024], %62 {strides = array<i32>} : memref<4x1536xbf16, #tpu.memory_space<vmem>>, vector<4x512xbf16>,
    %c0_47 = arith.constant 0 : index
    %c0_48 = arith.constant 0 : index
    %64 = vector.load %arg21[%c0_47, %c0_48] : memref<4x1536xbf16, #tpu.memory_space<vmem>>, vector<4x1536xbf16>
    %c0_49 = arith.constant 0 : index
    %c0_50 = arith.constant 0 : index
    %65 = vector.load %arg6[%c0_49, %c0_50] : memref<1536x256xbf16, #tpu.memory_space<vmem>>, vector<1536x256xbf16>
    %cst_51 = arith.constant dense<0.000000e+00> : vector<4x256xf32>
    %66 = tpu.matmul %64, %65, %cst_51 {dimension_numbers = #tpu.dot_dimension_numbers<[1], [0], [0], [1], [0, 0, 1, 1], [], []>} : vector<4x1536xbf16>, vector<1536x256xbf16>, vector<4x256xf32> -> vector<4x256xf32>
    %cst_52 = arith.constant dense<0.000000e+00> : vector<256xf32>
    %67 = vector.multi_reduction <add>, %66, %cst_52 [0] : vector<4x256xf32> to vector<256xf32>
    %68 = vector.shape_cast %67 : vector<256xf32> to vector<1x256xf32>
    %cst_53 = arith.constant 4.000000e+00 : f32
    %69 = vector.broadcast %cst_53 : f32 to vector<1x256xf32>
    %70 = arith.divf %68, %69 : vector<1x256xf32>
    %71 = arith.mulf %66, %66 : vector<4x256xf32>
    %cst_54 = arith.constant dense<0.000000e+00> : vector<256xf32>
    %72 = vector.multi_reduction <add>, %71, %cst_54 [0] : vector<4x256xf32> to vector<256xf32>
    %73 = vector.shape_cast %72 : vector<256xf32> to vector<1x256xf32>
    %cst_55 = arith.constant 4.000000e+00 : f32
    %74 = vector.broadcast %cst_55 : f32 to vector<1x256xf32>
    %75 = arith.divf %73, %74 : vector<1x256xf32>
    %76 = arith.mulf %70, %70 : vector<1x256xf32>
    %77 = arith.subf %75, %76 : vector<1x256xf32>
    %cst_56 = arith.constant 0.000000e+00 : f32
    %78 = vector.broadcast %cst_56 : f32 to vector<1x256xf32>
    %79 = arith.maximumf %77, %78 : vector<1x256xf32>
    %c0_57 = arith.constant 0 : index
    %c0_58 = arith.constant 0 : index
    %80 = vector.load %arg7[%c0_57, %c0_58] : memref<1x256xf32, #tpu.memory_space<vmem>>, vector<1x256xf32>
    %cst_59 = arith.constant 9.99999974E-6 : f32
    %81 = vector.broadcast %cst_59 : f32 to vector<1x256xf32>
    %82 = arith.addf %79, %81 : vector<1x256xf32>
    %83 = math.rsqrt %82 : vector<1x256xf32>
    %84 = arith.mulf %80, %83 : vector<1x256xf32>
    %c0_60 = arith.constant 0 : index
    %c0_61 = arith.constant 0 : index
    %85 = vector.load %arg8[%c0_60, %c0_61] : memref<1x256xf32, #tpu.memory_space<vmem>>, vector<1x256xf32>
    %86 = arith.mulf %70, %84 : vector<1x256xf32>
    %87 = arith.subf %85, %86 : vector<1x256xf32>
    %88 = vector.broadcast %84 : vector<1x256xf32> to vector<4x256xf32>
    %89 = arith.mulf %66, %88 : vector<4x256xf32>
    %90 = vector.broadcast %87 : vector<1x256xf32> to vector<4x256xf32>
    %91 = arith.addf %89, %90 : vector<4x256xf32>
    %cst_62 = arith.constant 0.000000e+00 : f32
    %92 = vector.broadcast %cst_62 : f32 to vector<4x256xf32>
    %93 = arith.cmpf oge, %91, %92 : vector<4x256xf32>
    %cst_63 = arith.constant 0.00999999977 : f32
    %94 = vector.broadcast %cst_63 : f32 to vector<4x256xf32>
    %95 = arith.mulf %94, %91 : vector<4x256xf32>
    %96 = arith.select %93, %91, %95 : vector<4x256xi1>, vector<4x256xf32>
    %c0_64 = arith.constant 0 : index
    %c0_65 = arith.constant 0 : index
    %c0_66 = arith.constant 0 : index
    %97 = vector.load %arg9[%c0_64, %c0_65, %c0_66] : memref<3x2x4xf32, #tpu.memory_space<vmem>>, vector<1x2x4xf32>
    %98 = vector.shape_cast %97 : vector<1x2x4xf32> to vector<2x4xf32>
    %cst_67 = arith.constant dense<0.000000e+00> : vector<2x256xf32>
    %99 = tpu.matmul %98, %96, %cst_67 {dimension_numbers = #tpu.dot_dimension_numbers<[1], [0], [0], [1], [0, 0, 1, 1], [], []>} : vector<2x4xf32>, vector<4x256xf32>, vector<2x256xf32> -> vector<2x256xf32>
    %100 = arith.truncf %99 : vector<2x256xf32> to vector<2x256xbf16>
    %c0_68 = arith.constant 0 : index
    %c0_69 = arith.constant 0 : index
    %101 = vector.load %arg22[%c0_68, %c0_69] : memref<2x768xbf16, #tpu.memory_space<vmem>>, vector<2x256xbf16>
    tpu.vector_store %arg22[%c0_68, %c0_69], %100 {strides = array<i32>} : memref<2x768xbf16, #tpu.memory_space<vmem>>, vector<2x256xbf16>,
    %c1_70 = arith.constant 1 : index
    %c0_71 = arith.constant 0 : index
    %c0_72 = arith.constant 0 : index
    %102 = vector.load %arg9[%c1_70, %c0_71, %c0_72] : memref<3x2x4xf32, #tpu.memory_space<vmem>>, vector<1x2x4xf32>
    %103 = vector.shape_cast %102 : vector<1x2x4xf32> to vector<2x4xf32>
    %cst_73 = arith.constant dense<0.000000e+00> : vector<2x256xf32>
    %104 = tpu.matmul %103, %96, %cst_73 {dimension_numbers = #tpu.dot_dimension_numbers<[1], [0], [0], [1], [0, 0, 1, 1], [], []>} : vector<2x4xf32>, vector<4x256xf32>, vector<2x256xf32> -> vector<2x256xf32>
    %105 = arith.truncf %104 : vector<2x256xf32> to vector<2x256xbf16>
    %c0_74 = arith.constant 0 : index
    %c256_75 = arith.constant 256 : index
    %106 = vector.load %arg22[%c0_74, %c256_75] : memref<2x768xbf16, #tpu.memory_space<vmem>>, vector<2x256xbf16>
    tpu.vector_store %arg22[%c0_74, %c256_75], %105 {strides = array<i32>} : memref<2x768xbf16, #tpu.memory_space<vmem>>, vector<2x256xbf16>,
    %c2_76 = arith.constant 2 : index
    %c0_77 = arith.constant 0 : index
    %c0_78 = arith.constant 0 : index
    %107 = vector.load %arg9[%c2_76, %c0_77, %c0_78] : memref<3x2x4xf32, #tpu.memory_space<vmem>>, vector<1x2x4xf32>
    %108 = vector.shape_cast %107 : vector<1x2x4xf32> to vector<2x4xf32>
    %cst_79 = arith.constant dense<0.000000e+00> : vector<2x256xf32>
    %109 = tpu.matmul %108, %96, %cst_79 {dimension_numbers = #tpu.dot_dimension_numbers<[1], [0], [0], [1], [0, 0, 1, 1], [], []>} : vector<2x4xf32>, vector<4x256xf32>, vector<2x256xf32> -> vector<2x256xf32>
    %110 = arith.truncf %109 : vector<2x256xf32> to vector<2x256xbf16>
    %c0_80 = arith.constant 0 : index
    %c512_81 = arith.constant 512 : index
    %111 = vector.load %arg22[%c0_80, %c512_81] : memref<2x768xbf16, #tpu.memory_space<vmem>>, vector<2x256xbf16>
    tpu.vector_store %arg22[%c0_80, %c512_81], %110 {strides = array<i32>} : memref<2x768xbf16, #tpu.memory_space<vmem>>, vector<2x256xbf16>,
    %c0_82 = arith.constant 0 : index
    %c0_83 = arith.constant 0 : index
    %112 = vector.load %arg22[%c0_82, %c0_83] : memref<2x768xbf16, #tpu.memory_space<vmem>>, vector<2x768xbf16>
    %c0_84 = arith.constant 0 : index
    %c0_85 = arith.constant 0 : index
    %113 = vector.load %arg10[%c0_84, %c0_85] : memref<768x128xbf16, #tpu.memory_space<vmem>>, vector<768x128xbf16>
    %cst_86 = arith.constant dense<0.000000e+00> : vector<2x128xf32>
    %114 = tpu.matmul %112, %113, %cst_86 {dimension_numbers = #tpu.dot_dimension_numbers<[1], [0], [0], [1], [0, 0, 1, 1], [], []>} : vector<2x768xbf16>, vector<768x128xbf16>, vector<2x128xf32> -> vector<2x128xf32>
    %cst_87 = arith.constant dense<0.000000e+00> : vector<128xf32>
    %115 = vector.multi_reduction <add>, %114, %cst_87 [0] : vector<2x128xf32> to vector<128xf32>
    %116 = vector.shape_cast %115 : vector<128xf32> to vector<1x128xf32>
    %cst_88 = arith.constant 2.000000e+00 : f32
    %117 = vector.broadcast %cst_88 : f32 to vector<1x128xf32>
    %118 = arith.divf %116, %117 : vector<1x128xf32>
    %119 = arith.mulf %114, %114 : vector<2x128xf32>
    %cst_89 = arith.constant dense<0.000000e+00> : vector<128xf32>
    %120 = vector.multi_reduction <add>, %119, %cst_89 [0] : vector<2x128xf32> to vector<128xf32>
    %121 = vector.shape_cast %120 : vector<128xf32> to vector<1x128xf32>
    %cst_90 = arith.constant 2.000000e+00 : f32
    %122 = vector.broadcast %cst_90 : f32 to vector<1x128xf32>
    %123 = arith.divf %121, %122 : vector<1x128xf32>
    %124 = arith.mulf %118, %118 : vector<1x128xf32>
    %125 = arith.subf %123, %124 : vector<1x128xf32>
    %cst_91 = arith.constant 0.000000e+00 : f32
    %126 = vector.broadcast %cst_91 : f32 to vector<1x128xf32>
    %127 = arith.maximumf %125, %126 : vector<1x128xf32>
    %c0_92 = arith.constant 0 : index
    %c0_93 = arith.constant 0 : index
    %128 = vector.load %arg11[%c0_92, %c0_93] : memref<1x128xf32, #tpu.memory_space<vmem>>, vector<1x128xf32>
    %cst_94 = arith.constant 9.99999974E-6 : f32
    %129 = vector.broadcast %cst_94 : f32 to vector<1x128xf32>
    %130 = arith.addf %127, %129 : vector<1x128xf32>
    %131 = math.rsqrt %130 : vector<1x128xf32>
    %132 = arith.mulf %128, %131 : vector<1x128xf32>
    %c0_95 = arith.constant 0 : index
    %c0_96 = arith.constant 0 : index
    %133 = vector.load %arg12[%c0_95, %c0_96] : memref<1x128xf32, #tpu.memory_space<vmem>>, vector<1x128xf32>
    %134 = arith.mulf %118, %132 : vector<1x128xf32>
    %135 = arith.subf %133, %134 : vector<1x128xf32>
    %136 = vector.broadcast %132 : vector<1x128xf32> to vector<2x128xf32>
    %137 = arith.mulf %114, %136 : vector<2x128xf32>
    %138 = vector.broadcast %135 : vector<1x128xf32> to vector<2x128xf32>
    %139 = arith.addf %137, %138 : vector<2x128xf32>
    %cst_97 = arith.constant 0.000000e+00 : f32
    %140 = vector.broadcast %cst_97 : f32 to vector<2x128xf32>
    %141 = arith.cmpf oge, %139, %140 : vector<2x128xf32>
    %cst_98 = arith.constant 0.00999999977 : f32
    %142 = vector.broadcast %cst_98 : f32 to vector<2x128xf32>
    %143 = arith.mulf %142, %139 : vector<2x128xf32>
    %144 = arith.select %141, %139, %143 : vector<2x128xi1>, vector<2x128xf32>
    %c0_99 = arith.constant 0 : index
    %c0_100 = arith.constant 0 : index
    %145 = vector.load %arg19[%c0_99, %c0_100] : memref<4x256xf32, #tpu.memory_space<vmem>>, vector<4x256xf32>
    tpu.vector_store %arg19[%c0_99, %c0_100], %96 {strides = array<i32>} : memref<4x256xf32, #tpu.memory_space<vmem>>, vector<4x256xf32>,
    %c0_101 = arith.constant 0 : index
    %c0_102 = arith.constant 0 : index
    %146 = vector.load %arg18[%c0_101, %c0_102] : memref<2x128xf32, #tpu.memory_space<vmem>>, vector<2x128xf32>
    tpu.vector_store %arg18[%c0_101, %c0_102], %144 {strides = array<i32>} : memref<2x128xf32, #tpu.memory_space<vmem>>, vector<2x128xf32>,
    %147 = arith.truncf %144 : vector<2x128xf32> to vector<2x128xbf16>
    %c0_103 = arith.constant 0 : index
    %c0_104 = arith.constant 0 : index
    %148 = vector.load %arg13[%c0_103, %c0_104] : memref<128x256xbf16, #tpu.memory_space<vmem>>, vector<128x256xbf16>
    %cst_105 = arith.constant dense<0.000000e+00> : vector<2x256xf32>
    %149 = tpu.matmul %147, %148, %cst_105 {dimension_numbers = #tpu.dot_dimension_numbers<[1], [0], [0], [1], [0, 0, 1, 1], [], []>} : vector<2x128xbf16>, vector<128x256xbf16>, vector<2x256xf32> -> vector<2x256xf32>
    %c0_106 = arith.constant 0 : index
    %c0_107 = arith.constant 0 : index
    %150 = vector.load %arg14[%c0_106, %c0_107] : memref<1x256xf32, #tpu.memory_space<vmem>>, vector<1x256xf32>
    %151 = vector.broadcast %150 : vector<1x256xf32> to vector<2x256xf32>
    %152 = arith.addf %149, %151 : vector<2x256xf32>
    %cst_108 = arith.constant 0.000000e+00 : f32
    %153 = vector.broadcast %cst_108 : f32 to vector<2x256xf32>
    %154 = arith.maximumf %152, %153 : vector<2x256xf32>
    %155 = arith.truncf %154 : vector<2x256xf32> to vector<2x256xbf16>
    %c0_109 = arith.constant 0 : index
    %c0_110 = arith.constant 0 : index
    %156 = vector.load %arg15[%c0_109, %c0_110] : memref<256x128xbf16, #tpu.memory_space<vmem>>, vector<256x128xbf16>
    %cst_111 = arith.constant dense<0.000000e+00> : vector<2x128xf32>
    %157 = tpu.matmul %155, %156, %cst_111 {dimension_numbers = #tpu.dot_dimension_numbers<[1], [0], [0], [1], [0, 0, 1, 1], [], []>} : vector<2x256xbf16>, vector<256x128xbf16>, vector<2x128xf32> -> vector<2x128xf32>
    %c0_112 = arith.constant 0 : index
    %c0_113 = arith.constant 0 : index
    %158 = vector.load %arg16[%c0_112, %c0_113] : memref<1x128xf32, #tpu.memory_space<vmem>>, vector<1x128xf32>
    %159 = vector.broadcast %158 : vector<1x128xf32> to vector<2x128xf32>
    %160 = arith.addf %157, %159 : vector<2x128xf32>
    %c0_114 = arith.constant 0 : index
    %c0_115 = arith.constant 0 : index
    %161 = vector.load %arg17[%c0_114, %c0_115] : memref<2x128xf32, #tpu.memory_space<vmem>>, vector<2x128xf32>
    tpu.vector_store %arg17[%c0_114, %c0_115], %160 {strides = array<i32>} : memref<2x128xf32, #tpu.memory_space<vmem>>, vector<2x128xf32>,
    return
  }
}

</mosaic_0001>

<llo_original>
// kernel: gripper_fe_forward.1
$region0: #{gripper_fe_forward.1}
  #allocation0 [shape = 'u32[]', space=smem, size = 0x4, offset = 0x4, fixed_abs, tag = 'smem constant byte address 0x4 - core index']
  #allocation1 [shape = 'u32[144,128]{1,0:T(1,128)}', space=vmem, size = 0x12000, scoped, tag = 'internal scratch']
  #allocation2 [shape = 'bf16[8,384]{1,0:T(8,128)(2,1)}', space=vmem, size = 0x1800, scoped, tag = 'scratch operand']
  #allocation3 [shape = 'bf16[4,1536]{1,0:T(4,128)(2,1)}', space=vmem, size = 0x3000, scoped, tag = 'scratch operand']
  #allocation4 [shape = 'bf16[2,768]{1,0:T(2,128)(2,1)}', space=vmem, size = 0xc00, scoped, tag = 'scratch operand']
  %s0 = inlined_call_operand.vmem [shape: f32[8,128], index: 0, kind: input, shape index: {}]
  %s1 = inlined_call_operand.vmem [shape: f32[3,8,8], index: 1, kind: input, shape index: {}]
  %s2 = inlined_call_operand.vmem [shape: bf16[384,512], index: 2, kind: input, shape index: {}]
  %s3 = inlined_call_operand.vmem [shape: f32[1,512], index: 3, kind: input, shape index: {}]
  %s4 = inlined_call_operand.vmem [shape: f32[1,512], index: 4, kind: input, shape index: {}]
  %s5 = inlined_call_operand.vmem [shape: f32[3,4,8], index: 5, kind: input, shape index: {}]
  %s6 = inlined_call_operand.vmem [shape: bf16[1536,256], index: 6, kind: input, shape index: {}]
  %s7 = inlined_call_operand.vmem [shape: f32[1,256], index: 7, kind: input, shape index: {}]
  %s8 = inlined_call_operand.vmem [shape: f32[1,256], index: 8, kind: input, shape index: {}]
  %s9 = inlined_call_operand.vmem [shape: f32[3,2,4], index: 9, kind: input, shape index: {}]
  %s10 = inlined_call_operand.vmem [shape: bf16[768,128], index: 10, kind: input, shape index: {}]
  %s11 = inlined_call_operand.vmem [shape: f32[1,128], index: 11, kind: input, shape index: {}]
  %s12 = inlined_call_operand.vmem [shape: f32[1,128], index: 12, kind: input, shape index: {}]
  %s13 = inlined_call_operand.vmem [shape: bf16[128,256], index: 13, kind: input, shape index: {}]
  %s14 = inlined_call_operand.vmem [shape: f32[1,256], index: 14, kind: input, shape index: {}]
  %s15 = inlined_call_operand.vmem [shape: bf16[256,128], index: 15, kind: input, shape index: {}]
  %s16 = inlined_call_operand.vmem [shape: f32[1,128], index: 16, kind: input, shape index: {}]
  %s17 = inlined_call_operand.hbm [shape: f32[2,128], index: 17, kind: output, shape index: {0}]
  %s18 = inlined_call_operand.hbm [shape: f32[2,128], index: 18, kind: output, shape index: {1}]
  %s19 = inlined_call_operand.vmem [shape: f32[4,256], index: 19, kind: output, shape index: {2}]
  %20 = xla_tuple %s17, %s18, %s19
  %s21 = sld [smem:[#allocation0]]
  $region94: #{gripper_fe_forward.1} parent=0
    _
  %s23 = ssub.s32 1, %s21
  %s24 = scalar_select 0, %s23, %s21
  $region1: #{gripper_fe_forward.1} parent=0
    #allocation5 [shape = 'u8[1024]{0}', space=vmem, size = 0x400, scoped, tag = 'output window, operand 0, single buffered']
    #allocation6 [shape = 's32[1]{0}', space=sflag, size = 0x4, scoped, tag = 'scoped memory for gripper_fe_forward.1']
    #allocation7 [shape = 'u8[1024]{0}', space=vmem, size = 0x400, scoped, tag = 'output window, operand 1, single buffered']
    #allocation8 [shape = 's32[1]{0}', space=sflag, size = 0x4, scoped, tag = 'scoped memory for gripper_fe_forward.1']
    %25 = vsyncpa [#allocation6], 0
    %26 = vsyncpa [#allocation8], 0
    // Predicated region
    $region2: #{gripper_fe_forward.1} parent=1 // pred_check
      _
    $region3: #{gripper_fe_forward.1} parent=1 // pred_check_branch
      %28 = sbr.rel (0) target = $region5
    $region4: #{gripper_fe_forward.1} parent=1 // pred_region
      _
    $region5: #{gripper_fe_forward.1} parent=1 // pred_fallthru
      _
    // Predicated region
    $region6: #{gripper_fe_forward.1} parent=1 // pred_check
      _
    $region7: #{gripper_fe_forward.1} parent=1 // pred_check_branch
      %30 = sbr.rel (0) target = $region9
    $region8: #{gripper_fe_forward.1} parent=1 // pred_region
      _
    $region9: #{gripper_fe_forward.1} parent=1 // pred_fallthru
      _
    // Predicated region
    $region10: #{gripper_fe_forward.1} parent=1 // pred_check
      _
    $region11: #{gripper_fe_forward.1} parent=1 // pred_check_branch
      %32 = sbr.rel (0) target = $region13
    $region12: #{gripper_fe_forward.1} parent=1 // pred_region
      _
    $region13: #{gripper_fe_forward.1} parent=1 // pred_fallthru
      _
    // Predicated region
    $region14: #{gripper_fe_forward.1} parent=1 // pred_check
      _
    $region15: #{gripper_fe_forward.1} parent=1 // pred_check_branch
      %34 = sbr.rel (0) target = $region17
    $region16: #{gripper_fe_forward.1} parent=1 // pred_region
      _
    $region17: #{gripper_fe_forward.1} parent=1 // pred_fallthru
      _
    // Predicated region
    $region18: #{gripper_fe_forward.1} parent=1 // pred_check
      _
    $region19: #{gripper_fe_forward.1} parent=1 // pred_check_branch
      %36 = sbr.rel (0) target = $region21
    $region20: #{gripper_fe_forward.1} parent=1 // pred_region
      _
    $region21: #{gripper_fe_forward.1} parent=1 // pred_fallthru
      _
    // Predicated region
    $region22: #{gripper_fe_forward.1} parent=1 // pred_check
      _
    $region23: #{gripper_fe_forward.1} parent=1 // pred_check_branch
      %38 = sbr.rel (0) target = $region25
    $region24: #{gripper_fe_forward.1} parent=1 // pred_region
      _
    $region25: #{gripper_fe_forward.1} parent=1 // pred_fallthru
      _
    // Predicated region
    $region26: #{gripper_fe_forward.1} parent=1 // pred_check
      _
    $region27: #{gripper_fe_forward.1} parent=1 // pred_check_branch
      %40 = sbr.rel (0) target = $region29
    $region28: #{gripper_fe_forward.1} parent=1 // pred_region
      _
    $region29: #{gripper_fe_forward.1} parent=1 // pred_fallthru
      _
    // Predicated region
    $region30: #{gripper_fe_forward.1} parent=1 // pred_check
      _
    $region31: #{gripper_fe_forward.1} parent=1 // pred_check_branch
      %42 = sbr.rel (0) target = $region33
    $region32: #{gripper_fe_forward.1} parent=1 // pred_region
      _
    $region33: #{gripper_fe_forward.1} parent=1 // pred_fallthru
      _
    // Predicated region
    $region34: #{gripper_fe_forward.1} parent=1 // pred_check
      _
    $region35: #{gripper_fe_forward.1} parent=1 // pred_check_branch
      %44 = sbr.rel (0) target = $region37
    $region36: #{gripper_fe_forward.1} parent=1 // pred_region
      _
    $region37: #{gripper_fe_forward.1} parent=1 // pred_fallthru
      _
    // Predicated region
    $region38: #{gripper_fe_forward.1} parent=1 // pred_check
      _
    $region39: #{gripper_fe_forward.1} parent=1 // pred_check_branch
      %46 = sbr.rel (0) target = $region41
    $region40: #{gripper_fe_forward.1} parent=1 // pred_region
      _
    $region41: #{gripper_fe_forward.1} parent=1 // pred_fallthru
      _
    // Predicated region
    $region42: #{gripper_fe_forward.1} parent=1 // pred_check
      _
    $region43: #{gripper_fe_forward.1} parent=1 // pred_check_branch
      %48 = sbr.rel (0) target = $region45
    $region44: #{gripper_fe_forward.1} parent=1 // pred_region
      _
    $region45: #{gripper_fe_forward.1} parent=1 // pred_fallthru
      _
    // Predicated region
    $region46: #{gripper_fe_forward.1} parent=1 // pred_check
      _
    $region47: #{gripper_fe_forward.1} parent=1 // pred_check_branch
      %50 = sbr.rel (0) target = $region49
    $region48: #{gripper_fe_forward.1} parent=1 // pred_region
      _
    $region49: #{gripper_fe_forward.1} parent=1 // pred_fallthru
      _
    // Predicated region
    $region50: #{gripper_fe_forward.1} parent=1 // pred_check
      _
    $region51: #{gripper_fe_forward.1} parent=1 // pred_check_branch
      %52 = sbr.rel (0) target = $region53
    $region52: #{gripper_fe_forward.1} parent=1 // pred_region
      _
    $region53: #{gripper_fe_forward.1} parent=1 // pred_fallthru
      _
    // Predicated region
    $region54: #{gripper_fe_forward.1} parent=1 // pred_check
      _
    $region55: #{gripper_fe_forward.1} parent=1 // pred_check_branch
      %54 = sbr.rel (0) target = $region57
    $region56: #{gripper_fe_forward.1} parent=1 // pred_region
      _
    $region57: #{gripper_fe_forward.1} parent=1 // pred_fallthru
      _
    // Predicated region
    $region58: #{gripper_fe_forward.1} parent=1 // pred_check
      _
    $region59: #{gripper_fe_forward.1} parent=1 // pred_check_branch
      %56 = sbr.rel (0) target = $region61
    $region60: #{gripper_fe_forward.1} parent=1 // pred_region
      _
    $region61: #{gripper_fe_forward.1} parent=1 // pred_fallthru
      _
    // Predicated region
    $region62: #{gripper_fe_forward.1} parent=1 // pred_check
      _
    $region63: #{gripper_fe_forward.1} parent=1 // pred_check_branch
      %58 = sbr.rel (0) target = $region65
    $region64: #{gripper_fe_forward.1} parent=1 // pred_region
      _
    $region65: #{gripper_fe_forward.1} parent=1 // pred_fallthru
      _
    // Predicated region
    $region66: #{gripper_fe_forward.1} parent=1 // pred_check
      _
    $region67: #{gripper_fe_forward.1} parent=1 // pred_check_branch
      %60 = sbr.rel (0) target = $region69
    $region68: #{gripper_fe_forward.1} parent=1 // pred_region
      _
    $region69: #{gripper_fe_forward.1} parent=1 // pred_fallthru
      _
    %v62 = vld [vmem:[%s0] sm:$0xff]
    %v63 = vld [vmem:[%s1] sm:$0xff]
    %vm64 = vcmask 64512
    %v66 = vsel %vm64, %v63, 0
    %68 = vmatprep.subr.mxu0 0.0
    %69 = vmatpush1.msra.mxu0 0.0
    %70 = vmatprep.subr.mxu0 0.0
    %71 = vmatpush1.msra.mxu0 0.0
    %72 = vmatprep.subr.mxu0 0.0
    %73 = vmatpush1.msra.mxu0 0.0
    %74 = vmatprep.subr.mxu0 0.0
    %75 = vmatpush1.msra.mxu0 0.0
    %76 = vmatprep.subr.mxu0 0.0
    %77 = vmatpush1.msra.mxu0 0.0
    %78 = vmatprep.subr.mxu0 0.0
    %79 = vmatpush1.msra.mxu0 0.0
    %80 = vmatprep.subr.mxu0 0.0
    %81 = vmatpush1.msra.mxu0 0.0
    %82 = vmatprep.subr.mxu0 0.0
    %83 = vmatpush1.msra.mxu0 0.0
    %84 = vmatprep.subr.mxu0 0.0
    %85 = vmatpush1.msra.mxu0 0.0
    %86 = vmatprep.subr.mxu0 0.0
    %87 = vmatpush1.msra.mxu0 0.0
    %88 = vmatprep.subr.mxu0 0.0
    %89 = vmatpush1.msra.mxu0 0.0
    %90 = vmatprep.subr.mxu0 0.0
    %91 = vmatpush1.msra.mxu0 0.0
    %92 = vmatprep.subr.mxu0 0.0
    %93 = vmatpush1.msra.mxu0 0.0
    %94 = vmatprep.subr.mxu0 0.0
    %95 = vmatpush1.msra.mxu0 0.0
    %96 = vmatprep.subr.mxu0 0.0
    %97 = vmatpush1.msra.mxu0 0.0
    %98 = vmatprep.subr.mxu0 0.0
    %99 = vmatpush1.msra.mxu0 %v62
    %100 = vmatprep.subr.mxu0 0.0
    %101 = vmatpush2.msra.mxu0 0.0
    %102 = vmatprep.subr.mxu0 0.0
    %103 = vmatpush2.msra.mxu0 0.0
    %104 = vmatprep.subr.mxu0 0.0
    %105 = vmatpush2.msra.mxu0 0.0
    %106 = vmatprep.subr.mxu0 0.0
    %107 = vmatpush2.msra.mxu0 0.0
    %108 = vmatprep.subr.mxu0 0.0
    %109 = vmatpush2.msra.mxu0 0.0
    %110 = vmatprep.subr.mxu0 0.0
    %111 = vmatpush2.msra.mxu0 0.0
    %112 = vmatprep.subr.mxu0 0.0
    %113 = vmatpush2.msra.mxu0 0.0
    %114 = vmatprep.subr.mxu0 0.0
    %115 = vmatpush2.msra.mxu0 0.0
    %116 = vmatprep.subr.mxu0 0.0
    %117 = vmatpush2.msra.mxu0 0.0
    %118 = vmatprep.subr.mxu0 0.0
    %119 = vmatpush2.msra.mxu0 0.0
    %120 = vmatprep.subr.mxu0 0.0
    %121 = vmatpush2.msra.mxu0 0.0
    %122 = vmatprep.subr.mxu0 0.0
    %123 = vmatpush2.msra.mxu0 0.0
    %124 = vmatprep.subr.mxu0 0.0
    %125 = vmatpush2.msra.mxu0 0.0
    %126 = vmatprep.subr.mxu0 0.0
    %127 = vmatpush2.msra.mxu0 0.0
    %128 = vmatprep.subr.mxu0 0.0
    %129 = vmatpush2.msra.mxu0 0.0
    %130 = vmatprep.subr.mxu0 0.0
    %131 = vmatpush2.msra.mxu0 0.0
    %132 = vmatprep.mubr.f32.mxu0 0.0
    %133 = vmatmul.mubr.f32.gmra.mxu0 %v66
    %v134 = vpop.f32.mrf.mxu0
    %v135 = vadd.f32 0.0, %v134
    %v136 = vpop.f32.mrf.mxu0
    %137 = vdwg.mxu0
    %v138 = vpack.c.bf16 %v135, %v135
    %139 = vst [vmem:[#allocation2] sm:$0xf] %v138
    %s140 = scalar_lea.vmem %s1, 8
    %v141 = vld [vmem:[%s140] sm:$0xff]
    %v143 = vsel %vm64, %v141, 0
    %145 = vmatprep.subr.mxu0 0.0
    %146 = vmatpush1.msra.mxu0 0.0
    %147 = vmatprep.subr.mxu0 0.0
    %148 = vmatpush1.msra.mxu0 0.0
    %149 = vmatprep.subr.mxu0 0.0
    %150 = vmatpush1.msra.mxu0 0.0
    %151 = vmatprep.subr.mxu0 0.0
    %152 = vmatpush1.msra.mxu0 0.0
    %153 = vmatprep.subr.mxu0 0.0
    %154 = vmatpush1.msra.mxu0 0.0
    %155 = vmatprep.subr.mxu0 0.0
    %156 = vmatpush1.msra.mxu0 0.0
    %157 = vmatprep.subr.mxu0 0.0
    %158 = vmatpush1.msra.mxu0 0.0
    %159 = vmatprep.subr.mxu0 0.0
    %160 = vmatpush1.msra.mxu0 0.0
    %161 = vmatprep.subr.mxu0 0.0
    %162 = vmatpush1.msra.mxu0 0.0
    %163 = vmatprep.subr.mxu0 0.0
    %164 = vmatpush1.msra.mxu0 0.0
    %165 = vmatprep.subr.mxu0 0.0
    %166 = vmatpush1.msra.mxu0 0.0
    %167 = vmatprep.subr.mxu0 0.0
    %168 = vmatpush1.msra.mxu0 0.0
    %169 = vmatprep.subr.mxu0 0.0
    %170 = vmatpush1.msra.mxu0 0.0
    %171 = vmatprep.subr.mxu0 0.0
    %172 = vmatpush1.msra.mxu0 0.0
    %173 = vmatprep.subr.mxu0 0.0
    %174 = vmatpush1.msra.mxu0 0.0
    %175 = vmatprep.subr.mxu0 0.0
    %176 = vmatpush1.msra.mxu0 %v62
    %177 = vmatprep.subr.mxu0 0.0
    %178 = vmatpush2.msra.mxu0 0.0
    %179 = vmatprep.subr.mxu0 0.0
    %180 = vmatpush2.msra.mxu0 0.0
    %181 = vmatprep.subr.mxu0 0.0
    %182 = vmatpush2.msra.mxu0 0.0
    %183 = vmatprep.subr.mxu0 0.0
    %184 = vmatpush2.msra.mxu0 0.0
    %185 = vmatprep.subr.mxu0 0.0
    %186 = vmatpush2.msra.mxu0 0.0
    %187 = vmatprep.subr.mxu0 0.0
    %188 = vmatpush2.msra.mxu0 0.0
    %189 = vmatprep.subr.mxu0 0.0
    %190 = vmatpush2.msra.mxu0 0.0
    %191 = vmatprep.subr.mxu0 0.0
    %192 = vmatpush2.msra.mxu0 0.0
    %193 = vmatprep.subr.mxu0 0.0
    %194 = vmatpush2.msra.mxu0 0.0
    %195 = vmatprep.subr.mxu0 0.0
    %196 = vmatpush2.msra.mxu0 0.0
    %197 = vmatprep.subr.mxu0 0.0
    %198 = vmatpush2.msra.mxu0 0.0
    %199 = vmatprep.subr.mxu0 0.0
    %200 = vmatpush2.msra.mxu0 0.0
    %201 = vmatprep.subr.mxu0 0.0
    %202 = vmatpush2.msra.mxu0 0.0
    %203 = vmatprep.subr.mxu0 0.0
    %204 = vmatpush2.msra.mxu0 0.0
    %205 = vmatprep.subr.mxu0 0.0
    %206 = vmatpush2.msra.mxu0 0.0
    %207 = vmatprep.subr.mxu0 0.0
    %208 = vmatpush2.msra.mxu0 0.0
    %209 = vmatprep.mubr.f32.mxu0 0.0
    %210 = vmatmul.mubr.f32.gmra.mxu0 %v143
    %v211 = vpop.f32.mrf.mxu0
    %v212 = vadd.f32 0.0, %v211
    %v213 = vpop.f32.mrf.mxu0
    %214 = vdwg.mxu0
    %v215 = vpack.c.bf16 %v212, %v212
    %216 = vst [vmem:[#allocation2 + $0x4] sm:$0xf] %v215
    %s217 = scalar_lea.vmem %s1, 16
    %v218 = vld [vmem:[%s217] sm:$0xff]
    %v220 = vsel %vm64, %v218, 0
    %222 = vmatprep.subr.mxu0 0.0
    %223 = vmatpush1.msra.mxu0 0.0
    %224 = vmatprep.subr.mxu0 0.0
    %225 = vmatpush1.msra.mxu0 0.0
    %226 = vmatprep.subr.mxu0 0.0
    %227 = vmatpush1.msra.mxu0 0.0
    %228 = vmatprep.subr.mxu0 0.0
    %229 = vmatpush1.msra.mxu0 0.0
    %230 = vmatprep.subr.mxu0 0.0
    %231 = vmatpush1.msra.mxu0 0.0
    %232 = vmatprep.subr.mxu0 0.0
    %233 = vmatpush1.msra.mxu0 0.0
    %234 = vmatprep.subr.mxu0 0.0
    %235 = vmatpush1.msra.mxu0 0.0
    %236 = vmatprep.subr.mxu0 0.0
    %237 = vmatpush1.msra.mxu0 0.0
    %238 = vmatprep.subr.mxu0 0.0
    %239 = vmatpush1.msra.mxu0 0.0
    %240 = vmatprep.subr.mxu0 0.0
    %241 = vmatpush1.msra.mxu0 0.0
    %242 = vmatprep.subr.mxu0 0.0
    %243 = vmatpush1.msra.mxu0 0.0
    %244 = vmatprep.subr.mxu0 0.0
    %245 = vmatpush1.msra.mxu0 0.0
    %246 = vmatprep.subr.mxu0 0.0
    %247 = vmatpush1.msra.mxu0 0.0
    %248 = vmatprep.subr.mxu0 0.0
    %249 = vmatpush1.msra.mxu0 0.0
    %250 = vmatprep.subr.mxu0 0.0
    %251 = vmatpush1.msra.mxu0 0.0
    %252 = vmatprep.subr.mxu0 0.0
    %253 = vmatpush1.msra.mxu0 %v62
    %254 = vmatprep.subr.mxu0 0.0
    %255 = vmatpush2.msra.mxu0 0.0
    %256 = vmatprep.subr.mxu0 0.0
    %257 = vmatpush2.msra.mxu0 0.0
    %258 = vmatprep.subr.mxu0 0.0
    %259 = vmatpush2.msra.mxu0 0.0
    %260 = vmatprep.subr.mxu0 0.0
    %261 = vmatpush2.msra.mxu0 0.0
    %262 = vmatprep.subr.mxu0 0.0
    %263 = vmatpush2.msra.mxu0 0.0
    %264 = vmatprep.subr.mxu0 0.0
    %265 = vmatpush2.msra.mxu0 0.0
    %266 = vmatprep.subr.mxu0 0.0
    %267 = vmatpush2.msra.mxu0 0.0
    %268 = vmatprep.subr.mxu0 0.0
    %269 = vmatpush2.msra.mxu0 0.0
    %270 = vmatprep.subr.mxu0 0.0
    %271 = vmatpush2.msra.mxu0 0.0
    %272 = vmatprep.subr.mxu0 0.0
    %273 = vmatpush2.msra.mxu0 0.0
    %274 = vmatprep.subr.mxu0 0.0
    %275 = vmatpush2.msra.mxu0 0.0
    %276 = vmatprep.subr.mxu0 0.0
    %277 = vmatpush2.msra.mxu0 0.0
    %278 = vmatprep.subr.mxu0 0.0
    %279 = vmatpush2.msra.mxu0 0.0
    %280 = vmatprep.subr.mxu0 0.0
    %281 = vmatpush2.msra.mxu0 0.0
    %282 = vmatprep.subr.mxu0 0.0
    %283 = vmatpush2.msra.mxu0 0.0
    %284 = vmatprep.subr.mxu0 0.0
    %285 = vmatpush2.msra.mxu0 0.0
    %286 = vmatprep.mubr.f32.mxu0 0.0
    %287 = vmatmul.mubr.f32.gmra.mxu0 %v220
    %v288 = vpop.f32.mrf.mxu0
    %v289 = vadd.f32 0.0, %v288
    %v290 = vpop.f32.mrf.mxu0
    %291 = vdwg.mxu0
    %v292 = vpack.c.bf16 %v289, %v289
    %293 = vst [vmem:[#allocation2 + $0x8] sm:$0xf] %v292
    %v294 = vld [vmem:[#allocation2] sm:$0xff]
    %v295 = vld [vmem:[#allocation2 + $0x8] sm:$0xf]
    %v296 = vld [vmem:[%s2] sm:$0xff]
    %v297 = vld [vmem:[%s2 + $0x8] sm:$0xff]
    %v298 = vld [vmem:[%s2 + $0x10] sm:$0xff]
    %v299 = vld [vmem:[%s2 + $0x18] sm:$0xff]
    %v300 = vld [vmem:[%s2 + $0x20] sm:$0xff]
    %v301 = vld [vmem:[%s2 + $0x28] sm:$0xff]
    %v302 = vld [vmem:[%s2 + $0x30] sm:$0xff]
    %v303 = vld [vmem:[%s2 + $0x38] sm:$0xff]
    %v304 = vld [vmem:[%s2 + $0x40] sm:$0xff]
    %v305 = vld [vmem:[%s2 + $0x48] sm:$0xff]
    %v306 = vld [vmem:[%s2 + $0x50] sm:$0xff]
    %v307 = vld [vmem:[%s2 + $0x58] sm:$0xff]
    %v308 = vld [vmem:[%s2 + $0x60] sm:$0xff]
    %v309 = vld [vmem:[%s2 + $0x68] sm:$0xff]
    %v310 = vld [vmem:[%s2 + $0x70] sm:$0xff]
    %v311 = vld [vmem:[%s2 + $0x78] sm:$0xff]
    %v312 = vld [vmem:[%s2 + $0x80] sm:$0xff]
    %v313 = vld [vmem:[%s2 + $0x88] sm:$0xff]
    %v314 = vld [vmem:[%s2 + $0x90] sm:$0xff]
    %v315 = vld [vmem:[%s2 + $0x98] sm:$0xff]
    %v316 = vld [vmem:[%s2 + $0xa0] sm:$0xff]
    %v317 = vld [vmem:[%s2 + $0xa8] sm:$0xff]
    %v318 = vld [vmem:[%s2 + $0xb0] sm:$0xff]
    %v319 = vld [vmem:[%s2 + $0xb8] sm:$0xff]
    %v320 = vld [vmem:[%s2 + $0xc0] sm:$0xff]
    %v321 = vld [vmem:[%s2 + $0xc8] sm:$0xff]
    %v322 = vld [vmem:[%s2 + $0xd0] sm:$0xff]
    %v323 = vld [vmem:[%s2 + $0xd8] sm:$0xff]
    %v324 = vld [vmem:[%s2 + $0xe0] sm:$0xff]
    %v325 = vld [vmem:[%s2 + $0xe8] sm:$0xff]
    %v326 = vld [vmem:[%s2 + $0xf0] sm:$0xff]
    %v327 = vld [vmem:[%s2 + $0xf8] sm:$0xff]
    %v328 = vld [vmem:[%s2 + $0x100] sm:$0xff]
    %v329 = vld [vmem:[%s2 + $0x108] sm:$0xff]
    %v330 = vld [vmem:[%s2 + $0x110] sm:$0xff]
    %v331 = vld [vmem:[%s2 + $0x118] sm:$0xff]
    %v332 = vld [vmem:[%s2 + $0x120] sm:$0xff]
    %v333 = vld [vmem:[%s2 + $0x128] sm:$0xff]
    %v334 = vld [vmem:[%s2 + $0x130] sm:$0xff]
    %v335 = vld [vmem:[%s2 + $0x138] sm:$0xff]
    %v336 = vld [vmem:[%s2 + $0x140] sm:$0xff]
    %v337 = vld [vmem:[%s2 + $0x148] sm:$0xff]
    %v338 = vld [vmem:[%s2 + $0x150] sm:$0xff]
    %v339 = vld [vmem:[%s2 + $0x158] sm:$0xff]
    %v340 = vld [vmem:[%s2 + $0x160] sm:$0xff]
    %v341 = vld [vmem:[%s2 + $0x168] sm:$0xff]
    %v342 = vld [vmem:[%s2 + $0x170] sm:$0xff]
    %v343 = vld [vmem:[%s2 + $0x178] sm:$0xff]
    %v344 = vld [vmem:[%s2 + $0x180] sm:$0xff]
    %v345 = vld [vmem:[%s2 + $0x188] sm:$0xff]
    %v346 = vld [vmem:[%s2 + $0x190] sm:$0xff]
    %v347 = vld [vmem:[%s2 + $0x198] sm:$0xff]
    %v348 = vld [vmem:[%s2 + $0x1a0] sm:$0xff]
    %v349 = vld [vmem:[%s2 + $0x1a8] sm:$0xff]
    %v350 = vld [vmem:[%s2 + $0x1b0] sm:$0xff]
    %v351 = vld [vmem:[%s2 + $0x1b8] sm:$0xff]
    %v352 = vld [vmem:[%s2 + $0x1c0] sm:$0xff]
    %v353 = vld [vmem:[%s2 + $0x1c8] sm:$0xff]
    %v354 = vld [vmem:[%s2 + $0x1d0] sm:$0xff]
    %v355 = vld [vmem:[%s2 + $0x1d8] sm:$0xff]
    %v356 = vld [vmem:[%s2 + $0x1e0] sm:$0xff]
    %v357 = vld [vmem:[%s2 + $0x1e8] sm:$0xff]
    %v358 = vld [vmem:[%s2 + $0x1f0] sm:$0xff]
    %v359 = vld [vmem:[%s2 + $0x1f8] sm:$0xff]
    %v360 = vld [vmem:[%s2 + $0x200] sm:$0xff]
    %v361 = vld [vmem:[%s2 + $0x208] sm:$0xff]
    %v362 = vld [vmem:[%s2 + $0x210] sm:$0xff]
    %v363 = vld [vmem:[%s2 + $0x218] sm:$0xff]
    %v364 = vld [vmem:[%s2 + $0x220] sm:$0xff]
    %v365 = vld [vmem:[%s2 + $0x228] sm:$0xff]
    %v366 = vld [vmem:[%s2 + $0x230] sm:$0xff]
    %v367 = vld [vmem:[%s2 + $0x238] sm:$0xff]
    %v368 = vld [vmem:[%s2 + $0x240] sm:$0xff]
    %v369 = vld [vmem:[%s2 + $0x248] sm:$0xff]
    %v370 = vld [vmem:[%s2 + $0x250] sm:$0xff]
    %v371 = vld [vmem:[%s2 + $0x258] sm:$0xff]
    %v372 = vld [vmem:[%s2 + $0x260] sm:$0xff]
    %v373 = vld [vmem:[%s2 + $0x268] sm:$0xff]
    %v374 = vld [vmem:[%s2 + $0x270] sm:$0xff]
    %v375 = vld [vmem:[%s2 + $0x278] sm:$0xff]
    %v376 = vld [vmem:[%s2 + $0x280] sm:$0xff]
    %v377 = vld [vmem:[%s2 + $0x288] sm:$0xff]
    %v378 = vld [vmem:[%s2 + $0x290] sm:$0xff]
    %v379 = vld [vmem:[%s2 + $0x298] sm:$0xff]
    %v380 = vld [vmem:[%s2 + $0x2a0] sm:$0xff]
    %v381 = vld [vmem:[%s2 + $0x2a8] sm:$0xff]
    %v382 = vld [vmem:[%s2 + $0x2b0] sm:$0xff]
    %v383 = vld [vmem:[%s2 + $0x2b8] sm:$0xff]
    %v384 = vld [vmem:[%s2 + $0x2c0] sm:$0xff]
    %v385 = vld [vmem:[%s2 + $0x2c8] sm:$0xff]
    %v386 = vld [vmem:[%s2 + $0x2d0] sm:$0xff]
    %v387 = vld [vmem:[%s2 + $0x2d8] sm:$0xff]
    %v388 = vld [vmem:[%s2 + $0x2e0] sm:$0xff]
    %v389 = vld [vmem:[%s2 + $0x2e8] sm:$0xff]
    %v390 = vld [vmem:[%s2 + $0x2f0] sm:$0xff]
    %v391 = vld [vmem:[%s2 + $0x2f8] sm:$0xff]
    %v394 = vunpack.c.l.b16 %v294
    %v395 = vunpack.c.h.b16 %v294
    %v396 = vunpack.c.l.b16 %v295
    %v397 = vpack.c.b16 %v394, %v394
    %v398 = vpack.c.b16 %v395, %v395
    %v399 = vpack.c.b16 %v396, %v396
    %v499 = vunpack.c.l.b16 %v296
    %v500 = vunpack.c.h.b16 %v296
    %v501 = vunpack.c.l.b16 %v297
    %v502 = vunpack.c.h.b16 %v297
    %v503 = vunpack.c.l.b16 %v298
    %v504 = vunpack.c.h.b16 %v298
    %v505 = vunpack.c.l.b16 %v299
    %v506 = vunpack.c.h.b16 %v299
    %v507 = vunpack.c.l.b16 %v300
    %v508 = vunpack.c.h.b16 %v300
    %v509 = vunpack.c.l.b16 %v301
    %v510 = vunpack.c.h.b16 %v301
    %v511 = vunpack.c.l.b16 %v302
    %v512 = vunpack.c.h.b16 %v302
    %v513 = vunpack.c.l.b16 %v303
    %v514 = vunpack.c.h.b16 %v303
    %v515 = vunpack.c.l.b16 %v304
    %v516 = vunpack.c.h.b16 %v304
    %v517 = vunpack.c.l.b16 %v305
    %v518 = vunpack.c.h.b16 %v305
    %v519 = vunpack.c.l.b16 %v306
    %v520 = vunpack.c.h.b16 %v306
    %v521 = vunpack.c.l.b16 %v307
    %v522 = vunpack.c.h.b16 %v307
    %v523 = vunpack.c.l.b16 %v308
    %v524 = vunpack.c.h.b16 %v308
    %v525 = vunpack.c.l.b16 %v309
    %v526 = vunpack.c.h.b16 %v309
    %v527 = vunpack.c.l.b16 %v310
    %v528 = vunpack.c.h.b16 %v310
    %v529 = vunpack.c.l.b16 %v311
    %v530 = vunpack.c.h.b16 %v311
    %v531 = vunpack.c.l.b16 %v312
    %v532 = vunpack.c.h.b16 %v312
    %v533 = vunpack.c.l.b16 %v313
    %v534 = vunpack.c.h.b16 %v313
    %v535 = vunpack.c.l.b16 %v314
    %v536 = vunpack.c.h.b16 %v314
    %v537 = vunpack.c.l.b16 %v315
    %v538 = vunpack.c.h.b16 %v315
    %v539 = vunpack.c.l.b16 %v316
    %v540 = vunpack.c.h.b16 %v316
    %v541 = vunpack.c.l.b16 %v317
    %v542 = vunpack.c.h.b16 %v317
    %v543 = vunpack.c.l.b16 %v318
    %v544 = vunpack.c.h.b16 %v318
    %v545 = vunpack.c.l.b16 %v319
    %v546 = vunpack.c.h.b16 %v319
    %v547 = vunpack.c.l.b16 %v320
    %v548 = vunpack.c.h.b16 %v320
    %v549 = vunpack.c.l.b16 %v321
    %v550 = vunpack.c.h.b16 %v321
    %v551 = vunpack.c.l.b16 %v322
    %v552 = vunpack.c.h.b16 %v322
    %v553 = vunpack.c.l.b16 %v323
    %v554 = vunpack.c.h.b16 %v323
    %v555 = vunpack.c.l.b16 %v324
    %v556 = vunpack.c.h.b16 %v324
    %v557 = vunpack.c.l.b16 %v325
    %v558 = vunpack.c.h.b16 %v325
    %v559 = vunpack.c.l.b16 %v326
    %v560 = vunpack.c.h.b16 %v326
    %v561 = vunpack.c.l.b16 %v327
    %v562 = vunpack.c.h.b16 %v327
    %v563 = vunpack.c.l.b16 %v328
    %v564 = vunpack.c.h.b16 %v328
    %v565 = vunpack.c.l.b16 %v329
    %v566 = vunpack.c.h.b16 %v329
    %v567 = vunpack.c.l.b16 %v330
    %v568 = vunpack.c.h.b16 %v330
    %v569 = vunpack.c.l.b16 %v331
    %v570 = vunpack.c.h.b16 %v331
    %v571 = vunpack.c.l.b16 %v332
    %v572 = vunpack.c.h.b16 %v332
    %v573 = vunpack.c.l.b16 %v333
    %v574 = vunpack.c.h.b16 %v333
    %v575 = vunpack.c.l.b16 %v334
    %v576 = vunpack.c.h.b16 %v334
    %v577 = vunpack.c.l.b16 %v335
    %v578 = vunpack.c.h.b16 %v335
    %v579 = vunpack.c.l.b16 %v336
    %v580 = vunpack.c.h.b16 %v336
    %v581 = vunpack.c.l.b16 %v337
    %v582 = vunpack.c.h.b16 %v337
    %v583 = vunpack.c.l.b16 %v338
    %v584 = vunpack.c.h.b16 %v338
    %v585 = vunpack.c.l.b16 %v339
    %v586 = vunpack.c.h.b16 %v339
    %v587 = vunpack.c.l.b16 %v340
    %v588 = vunpack.c.h.b16 %v340
    %v589 = vunpack.c.l.b16 %v341
    %v590 = vunpack.c.h.b16 %v341
    %v591 = vunpack.c.l.b16 %v342
    %v592 = vunpack.c.h.b16 %v342
    %v593 = vunpack.c.l.b16 %v343
    %v594 = vunpack.c.h.b16 %v343
    %v595 = vunpack.c.l.b16 %v344
    %v596 = vunpack.c.h.b16 %v344
    %v597 = vunpack.c.l.b16 %v345
    %v598 = vunpack.c.h.b16 %v345
    %v599 = vunpack.c.l.b16 %v346
    %v600 = vunpack.c.h.b16 %v346
    %v601 = vunpack.c.l.b16 %v347
    %v602 = vunpack.c.h.b16 %v347
    %v603 = vunpack.c.l.b16 %v348
    %v604 = vunpack.c.h.b16 %v348
    %v605 = vunpack.c.l.b16 %v349
    %v606 = vunpack.c.h.b16 %v349
    %v607 = vunpack.c.l.b16 %v350
    %v608 = vunpack.c.h.b16 %v350
    %v609 = vunpack.c.l.b16 %v351
    %v610 = vunpack.c.h.b16 %v351
    %v611 = vunpack.c.l.b16 %v352
    %v612 = vunpack.c.h.b16 %v352
    %v613 = vunpack.c.l.b16 %v353
    %v614 = vunpack.c.h.b16 %v353
    %v615 = vunpack.c.l.b16 %v354
    %v616 = vunpack.c.h.b16 %v354
    %v617 = vunpack.c.l.b16 %v355
    %v618 = vunpack.c.h.b16 %v355
    %v619 = vunpack.c.l.b16 %v356
    %v620 = vunpack.c.h.b16 %v356
    %v621 = vunpack.c.l.b16 %v357
    %v622 = vunpack.c.h.b16 %v357
    %v623 = vunpack.c.l.b16 %v358
    %v624 = vunpack.c.h.b16 %v358
    %v625 = vunpack.c.l.b16 %v359
    %v626 = vunpack.c.h.b16 %v359
    %v627 = vunpack.c.l.b16 %v360
    %v628 = vunpack.c.h.b16 %v360
    %v629 = vunpack.c.l.b16 %v361
    %v630 = vunpack.c.h.b16 %v361
    %v631 = vunpack.c.l.b16 %v362
    %v632 = vunpack.c.h.b16 %v362
    %v633 = vunpack.c.l.b16 %v363
    %v634 = vunpack.c.h.b16 %v363
    %v635 = vunpack.c.l.b16 %v364
    %v636 = vunpack.c.h.b16 %v364
    %v637 = vunpack.c.l.b16 %v365
    %v638 = vunpack.c.h.b16 %v365
    %v639 = vunpack.c.l.b16 %v366
    %v640 = vunpack.c.h.b16 %v366
    %v641 = vunpack.c.l.b16 %v367
    %v642 = vunpack.c.h.b16 %v367
    %v643 = vunpack.c.l.b16 %v368
    %v644 = vunpack.c.h.b16 %v368
    %v645 = vunpack.c.l.b16 %v369
    %v646 = vunpack.c.h.b16 %v369
    %v647 = vunpack.c.l.b16 %v370
    %v648 = vunpack.c.h.b16 %v370
    %v649 = vunpack.c.l.b16 %v371
    %v650 = vunpack.c.h.b16 %v371
    %v651 = vunpack.c.l.b16 %v372
    %v652 = vunpack.c.h.b16 %v372
    %v653 = vunpack.c.l.b16 %v373
    %v654 = vunpack.c.h.b16 %v373
    %v655 = vunpack.c.l.b16 %v374
    %v656 = vunpack.c.h.b16 %v374
    %v657 = vunpack.c.l.b16 %v375
    %v658 = vunpack.c.h.b16 %v375
    %v659 = vunpack.c.l.b16 %v376
    %v660 = vunpack.c.h.b16 %v376
    %v661 = vunpack.c.l.b16 %v377
    %v662 = vunpack.c.h.b16 %v377
    %v663 = vunpack.c.l.b16 %v378
    %v664 = vunpack.c.h.b16 %v378
    %v665 = vunpack.c.l.b16 %v379
    %v666 = vunpack.c.h.b16 %v379
    %v667 = vunpack.c.l.b16 %v380
    %v668 = vunpack.c.h.b16 %v380
    %v669 = vunpack.c.l.b16 %v381
    %v670 = vunpack.c.h.b16 %v381
    %v671 = vunpack.c.l.b16 %v382
    %v672 = vunpack.c.h.b16 %v382
    %v673 = vunpack.c.l.b16 %v383
    %v674 = vunpack.c.h.b16 %v383
    %v675 = vunpack.c.l.b16 %v384
    %v676 = vunpack.c.h.b16 %v384
    %v677 = vunpack.c.l.b16 %v385
    %v678 = vunpack.c.h.b16 %v385
    %v679 = vunpack.c.l.b16 %v386
    %v680 = vunpack.c.h.b16 %v386
    %v681 = vunpack.c.l.b16 %v387
    %v682 = vunpack.c.h.b16 %v387
    %v683 = vunpack.c.l.b16 %v388
    %v684 = vunpack.c.h.b16 %v388
    %v685 = vunpack.c.l.b16 %v389
    %v686 = vunpack.c.h.b16 %v389
    %v687 = vunpack.c.l.b16 %v390
    %v688 = vunpack.c.h.b16 %v390
    %v689 = vunpack.c.l.b16 %v391
    %v690 = vunpack.c.h.b16 %v391
    %v691 = vpack.c.b16 %v503, %v499
    %v692 = vpack.c.b16 %v504, %v500
    %v693 = vpack.c.b16 %v505, %v501
    %v694 = vpack.c.b16 %v506, %v502
    %v695 = vpack.c.b16 %v511, %v507
    %v696 = vpack.c.b16 %v512, %v508
    %v697 = vpack.c.b16 %v513, %v509
    %v698 = vpack.c.b16 %v514, %v510
    %v699 = vpack.c.b16 %v519, %v515
    %v700 = vpack.c.b16 %v520, %v516
    %v701 = vpack.c.b16 %v521, %v517
    %v702 = vpack.c.b16 %v522, %v518
    %v703 = vpack.c.b16 %v527, %v523
    %v704 = vpack.c.b16 %v528, %v524
    %v705 = vpack.c.b16 %v529, %v525
    %v706 = vpack.c.b16 %v530, %v526
    %v707 = vpack.c.b16 %v535, %v531
    %v708 = vpack.c.b16 %v536, %v532
    %v709 = vpack.c.b16 %v537, %v533
    %v710 = vpack.c.b16 %v538, %v534
    %v711 = vpack.c.b16 %v543, %v539
    %v712 = vpack.c.b16 %v544, %v540
    %v713 = vpack.c.b16 %v545, %v541
    %v714 = vpack.c.b16 %v546, %v542
    %v715 = vpack.c.b16 %v551, %v547
    %v716 = vpack.c.b16 %v552, %v548
    %v717 = vpack.c.b16 %v553, %v549
    %v718 = vpack.c.b16 %v554, %v550
    %v719 = vpack.c.b16 %v559, %v555
    %v720 = vpack.c.b16 %v560, %v556
    %v721 = vpack.c.b16 %v561, %v557
    %v722 = vpack.c.b16 %v562, %v558
    %v723 = vpack.c.b16 %v567, %v563
    %v724 = vpack.c.b16 %v568, %v564
    %v725 = vpack.c.b16 %v569, %v565
    %v726 = vpack.c.b16 %v570, %v566
    %v727 = vpack.c.b16 %v575, %v571
    %v728 = vpack.c.b16 %v576, %v572
    %v729 = vpack.c.b16 %v577, %v573
    %v730 = vpack.c.b16 %v578, %v574
    %v731 = vpack.c.b16 %v583, %v579
    %v732 = vpack.c.b16 %v584, %v580
    %v733 = vpack.c.b16 %v585, %v581
    %v734 = vpack.c.b16 %v586, %v582
    %v735 = vpack.c.b16 %v591, %v587
    %v736 = vpack.c.b16 %v592, %v588
    %v737 = vpack.c.b16 %v593, %v589
    %v738 = vpack.c.b16 %v594, %v590
    %v739 = vpack.c.b16 %v599, %v595
    %v740 = vpack.c.b16 %v600, %v596
    %v741 = vpack.c.b16 %v601, %v597
    %v742 = vpack.c.b16 %v602, %v598
    %v743 = vpack.c.b16 %v607, %v603
    %v744 = vpack.c.b16 %v608, %v604
    %v745 = vpack.c.b16 %v609, %v605
    %v746 = vpack.c.b16 %v610, %v606
    %v747 = vpack.c.b16 %v615, %v611
    %v748 = vpack.c.b16 %v616, %v612
    %v749 = vpack.c.b16 %v617, %v613
    %v750 = vpack.c.b16 %v618, %v614
    %v751 = vpack.c.b16 %v623, %v619
    %v752 = vpack.c.b16 %v624, %v620
    %v753 = vpack.c.b16 %v625, %v621
    %v754 = vpack.c.b16 %v626, %v622
    %v755 = vpack.c.b16 %v631, %v627
    %v756 = vpack.c.b16 %v632, %v628
    %v757 = vpack.c.b16 %v633, %v629
    %v758 = vpack.c.b16 %v634, %v630
    %v759 = vpack.c.b16 %v639, %v635
    %v760 = vpack.c.b16 %v640, %v636
    %v761 = vpack.c.b16 %v641, %v637
    %v762 = vpack.c.b16 %v642, %v638
    %v763 = vpack.c.b16 %v647, %v643
    %v764 = vpack.c.b16 %v648, %v644
    %v765 = vpack.c.b16 %v649, %v645
    %v766 = vpack.c.b16 %v650, %v646
    %v767 = vpack.c.b16 %v655, %v651
    %v768 = vpack.c.b16 %v656, %v652
    %v769 = vpack.c.b16 %v657, %v653
    %v770 = vpack.c.b16 %v658, %v654
    %v771 = vpack.c.b16 %v663, %v659
    %v772 = vpack.c.b16 %v664, %v660
    %v773 = vpack.c.b16 %v665, %v661
    %v774 = vpack.c.b16 %v666, %v662
    %v775 = vpack.c.b16 %v671, %v667
    %v776 = vpack.c.b16 %v672, %v668
    %v777 = vpack.c.b16 %v673, %v669
    %v778 = vpack.c.b16 %v674, %v670
    %v779 = vpack.c.b16 %v679, %v675
    %v780 = vpack.c.b16 %v680, %v676
    %v781 = vpack.c.b16 %v681, %v677
    %v782 = vpack.c.b16 %v682, %v678
    %v783 = vpack.c.b16 %v687, %v683
    %v784 = vpack.c.b16 %v688, %v684
    %v785 = vpack.c.b16 %v689, %v685
    %v786 = vpack.c.b16 %v690, %v686
    %883 = vmatprep.subr.bf16.mxu0 %v720
    %884 = vmatpush1.bf16.msra.mxu0 %v719
    %885 = vmatprep.subr.bf16.mxu0 %v716
    %886 = vmatpush1.bf16.msra.mxu0 %v715
    %887 = vmatprep.subr.bf16.mxu0 %v712
    %888 = vmatpush1.bf16.msra.mxu0 %v711
    %889 = vmatprep.subr.bf16.mxu0 %v708
    %890 = vmatpush1.bf16.msra.mxu0 %v707
    %891 = vmatprep.subr.bf16.mxu0 %v704
    %892 = vmatpush1.bf16.msra.mxu0 %v703
    %893 = vmatprep.subr.bf16.mxu0 %v700
    %894 = vmatpush1.bf16.msra.mxu0 %v699
    %895 = vmatprep.subr.bf16.mxu0 %v696
    %896 = vmatpush1.bf16.msra.mxu0 %v695
    %897 = vmatprep.subr.bf16.mxu0 %v692
    %898 = vmatpush1.bf16.msra.mxu0 %v691
    %899 = vmatprep.subr.bf16.mxu0 %v752
    %900 = vmatpush2.bf16.msra.mxu0 %v751
    %901 = vmatprep.subr.bf16.mxu0 %v748
    %902 = vmatpush2.bf16.msra.mxu0 %v747
    %903 = vmatprep.subr.bf16.mxu0 %v744
    %904 = vmatpush2.bf16.msra.mxu0 %v743
    %905 = vmatprep.subr.bf16.mxu0 %v740
    %906 = vmatpush2.bf16.msra.mxu0 %v739
    %907 = vmatprep.subr.bf16.mxu0 %v736
    %908 = vmatpush2.bf16.msra.mxu0 %v735
    %909 = vmatprep.subr.bf16.mxu0 %v732
    %910 = vmatpush2.bf16.msra.mxu0 %v731
    %911 = vmatprep.subr.bf16.mxu0 %v728
    %912 = vmatpush2.bf16.msra.mxu0 %v727
    %913 = vmatprep.subr.bf16.mxu0 %v724
    %914 = vmatpush2.bf16.msra.mxu0 %v723
    %915 = vmatprep.mubr.bf16.mxu0 %v398
    %916 = vmatmul.mubr.bf16.gmra.mxu0 %v397
    %v917 = vpop.f32.mrf.mxu0
    %v918 = vadd.f32 0.0, %v917
    %v919 = vpop.f32.mrf.mxu0
    %v920 = vadd.f32 0.0, %v919
    %v921 = vpop.f32.mrf.mxu0
    %v922 = vpop.f32.mrf.mxu0
    %923 = vdwg.mxu0
    %924 = vmatprep.subr.bf16.mxu0 %v784
    %925 = vmatpush1.bf16.msra.mxu0 %v783
    %926 = vmatprep.subr.bf16.mxu0 %v780
    %927 = vmatpush1.bf16.msra.mxu0 %v779
    %928 = vmatprep.subr.bf16.mxu0 %v776
    %929 = vmatpush1.bf16.msra.mxu0 %v775
    %930 = vmatprep.subr.bf16.mxu0 %v772
    %931 = vmatpush1.bf16.msra.mxu0 %v771
    %932 = vmatprep.subr.bf16.mxu0 %v768
    %933 = vmatpush1.bf16.msra.mxu0 %v767
    %934 = vmatprep.subr.bf16.mxu0 %v764
    %935 = vmatpush1.bf16.msra.mxu0 %v763
    %936 = vmatprep.subr.bf16.mxu0 %v760
    %937 = vmatpush1.bf16.msra.mxu0 %v759
    %938 = vmatprep.subr.bf16.mxu0 %v756
    %939 = vmatpush1.bf16.msra.mxu0 %v755
    %940 = vmatprep.subr.bf16.mxu0 0
    %941 = vmatpush2.bf16.msra.mxu0 0
    %942 = vmatprep.subr.bf16.mxu0 0
    %943 = vmatpush2.bf16.msra.mxu0 0
    %944 = vmatprep.subr.bf16.mxu0 0
    %945 = vmatpush2.bf16.msra.mxu0 0
    %946 = vmatprep.subr.bf16.mxu0 0
    %947 = vmatpush2.bf16.msra.mxu0 0
    %948 = vmatprep.subr.bf16.mxu0 0
    %949 = vmatpush2.bf16.msra.mxu0 0
    %950 = vmatprep.subr.bf16.mxu0 0
    %951 = vmatpush2.bf16.msra.mxu0 0
    %952 = vmatprep.subr.bf16.mxu0 0
    %953 = vmatpush2.bf16.msra.mxu0 0
    %954 = vmatprep.subr.bf16.mxu0 0
    %955 = vmatpush2.bf16.msra.mxu0 0
    %956 = vmatprep.mubr.bf16.mxu0 0
    %957 = vmatmul.mubr.bf16.gmra.mxu0 %v399
    %v958 = vpop.f32.mrf.mxu0
    %v959 = vadd.f32 %v918, %v958
    %v960 = vpop.f32.mrf.mxu0
    %v961 = vadd.f32 %v920, %v960
    %v962 = vpop.f32.mrf.mxu0
    %v963 = vpop.f32.mrf.mxu0
    %964 = vdwg.mxu0
    %965 = vmatprep.subr.bf16.mxu0 %v722
    %966 = vmatpush1.bf16.msra.mxu0 %v721
    %967 = vmatprep.subr.bf16.mxu0 %v718
    %968 = vmatpush1.bf16.msra.mxu0 %v717
    %969 = vmatprep.subr.bf16.mxu0 %v714
    %970 = vmatpush1.bf16.msra.mxu0 %v713
    %971 = vmatprep.subr.bf16.mxu0 %v710
    %972 = vmatpush1.bf16.msra.mxu0 %v709
    %973 = vmatprep.subr.bf16.mxu0 %v706
    %974 = vmatpush1.bf16.msra.mxu0 %v705
    %975 = vmatprep.subr.bf16.mxu0 %v702
    %976 = vmatpush1.bf16.msra.mxu0 %v701
    %977 = vmatprep.subr.bf16.mxu0 %v698
    %978 = vmatpush1.bf16.msra.mxu0 %v697
    %979 = vmatprep.subr.bf16.mxu0 %v694
    %980 = vmatpush1.bf16.msra.mxu0 %v693
    %981 = vmatprep.subr.bf16.mxu0 %v754
    %982 = vmatpush2.bf16.msra.mxu0 %v753
    %983 = vmatprep.subr.bf16.mxu0 %v750
    %984 = vmatpush2.bf16.msra.mxu0 %v749
    %985 = vmatprep.subr.bf16.mxu0 %v746
    %986 = vmatpush2.bf16.msra.mxu0 %v745
    %987 = vmatprep.subr.bf16.mxu0 %v742
    %988 = vmatpush2.bf16.msra.mxu0 %v741
    %989 = vmatprep.subr.bf16.mxu0 %v738
    %990 = vmatpush2.bf16.msra.mxu0 %v737
    %991 = vmatprep.subr.bf16.mxu0 %v734
    %992 = vmatpush2.bf16.msra.mxu0 %v733
    %993 = vmatprep.subr.bf16.mxu0 %v730
    %994 = vmatpush2.bf16.msra.mxu0 %v729
    %995 = vmatprep.subr.bf16.mxu0 %v726
    %996 = vmatpush2.bf16.msra.mxu0 %v725
    %997 = vmatprep.mubr.bf16.mxu0 %v398
    %998 = vmatmul.mubr.bf16.gmra.mxu0 %v397
    %v999 = vpop.f32.mrf.mxu0
    %v1000 = vadd.f32 0.0, %v999
    %v1001 = vpop.f32.mrf.mxu0
    %v1002 = vadd.f32 0.0, %v1001
    %v1003 = vpop.f32.mrf.mxu0
    %v1004 = vpop.f32.mrf.mxu0
    %1005 = vdwg.mxu0
    %1006 = vmatprep.subr.bf16.mxu0 %v786
    %1007 = vmatpush1.bf16.msra.mxu0 %v785
    %1008 = vmatprep.subr.bf16.mxu0 %v782
    %1009 = vmatpush1.bf16.msra.mxu0 %v781
    %1010 = vmatprep.subr.bf16.mxu0 %v778
    %1011 = vmatpush1.bf16.msra.mxu0 %v777
    %1012 = vmatprep.subr.bf16.mxu0 %v774
    %1013 = vmatpush1.bf16.msra.mxu0 %v773
    %1014 = vmatprep.subr.bf16.mxu0 %v770
    %1015 = vmatpush1.bf16.msra.mxu0 %v769
    %1016 = vmatprep.subr.bf16.mxu0 %v766
    %1017 = vmatpush1.bf16.msra.mxu0 %v765
    %1018 = vmatprep.subr.bf16.mxu0 %v762
    %1019 = vmatpush1.bf16.msra.mxu0 %v761
    %1020 = vmatprep.subr.bf16.mxu0 %v758
    %1021 = vmatpush1.bf16.msra.mxu0 %v757
    %1022 = vmatprep.subr.bf16.mxu0 0
    %1023 = vmatpush2.bf16.msra.mxu0 0
    %1024 = vmatprep.subr.bf16.mxu0 0
    %1025 = vmatpush2.bf16.msra.mxu0 0
    %1026 = vmatprep.subr.bf16.mxu0 0
    %1027 = vmatpush2.bf16.msra.mxu0 0
    %1028 = vmatprep.subr.bf16.mxu0 0
    %1029 = vmatpush2.bf16.msra.mxu0 0
    %1030 = vmatprep.subr.bf16.mxu0 0
    %1031 = vmatpush2.bf16.msra.mxu0 0
    %1032 = vmatprep.subr.bf16.mxu0 0
    %1033 = vmatpush2.bf16.msra.mxu0 0
    %1034 = vmatprep.subr.bf16.mxu0 0
    %1035 = vmatpush2.bf16.msra.mxu0 0
    %1036 = vmatprep.subr.bf16.mxu0 0
    %1037 = vmatpush2.bf16.msra.mxu0 0
    %1038 = vmatprep.mubr.bf16.mxu0 0
    %1039 = vmatmul.mubr.bf16.gmra.mxu0 %v399
    %v1040 = vpop.f32.mrf.mxu0
    %v1041 = vadd.f32 %v1000, %v1040
    %v1042 = vpop.f32.mrf.mxu0
    %v1043 = vadd.f32 %v1002, %v1042
    %v1044 = vpop.f32.mrf.mxu0
    %v1045 = vpop.f32.mrf.mxu0
    %1046 = vdwg.mxu0
    %v1047 = vrot.slane %v959, 4
    %v1048 = vadd.f32 %v959, %v1047
    %v1049 = vrot.slane %v1048, 2
    %v1050 = vadd.f32 %v1048, %v1049
    %v1051 = vrot.slane %v1050, 1
    %v1052 = vadd.f32 %v1050, %v1051
    %v1053 = vrot.slane %v961, 4
    %v1054 = vadd.f32 %v961, %v1053
    %v1055 = vrot.slane %v1054, 2
    %v1056 = vadd.f32 %v1054, %v1055
    %v1057 = vrot.slane %v1056, 1
    %v1058 = vadd.f32 %v1056, %v1057
    %v1059 = vrot.slane %v1041, 4
    %v1060 = vadd.f32 %v1041, %v1059
    %v1061 = vrot.slane %v1060, 2
    %v1062 = vadd.f32 %v1060, %v1061
    %v1063 = vrot.slane %v1062, 1
    %v1064 = vadd.f32 %v1062, %v1063
    %v1065 = vrot.slane %v1043, 4
    %v1066 = vadd.f32 %v1043, %v1065
    %v1067 = vrot.slane %v1066, 2
    %v1068 = vadd.f32 %v1066, %v1067
    %v1069 = vrot.slane %v1068, 1
    %v1070 = vadd.f32 %v1068, %v1069
    %v1071 = vrcp.pop 8.0
    %v1072 = vmul.f32 %v1052, %v1071
    %v1073 = vmul.f32 %v1058, %v1071
    %v1074 = vmul.f32 %v1064, %v1071
    %v1075 = vmul.f32 %v1070, %v1071
    %v1076 = vmul.f32 %v959, %v959
    %v1077 = vmul.f32 %v961, %v961
    %v1078 = vmul.f32 %v1041, %v1041
    %v1079 = vmul.f32 %v1043, %v1043
    %v1080 = vrot.slane %v1076, 4
    %v1081 = vadd.f32 %v1076, %v1080
    %v1082 = vrot.slane %v1081, 2
    %v1083 = vadd.f32 %v1081, %v1082
    %v1084 = vrot.slane %v1083, 1
    %v1085 = vadd.f32 %v1083, %v1084
    %v1086 = vrot.slane %v1077, 4
    %v1087 = vadd.f32 %v1077, %v1086
    %v1088 = vrot.slane %v1087, 2
    %v1089 = vadd.f32 %v1087, %v1088
    %v1090 = vrot.slane %v1089, 1
    %v1091 = vadd.f32 %v1089, %v1090
    %v1092 = vrot.slane %v1078, 4
    %v1093 = vadd.f32 %v1078, %v1092
    %v1094 = vrot.slane %v1093, 2
    %v1095 = vadd.f32 %v1093, %v1094
    %v1096 = vrot.slane %v1095, 1
    %v1097 = vadd.f32 %v1095, %v1096
    %v1098 = vrot.slane %v1079, 4
    %v1099 = vadd.f32 %v1079, %v1098
    %v1100 = vrot.slane %v1099, 2
    %v1101 = vadd.f32 %v1099, %v1100
    %v1102 = vrot.slane %v1101, 1
    %v1103 = vadd.f32 %v1101, %v1102
    %v1104 = vmul.f32 %v1085, %v1071
    %v1105 = vmul.f32 %v1091, %v1071
    %v1106 = vmul.f32 %v1097, %v1071
    %v1107 = vmul.f32 %v1103, %v1071
    %v1108 = vmul.f32 %v1072, %v1072
    %v1109 = vmul.f32 %v1073, %v1073
    %v1110 = vmul.f32 %v1074, %v1074
    %v1111 = vmul.f32 %v1075, %v1075
    %v1112 = vsub.f32 %v1104, %v1108
    %v1113 = vsub.f32 %v1105, %v1109
    %v1114 = vsub.f32 %v1106, %v1110
    %v1115 = vsub.f32 %v1107, %v1111
    %v1116 = vmax.f32 %v1112, 0.0
    %v1117 = vmax.f32 %v1113, 0.0
    %v1118 = vmax.f32 %v1114, 0.0
    %v1119 = vmax.f32 %v1115, 0.0
    %v1120 = vld [vmem:[%s3] sm:$0xf]
    %v1121 = vadd.f32 %v1116, 1e-05
    %v1122 = vadd.f32 %v1117, 1e-05
    %v1123 = vadd.f32 %v1118, 1e-05
    %v1124 = vadd.f32 %v1119, 1e-05
    %v1125 = vrsqrt.pop %v1121
    %v1126 = vrsqrt.pop %v1122
    %v1127 = vrsqrt.pop %v1123
    %v1128 = vrsqrt.pop %v1124
    %v1133 = vcombine.low %v1125, %v1126
    %v1134 = vcombine.low %v1127, %v1128
    %v1136 = vunpack.c.l.s4 1966171168
    %v1137 = vunpack.c.0.s8 %v1136
    %v1138 = vlaneseq
    %v1139 = vshrl.u32 %v1138, 7
    %v1140 = vsub.s32 %v1137, %v1139
    %v1141 = vrot.slane %v1133, %v1140
    %v1143 = vunpack.c.l.s4 1966171168
    %v1144 = vunpack.c.0.s8 %v1143
    %v1145 = vlaneseq
    %v1146 = vshrl.u32 %v1145, 7
    %v1147 = vsub.s32 %v1144, %v1146
    %v1148 = vrot.slane %v1134, %v1147
    %v1149 = vcombine.low %v1141, %v1148
    %v1151 = vunpack.c.l.s4 1966171168
    %v1152 = vunpack.c.0.s8 %v1151
    %v1153 = vlaneseq
    %v1154 = vshrl.u32 %v1153, 7
    %v1155 = vsub.s32 %v1152, %v1154
    %v1156 = vrot.slane %v1149, %v1155
    %v1158 = vmul.f32 %v1120, %v1156
    %v1159 = vld [vmem:[%s4] sm:$0xf]
    %v1161 = vlaneseq
    %v1162 = vshrl.u32 %v1161, 7
    %v1163 = vsub.s32 0, %v1162
    %v1164 = vrot.slane %v1158, %v1163
    %v1165 = vlaneseq
    %v1166 = vshrl.u32 %v1165, 7
    %v1167 = vsub.s32 1, %v1166
    %v1168 = vrot.slane %v1158, %v1167
    %v1169 = vlaneseq
    %v1170 = vshrl.u32 %v1169, 7
    %v1171 = vsub.s32 2, %v1170
    %v1172 = vrot.slane %v1158, %v1171
    %v1173 = vlaneseq
    %v1174 = vshrl.u32 %v1173, 7
    %v1175 = vsub.s32 3, %v1174
    %v1176 = vrot.slane %v1158, %v1175
    %v1181 = vmul.f32 %v1072, %v1164
    %v1182 = vmul.f32 %v1073, %v1168
    %v1183 = vmul.f32 %v1074, %v1172
    %v1184 = vmul.f32 %v1075, %v1176
    %v1189 = vcombine.low %v1181, %v1182
    %v1190 = vcombine.low %v1183, %v1184
    %v1192 = vunpack.c.l.s4 1966171168
    %v1193 = vunpack.c.0.s8 %v1192
    %v1194 = vlaneseq
    %v1195 = vshrl.u32 %v1194, 7
    %v1196 = vsub.s32 %v1193, %v1195
    %v1197 = vrot.slane %v1189, %v1196
    %v1199 = vunpack.c.l.s4 1966171168
    %v1200 = vunpack.c.0.s8 %v1199
    %v1201 = vlaneseq
    %v1202 = vshrl.u32 %v1201, 7
    %v1203 = vsub.s32 %v1200, %v1202
    %v1204 = vrot.slane %v1190, %v1203
    %v1205 = vcombine.low %v1197, %v1204
    %v1207 = vunpack.c.l.s4 1966171168
    %v1208 = vunpack.c.0.s8 %v1207
    %v1209 = vlaneseq
    %v1210 = vshrl.u32 %v1209, 7
    %v1211 = vsub.s32 %v1208, %v1210
    %v1212 = vrot.slane %v1205, %v1211
    %v1214 = vsub.f32 %v1159, %v1212
    %v1215 = vmul.f32 %v959, %v1164
    %v1216 = vmul.f32 %v961, %v1168
    %v1217 = vmul.f32 %v1041, %v1172
    %v1218 = vmul.f32 %v1043, %v1176
    %v1220 = vlaneseq
    %v1221 = vshrl.u32 %v1220, 7
    %v1222 = vsub.s32 0, %v1221
    %v1223 = vrot.slane %v1214, %v1222
    %v1224 = vlaneseq
    %v1225 = vshrl.u32 %v1224, 7
    %v1226 = vsub.s32 1, %v1225
    %v1227 = vrot.slane %v1214, %v1226
    %v1228 = vlaneseq
    %v1229 = vshrl.u32 %v1228, 7
    %v1230 = vsub.s32 2, %v1229
    %v1231 = vrot.slane %v1214, %v1230
    %v1232 = vlaneseq
    %v1233 = vshrl.u32 %v1232, 7
    %v1234 = vsub.s32 3, %v1233
    %v1235 = vrot.slane %v1214, %v1234
    %v1240 = vadd.f32 %v1215, %v1223
    %v1241 = vadd.f32 %v1216, %v1227
    %v1242 = vadd.f32 %v1217, %v1231
    %v1243 = vadd.f32 %v1218, %v1235
    %vm1244 = vcmp.ge.f32.partialorder %v1240, 0.0
    %vm1245 = vcmp.ge.f32.partialorder %v1241, 0.0
    %vm1246 = vcmp.ge.f32.partialorder %v1242, 0.0
    %vm1247 = vcmp.ge.f32.partialorder %v1243, 0.0
    %v1248 = vmul.f32 %v1240, 0.01
    %v1249 = vmul.f32 %v1241, 0.01
    %v1250 = vmul.f32 %v1242, 0.01
    %v1251 = vmul.f32 %v1243, 0.01
    %v1252 = vsel %vm1244, %v1240, %v1248
    %v1253 = vsel %vm1245, %v1241, %v1249
    %v1254 = vsel %vm1246, %v1242, %v1250
    %v1255 = vsel %vm1247, %v1243, %v1251
    %v1256 = vld [vmem:[%s5] sm:$0xf]
    %v1258 = vsel %vm64, %v1256, 0
    %1260 = vmatprep.subr.mxu0 0.0
    %1261 = vmatpush1.msra.mxu0 0.0
    %1262 = vmatprep.subr.mxu0 0.0
    %1263 = vmatpush1.msra.mxu0 0.0
    %1264 = vmatprep.subr.mxu0 0.0
    %1265 = vmatpush1.msra.mxu0 0.0
    %1266 = vmatprep.subr.mxu0 0.0
    %1267 = vmatpush1.msra.mxu0 0.0
    %1268 = vmatprep.subr.mxu0 0.0
    %1269 = vmatpush1.msra.mxu0 0.0
    %1270 = vmatprep.subr.mxu0 0.0
    %1271 = vmatpush1.msra.mxu0 0.0
    %1272 = vmatprep.subr.mxu0 0.0
    %1273 = vmatpush1.msra.mxu0 0.0
    %1274 = vmatprep.subr.mxu0 0.0
    %1275 = vmatpush1.msra.mxu0 0.0
    %1276 = vmatprep.subr.mxu0 0.0
    %1277 = vmatpush1.msra.mxu0 0.0
    %1278 = vmatprep.subr.mxu0 0.0
    %1279 = vmatpush1.msra.mxu0 0.0
    %1280 = vmatprep.subr.mxu0 0.0
    %1281 = vmatpush1.msra.mxu0 0.0
    %1282 = vmatprep.subr.mxu0 0.0
    %1283 = vmatpush1.msra.mxu0 0.0
    %1284 = vmatprep.subr.mxu0 0.0
    %1285 = vmatpush1.msra.mxu0 0.0
    %1286 = vmatprep.subr.mxu0 0.0
    %1287 = vmatpush1.msra.mxu0 0.0
    %1288 = vmatprep.subr.mxu0 0.0
    %1289 = vmatpush1.msra.mxu0 0.0
    %1290 = vmatprep.subr.mxu0 %v1253
    %1291 = vmatpush1.msra.mxu0 %v1252
    %1292 = vmatprep.subr.mxu0 0.0
    %1293 = vmatpush2.msra.mxu0 0.0
    %1294 = vmatprep.subr.mxu0 0.0
    %1295 = vmatpush2.msra.mxu0 0.0
    %1296 = vmatprep.subr.mxu0 0.0
    %1297 = vmatpush2.msra.mxu0 0.0
    %1298 = vmatprep.subr.mxu0 0.0
    %1299 = vmatpush2.msra.mxu0 0.0
    %1300 = vmatprep.subr.mxu0 0.0
    %1301 = vmatpush2.msra.mxu0 0.0
    %1302 = vmatprep.subr.mxu0 0.0
    %1303 = vmatpush2.msra.mxu0 0.0
    %1304 = vmatprep.subr.mxu0 0.0
    %1305 = vmatpush2.msra.mxu0 0.0
    %1306 = vmatprep.subr.mxu0 0.0
    %1307 = vmatpush2.msra.mxu0 0.0
    %1308 = vmatprep.subr.mxu0 0.0
    %1309 = vmatpush2.msra.mxu0 0.0
    %1310 = vmatprep.subr.mxu0 0.0
    %1311 = vmatpush2.msra.mxu0 0.0
    %1312 = vmatprep.subr.mxu0 0.0
    %1313 = vmatpush2.msra.mxu0 0.0
    %1314 = vmatprep.subr.mxu0 0.0
    %1315 = vmatpush2.msra.mxu0 0.0
    %1316 = vmatprep.subr.mxu0 0.0
    %1317 = vmatpush2.msra.mxu0 0.0
    %1318 = vmatprep.subr.mxu0 0.0
    %1319 = vmatpush2.msra.mxu0 0.0
    %1320 = vmatprep.subr.mxu0 0.0
    %1321 = vmatpush2.msra.mxu0 0.0
    %1322 = vmatprep.subr.mxu0 0.0
    %1323 = vmatpush2.msra.mxu0 0.0
    %1324 = vmatprep.mubr.f32.mxu0 0.0
    %1325 = vmatmul.mubr.f32.gmra.mxu0 %v1258
    %v1326 = vpop.f32.mrf.mxu0
    %v1327 = vadd.f32 0.0, %v1326
    %v1328 = vpop.f32.mrf.mxu0
    %v1329 = vadd.f32 0.0, %v1328
    %1330 = vdwg.mxu0
    %1331 = vmatprep.subr.mxu0 0.0
    %1332 = vmatpush1.msra.mxu0 0.0
    %1333 = vmatprep.subr.mxu0 0.0
    %1334 = vmatpush1.msra.mxu0 0.0
    %1335 = vmatprep.subr.mxu0 0.0
    %1336 = vmatpush1.msra.mxu0 0.0
    %1337 = vmatprep.subr.mxu0 0.0
    %1338 = vmatpush1.msra.mxu0 0.0
    %1339 = vmatprep.subr.mxu0 0.0
    %1340 = vmatpush1.msra.mxu0 0.0
    %1341 = vmatprep.subr.mxu0 0.0
    %1342 = vmatpush1.msra.mxu0 0.0
    %1343 = vmatprep.subr.mxu0 0.0
    %1344 = vmatpush1.msra.mxu0 0.0
    %1345 = vmatprep.subr.mxu0 0.0
    %1346 = vmatpush1.msra.mxu0 0.0
    %1347 = vmatprep.subr.mxu0 0.0
    %1348 = vmatpush1.msra.mxu0 0.0
    %1349 = vmatprep.subr.mxu0 0.0
    %1350 = vmatpush1.msra.mxu0 0.0
    %1351 = vmatprep.subr.mxu0 0.0
    %1352 = vmatpush1.msra.mxu0 0.0
    %1353 = vmatprep.subr.mxu0 0.0
    %1354 = vmatpush1.msra.mxu0 0.0
    %1355 = vmatprep.subr.mxu0 0.0
    %1356 = vmatpush1.msra.mxu0 0.0
    %1357 = vmatprep.subr.mxu0 0.0
    %1358 = vmatpush1.msra.mxu0 0.0
    %1359 = vmatprep.subr.mxu0 0.0
    %1360 = vmatpush1.msra.mxu0 0.0
    %1361 = vmatprep.subr.mxu0 %v1255
    %1362 = vmatpush1.msra.mxu0 %v1254
    %1363 = vmatprep.subr.mxu0 0.0
    %1364 = vmatpush2.msra.mxu0 0.0
    %1365 = vmatprep.subr.mxu0 0.0
    %1366 = vmatpush2.msra.mxu0 0.0
    %1367 = vmatprep.subr.mxu0 0.0
    %1368 = vmatpush2.msra.mxu0 0.0
    %1369 = vmatprep.subr.mxu0 0.0
    %1370 = vmatpush2.msra.mxu0 0.0
    %1371 = vmatprep.subr.mxu0 0.0
    %1372 = vmatpush2.msra.mxu0 0.0
    %1373 = vmatprep.subr.mxu0 0.0
    %1374 = vmatpush2.msra.mxu0 0.0
    %1375 = vmatprep.subr.mxu0 0.0
    %1376 = vmatpush2.msra.mxu0 0.0
    %1377 = vmatprep.subr.mxu0 0.0
    %1378 = vmatpush2.msra.mxu0 0.0
    %1379 = vmatprep.subr.mxu0 0.0
    %1380 = vmatpush2.msra.mxu0 0.0
    %1381 = vmatprep.subr.mxu0 0.0
    %1382 = vmatpush2.msra.mxu0 0.0
    %1383 = vmatprep.subr.mxu0 0.0
    %1384 = vmatpush2.msra.mxu0 0.0
    %1385 = vmatprep.subr.mxu0 0.0
    %1386 = vmatpush2.msra.mxu0 0.0
    %1387 = vmatprep.subr.mxu0 0.0
    %1388 = vmatpush2.msra.mxu0 0.0
    %1389 = vmatprep.subr.mxu0 0.0
    %1390 = vmatpush2.msra.mxu0 0.0
    %1391 = vmatprep.subr.mxu0 0.0
    %1392 = vmatpush2.msra.mxu0 0.0
    %1393 = vmatprep.subr.mxu0 0.0
    %1394 = vmatpush2.msra.mxu0 0.0
    %1395 = vmatprep.mubr.f32.mxu0 0.0
    %1396 = vmatmul.mubr.f32.gmra.mxu0 %v1258
    %v1397 = vpop.f32.mrf.mxu0
    %v1398 = vadd.f32 0.0, %v1397
    %v1399 = vpop.f32.mrf.mxu0
    %v1400 = vadd.f32 0.0, %v1399
    %1401 = vdwg.mxu0
    %v1402 = vpack.c.bf16 %v1327, %v1327
    %v1403 = vpack.c.bf16 %v1329, %v1329
    %v1404 = vpack.c.bf16 %v1398, %v1398
    %v1405 = vpack.c.bf16 %v1400, %v1400
    %v1410 = vcombine.low %v1402, %v1403
    %v1411 = vcombine.low %v1404, %v1405
    %v1413 = vunpack.c.l.s4 1983009808
    %v1414 = vunpack.c.0.s8 %v1413
    %v1415 = vlaneseq
    %v1416 = vshrl.u32 %v1415, 7
    %v1417 = vsub.s32 %v1414, %v1416
    %v1418 = vrot.slane %v1410, %v1417
    %v1420 = vunpack.c.l.s4 1983009808
    %v1421 = vunpack.c.0.s8 %v1420
    %v1422 = vlaneseq
    %v1423 = vshrl.u32 %v1422, 7
    %v1424 = vsub.s32 %v1421, %v1423
    %v1425 = vrot.slane %v1411, %v1424
    %v1426 = vcombine.low %v1418, %v1425
    %1428 = vst [vmem:[#allocation3] sm:$0xff] %v1426
    %s1429 = scalar_lea.vmem %s5, 4
    %v1430 = vld [vmem:[%s1429] sm:$0xf]
    %v1432 = vsel %vm64, %v1430, 0
    %1434 = vmatprep.subr.mxu0 0.0
    %1435 = vmatpush1.msra.mxu0 0.0
    %1436 = vmatprep.subr.mxu0 0.0
    %1437 = vmatpush1.msra.mxu0 0.0
    %1438 = vmatprep.subr.mxu0 0.0
    %1439 = vmatpush1.msra.mxu0 0.0
    %1440 = vmatprep.subr.mxu0 0.0
    %1441 = vmatpush1.msra.mxu0 0.0
    %1442 = vmatprep.subr.mxu0 0.0
    %1443 = vmatpush1.msra.mxu0 0.0
    %1444 = vmatprep.subr.mxu0 0.0
    %1445 = vmatpush1.msra.mxu0 0.0
    %1446 = vmatprep.subr.mxu0 0.0
    %1447 = vmatpush1.msra.mxu0 0.0
    %1448 = vmatprep.subr.mxu0 0.0
    %1449 = vmatpush1.msra.mxu0 0.0
    %1450 = vmatprep.subr.mxu0 0.0
    %1451 = vmatpush1.msra.mxu0 0.0
    %1452 = vmatprep.subr.mxu0 0.0
    %1453 = vmatpush1.msra.mxu0 0.0
    %1454 = vmatprep.subr.mxu0 0.0
    %1455 = vmatpush1.msra.mxu0 0.0
    %1456 = vmatprep.subr.mxu0 0.0
    %1457 = vmatpush1.msra.mxu0 0.0
    %1458 = vmatprep.subr.mxu0 0.0
    %1459 = vmatpush1.msra.mxu0 0.0
    %1460 = vmatprep.subr.mxu0 0.0
    %1461 = vmatpush1.msra.mxu0 0.0
    %1462 = vmatprep.subr.mxu0 0.0
    %1463 = vmatpush1.msra.mxu0 0.0
    %1464 = vmatprep.subr.mxu0 %v1253
    %1465 = vmatpush1.msra.mxu0 %v1252
    %1466 = vmatprep.subr.mxu0 0.0
    %1467 = vmatpush2.msra.mxu0 0.0
    %1468 = vmatprep.subr.mxu0 0.0
    %1469 = vmatpush2.msra.mxu0 0.0
    %1470 = vmatprep.subr.mxu0 0.0
    %1471 = vmatpush2.msra.mxu0 0.0
    %1472 = vmatprep.subr.mxu0 0.0
    %1473 = vmatpush2.msra.mxu0 0.0
    %1474 = vmatprep.subr.mxu0 0.0
    %1475 = vmatpush2.msra.mxu0 0.0
    %1476 = vmatprep.subr.mxu0 0.0
    %1477 = vmatpush2.msra.mxu0 0.0
    %1478 = vmatprep.subr.mxu0 0.0
    %1479 = vmatpush2.msra.mxu0 0.0
    %1480 = vmatprep.subr.mxu0 0.0
    %1481 = vmatpush2.msra.mxu0 0.0
    %1482 = vmatprep.subr.mxu0 0.0
    %1483 = vmatpush2.msra.mxu0 0.0
    %1484 = vmatprep.subr.mxu0 0.0
    %1485 = vmatpush2.msra.mxu0 0.0
    %1486 = vmatprep.subr.mxu0 0.0
    %1487 = vmatpush2.msra.mxu0 0.0
    %1488 = vmatprep.subr.mxu0 0.0
    %1489 = vmatpush2.msra.mxu0 0.0
    %1490 = vmatprep.subr.mxu0 0.0
    %1491 = vmatpush2.msra.mxu0 0.0
    %1492 = vmatprep.subr.mxu0 0.0
    %1493 = vmatpush2.msra.mxu0 0.0
    %1494 = vmatprep.subr.mxu0 0.0
    %1495 = vmatpush2.msra.mxu0 0.0
    %1496 = vmatprep.subr.mxu0 0.0
    %1497 = vmatpush2.msra.mxu0 0.0
    %1498 = vmatprep.mubr.f32.mxu0 0.0
    %1499 = vmatmul.mubr.f32.gmra.mxu0 %v1432
    %v1500 = vpop.f32.mrf.mxu0
    %v1501 = vadd.f32 0.0, %v1500
    %v1502 = vpop.f32.mrf.mxu0
    %v1503 = vadd.f32 0.0, %v1502
    %1504 = vdwg.mxu0
    %1505 = vmatprep.subr.mxu0 0.0
    %1506 = vmatpush1.msra.mxu0 0.0
    %1507 = vmatprep.subr.mxu0 0.0
    %1508 = vmatpush1.msra.mxu0 0.0
    %1509 = vmatprep.subr.mxu0 0.0
    %1510 = vmatpush1.msra.mxu0 0.0
    %1511 = vmatprep.subr.mxu0 0.0
    %1512 = vmatpush1.msra.mxu0 0.0
    %1513 = vmatprep.subr.mxu0 0.0
    %1514 = vmatpush1.msra.mxu0 0.0
    %1515 = vmatprep.subr.mxu0 0.0
    %1516 = vmatpush1.msra.mxu0 0.0
    %1517 = vmatprep.subr.mxu0 0.0
    %1518 = vmatpush1.msra.mxu0 0.0
    %1519 = vmatprep.subr.mxu0 0.0
    %1520 = vmatpush1.msra.mxu0 0.0
    %1521 = vmatprep.subr.mxu0 0.0
    %1522 = vmatpush1.msra.mxu0 0.0
    %1523 = vmatprep.subr.mxu0 0.0
    %1524 = vmatpush1.msra.mxu0 0.0
    %1525 = vmatprep.subr.mxu0 0.0
    %1526 = vmatpush1.msra.mxu0 0.0
    %1527 = vmatprep.subr.mxu0 0.0
    %1528 = vmatpush1.msra.mxu0 0.0
    %1529 = vmatprep.subr.mxu0 0.0
    %1530 = vmatpush1.msra.mxu0 0.0
    %1531 = vmatprep.subr.mxu0 0.0
    %1532 = vmatpush1.msra.mxu0 0.0
    %1533 = vmatprep.subr.mxu0 0.0
    %1534 = vmatpush1.msra.mxu0 0.0
    %1535 = vmatprep.subr.mxu0 %v1255
    %1536 = vmatpush1.msra.mxu0 %v1254
    %1537 = vmatprep.subr.mxu0 0.0
    %1538 = vmatpush2.msra.mxu0 0.0
    %1539 = vmatprep.subr.mxu0 0.0
    %1540 = vmatpush2.msra.mxu0 0.0
    %1541 = vmatprep.subr.mxu0 0.0
    %1542 = vmatpush2.msra.mxu0 0.0
    %1543 = vmatprep.subr.mxu0 0.0
    %1544 = vmatpush2.msra.mxu0 0.0
    %1545 = vmatprep.subr.mxu0 0.0
    %1546 = vmatpush2.msra.mxu0 0.0
    %1547 = vmatprep.subr.mxu0 0.0
    %1548 = vmatpush2.msra.mxu0 0.0
    %1549 = vmatprep.subr.mxu0 0.0
    %1550 = vmatpush2.msra.mxu0 0.0
    %1551 = vmatprep.subr.mxu0 0.0
    %1552 = vmatpush2.msra.mxu0 0.0
    %1553 = vmatprep.subr.mxu0 0.0
    %1554 = vmatpush2.msra.mxu0 0.0
    %1555 = vmatprep.subr.mxu0 0.0
    %1556 = vmatpush2.msra.mxu0 0.0
    %1557 = vmatprep.subr.mxu0 0.0
    %1558 = vmatpush2.msra.mxu0 0.0
    %1559 = vmatprep.subr.mxu0 0.0
    %1560 = vmatpush2.msra.mxu0 0.0
    %1561 = vmatprep.subr.mxu0 0.0
    %1562 = vmatpush2.msra.mxu0 0.0
    %1563 = vmatprep.subr.mxu0 0.0
    %1564 = vmatpush2.msra.mxu0 0.0
    %1565 = vmatprep.subr.mxu0 0.0
    %1566 = vmatpush2.msra.mxu0 0.0
    %1567 = vmatprep.subr.mxu0 0.0
    %1568 = vmatpush2.msra.mxu0 0.0
    %1569 = vmatprep.mubr.f32.mxu0 0.0
    %1570 = vmatmul.mubr.f32.gmra.mxu0 %v1432
    %v1571 = vpop.f32.mrf.mxu0
    %v1572 = vadd.f32 0.0, %v1571
    %v1573 = vpop.f32.mrf.mxu0
    %v1574 = vadd.f32 0.0, %v1573
    %1575 = vdwg.mxu0
    %v1576 = vpack.c.bf16 %v1501, %v1501
    %v1577 = vpack.c.bf16 %v1503, %v1503
    %v1578 = vpack.c.bf16 %v1572, %v1572
    %v1579 = vpack.c.bf16 %v1574, %v1574
    %v1584 = vcombine.low %v1576, %v1577
    %v1585 = vcombine.low %v1578, %v1579
    %v1587 = vunpack.c.l.s4 1983009808
    %v1588 = vunpack.c.0.s8 %v1587
    %v1589 = vlaneseq
    %v1590 = vshrl.u32 %v1589, 7
    %v1591 = vsub.s32 %v1588, %v1590
    %v1592 = vrot.slane %v1584, %v1591
    %v1594 = vunpack.c.l.s4 1983009808
    %v1595 = vunpack.c.0.s8 %v1594
    %v1596 = vlaneseq
    %v1597 = vshrl.u32 %v1596, 7
    %v1598 = vsub.s32 %v1595, %v1597
    %v1599 = vrot.slane %v1585, %v1598
    %v1600 = vcombine.low %v1592, %v1599
    %1602 = vst [vmem:[#allocation3 + $0x8] sm:$0xff] %v1600
    %s1603 = scalar_lea.vmem %s5, 8
    %v1604 = vld [vmem:[%s1603] sm:$0xf]
    %v1606 = vsel %vm64, %v1604, 0
    %1608 = vmatprep.subr.mxu0 0.0
    %1609 = vmatpush1.msra.mxu0 0.0
    %1610 = vmatprep.subr.mxu0 0.0
    %1611 = vmatpush1.msra.mxu0 0.0
    %1612 = vmatprep.subr.mxu0 0.0
    %1613 = vmatpush1.msra.mxu0 0.0
    %1614 = vmatprep.subr.mxu0 0.0
    %1615 = vmatpush1.msra.mxu0 0.0
    %1616 = vmatprep.subr.mxu0 0.0
    %1617 = vmatpush1.msra.mxu0 0.0
    %1618 = vmatprep.subr.mxu0 0.0
    %1619 = vmatpush1.msra.mxu0 0.0
    %1620 = vmatprep.subr.mxu0 0.0
    %1621 = vmatpush1.msra.mxu0 0.0
    %1622 = vmatprep.subr.mxu0 0.0
    %1623 = vmatpush1.msra.mxu0 0.0
    %1624 = vmatprep.subr.mxu0 0.0
    %1625 = vmatpush1.msra.mxu0 0.0
    %1626 = vmatprep.subr.mxu0 0.0
    %1627 = vmatpush1.msra.mxu0 0.0
    %1628 = vmatprep.subr.mxu0 0.0
    %1629 = vmatpush1.msra.mxu0 0.0
    %1630 = vmatprep.subr.mxu0 0.0
    %1631 = vmatpush1.msra.mxu0 0.0
    %1632 = vmatprep.subr.mxu0 0.0
    %1633 = vmatpush1.msra.mxu0 0.0
    %1634 = vmatprep.subr.mxu0 0.0
    %1635 = vmatpush1.msra.mxu0 0.0
    %1636 = vmatprep.subr.mxu0 0.0
    %1637 = vmatpush1.msra.mxu0 0.0
    %1638 = vmatprep.subr.mxu0 %v1253
    %1639 = vmatpush1.msra.mxu0 %v1252
    %1640 = vmatprep.subr.mxu0 0.0
    %1641 = vmatpush2.msra.mxu0 0.0
    %1642 = vmatprep.subr.mxu0 0.0
    %1643 = vmatpush2.msra.mxu0 0.0
    %1644 = vmatprep.subr.mxu0 0.0
    %1645 = vmatpush2.msra.mxu0 0.0
    %1646 = vmatprep.subr.mxu0 0.0
    %1647 = vmatpush2.msra.mxu0 0.0
    %1648 = vmatprep.subr.mxu0 0.0
    %1649 = vmatpush2.msra.mxu0 0.0
    %1650 = vmatprep.subr.mxu0 0.0
    %1651 = vmatpush2.msra.mxu0 0.0
    %1652 = vmatprep.subr.mxu0 0.0
    %1653 = vmatpush2.msra.mxu0 0.0
    %1654 = vmatprep.subr.mxu0 0.0
    %1655 = vmatpush2.msra.mxu0 0.0
    %1656 = vmatprep.subr.mxu0 0.0
    %1657 = vmatpush2.msra.mxu0 0.0
    %1658 = vmatprep.subr.mxu0 0.0
    %1659 = vmatpush2.msra.mxu0 0.0
    %1660 = vmatprep.subr.mxu0 0.0
    %1661 = vmatpush2.msra.mxu0 0.0
    %1662 = vmatprep.subr.mxu0 0.0
    %1663 = vmatpush2.msra.mxu0 0.0
    %1664 = vmatprep.subr.mxu0 0.0
    %1665 = vmatpush2.msra.mxu0 0.0
    %1666 = vmatprep.subr.mxu0 0.0
    %1667 = vmatpush2.msra.mxu0 0.0
    %1668 = vmatprep.subr.mxu0 0.0
    %1669 = vmatpush2.msra.mxu0 0.0
    %1670 = vmatprep.subr.mxu0 0.0
    %1671 = vmatpush2.msra.mxu0 0.0
    %1672 = vmatprep.mubr.f32.mxu0 0.0
    %1673 = vmatmul.mubr.f32.gmra.mxu0 %v1606
    %v1674 = vpop.f32.mrf.mxu0
    %v1675 = vadd.f32 0.0, %v1674
    %v1676 = vpop.f32.mrf.mxu0
    %v1677 = vadd.f32 0.0, %v1676
    %1678 = vdwg.mxu0
    %1679 = vmatprep.subr.mxu0 0.0
    %1680 = vmatpush1.msra.mxu0 0.0
    %1681 = vmatprep.subr.mxu0 0.0
    %1682 = vmatpush1.msra.mxu0 0.0
    %1683 = vmatprep.subr.mxu0 0.0
    %1684 = vmatpush1.msra.mxu0 0.0
    %1685 = vmatprep.subr.mxu0 0.0
    %1686 = vmatpush1.msra.mxu0 0.0
    %1687 = vmatprep.subr.mxu0 0.0
    %1688 = vmatpush1.msra.mxu0 0.0
    %1689 = vmatprep.subr.mxu0 0.0
    %1690 = vmatpush1.msra.mxu0 0.0
    %1691 = vmatprep.subr.mxu0 0.0
    %1692 = vmatpush1.msra.mxu0 0.0
    %1693 = vmatprep.subr.mxu0 0.0
    %1694 = vmatpush1.msra.mxu0 0.0
    %1695 = vmatprep.subr.mxu0 0.0
    %1696 = vmatpush1.msra.mxu0 0.0
    %1697 = vmatprep.subr.mxu0 0.0
    %1698 = vmatpush1.msra.mxu0 0.0
    %1699 = vmatprep.subr.mxu0 0.0
    %1700 = vmatpush1.msra.mxu0 0.0
    %1701 = vmatprep.subr.mxu0 0.0
    %1702 = vmatpush1.msra.mxu0 0.0
    %1703 = vmatprep.subr.mxu0 0.0
    %1704 = vmatpush1.msra.mxu0 0.0
    %1705 = vmatprep.subr.mxu0 0.0
    %1706 = vmatpush1.msra.mxu0 0.0
    %1707 = vmatprep.subr.mxu0 0.0
    %1708 = vmatpush1.msra.mxu0 0.0
    %1709 = vmatprep.subr.mxu0 %v1255
    %1710 = vmatpush1.msra.mxu0 %v1254
    %1711 = vmatprep.subr.mxu0 0.0
    %1712 = vmatpush2.msra.mxu0 0.0
    %1713 = vmatprep.subr.mxu0 0.0
    %1714 = vmatpush2.msra.mxu0 0.0
    %1715 = vmatprep.subr.mxu0 0.0
    %1716 = vmatpush2.msra.mxu0 0.0
    %1717 = vmatprep.subr.mxu0 0.0
    %1718 = vmatpush2.msra.mxu0 0.0
    %1719 = vmatprep.subr.mxu0 0.0
    %1720 = vmatpush2.msra.mxu0 0.0
    %1721 = vmatprep.subr.mxu0 0.0
    %1722 = vmatpush2.msra.mxu0 0.0
    %1723 = vmatprep.subr.mxu0 0.0
    %1724 = vmatpush2.msra.mxu0 0.0
    %1725 = vmatprep.subr.mxu0 0.0
    %1726 = vmatpush2.msra.mxu0 0.0
    %1727 = vmatprep.subr.mxu0 0.0
    %1728 = vmatpush2.msra.mxu0 0.0
    %1729 = vmatprep.subr.mxu0 0.0
    %1730 = vmatpush2.msra.mxu0 0.0
    %1731 = vmatprep.subr.mxu0 0.0
    %1732 = vmatpush2.msra.mxu0 0.0
    %1733 = vmatprep.subr.mxu0 0.0
    %1734 = vmatpush2.msra.mxu0 0.0
    %1735 = vmatprep.subr.mxu0 0.0
    %1736 = vmatpush2.msra.mxu0 0.0
    %1737 = vmatprep.subr.mxu0 0.0
    %1738 = vmatpush2.msra.mxu0 0.0
    %1739 = vmatprep.subr.mxu0 0.0
    %1740 = vmatpush2.msra.mxu0 0.0
    %1741 = vmatprep.subr.mxu0 0.0
    %1742 = vmatpush2.msra.mxu0 0.0
    %1743 = vmatprep.mubr.f32.mxu0 0.0
    %1744 = vmatmul.mubr.f32.gmra.mxu0 %v1606
    %v1745 = vpop.f32.mrf.mxu0
    %v1746 = vadd.f32 0.0, %v1745
    %v1747 = vpop.f32.mrf.mxu0
    %v1748 = vadd.f32 0.0, %v1747
    %1749 = vdwg.mxu0
    %v1750 = vpack.c.bf16 %v1675, %v1675
    %v1751 = vpack.c.bf16 %v1677, %v1677
    %v1752 = vpack.c.bf16 %v1746, %v1746
    %v1753 = vpack.c.bf16 %v1748, %v1748
    %v1758 = vcombine.low %v1750, %v1751
    %v1759 = vcombine.low %v1752, %v1753
    %v1761 = vunpack.c.l.s4 1983009808
    %v1762 = vunpack.c.0.s8 %v1761
    %v1763 = vlaneseq
    %v1764 = vshrl.u32 %v1763, 7
    %v1765 = vsub.s32 %v1762, %v1764
    %v1766 = vrot.slane %v1758, %v1765
    %v1768 = vunpack.c.l.s4 1983009808
    %v1769 = vunpack.c.0.s8 %v1768
    %v1770 = vlaneseq
    %v1771 = vshrl.u32 %v1770, 7
    %v1772 = vsub.s32 %v1769, %v1771
    %v1773 = vrot.slane %v1759, %v1772
    %v1774 = vcombine.low %v1766, %v1773
    %1776 = vst [vmem:[#allocation3 + $0x10] sm:$0xff] %v1774
    %v1777 = vld [vmem:[#allocation3] sm:$0xff]
    %v1778 = vld [vmem:[#allocation3 + $0x8] sm:$0xff]
    %v1779 = vld [vmem:[#allocation3 + $0x10] sm:$0xff]
    %v1780 = vld [vmem:[%s6] sm:$0xff]
    %v1781 = vld [vmem:[%s6 + $0x8] sm:$0xff]
    %v1782 = vld [vmem:[%s6 + $0x10] sm:$0xff]
    %v1783 = vld [vmem:[%s6 + $0x18] sm:$0xff]
    %v1784 = vld [vmem:[%s6 + $0x20] sm:$0xff]
    %v1785 = vld [vmem:[%s6 + $0x28] sm:$0xff]
    %v1786 = vld [vmem:[%s6 + $0x30] sm:$0xff]
    %v1787 = vld [vmem:[%s6 + $0x38] sm:$0xff]
    %v1788 = vld [vmem:[%s6 + $0x40] sm:$0xff]
    %v1789 = vld [vmem:[%s6 + $0x48] sm:$0xff]
    %v1790 = vld [vmem:[%s6 + $0x50] sm:$0xff]
    %v1791 = vld [vmem:[%s6 + $0x58] sm:$0xff]
    %v1792 = vld [vmem:[%s6 + $0x60] sm:$0xff]
    %v1793 = vld [vmem:[%s6 + $0x68] sm:$0xff]
    %v1794 = vld [vmem:[%s6 + $0x70] sm:$0xff]
    %v1795 = vld [vmem:[%s6 + $0x78] sm:$0xff]
    %v1796 = vld [vmem:[%s6 + $0x80] sm:$0xff]
    %v1797 = vld [vmem:[%s6 + $0x88] sm:$0xff]
    %v1798 = vld [vmem:[%s6 + $0x90] sm:$0xff]
    %v1799 = vld [vmem:[%s6 + $0x98] sm:$0xff]
    %v1800 = vld [vmem:[%s6 + $0xa0] sm:$0xff]
    %v1801 = vld [vmem:[%s6 + $0xa8] sm:$0xff]
    %v1802 = vld [vmem:[%s6 + $0xb0] sm:$0xff]
    %v1803 = vld [vmem:[%s6 + $0xb8] sm:$0xff]
    %v1804 = vld [vmem:[%s6 + $0xc0] sm:$0xff]
    %v1805 = vld [vmem:[%s6 + $0xc8] sm:$0xff]
    %v1806 = vld [vmem:[%s6 + $0xd0] sm:$0xff]
    %v1807 = vld [vmem:[%s6 + $0xd8] sm:$0xff]
    %v1808 = vld [vmem:[%s6 + $0xe0] sm:$0xff]
    %v1809 = vld [vmem:[%s6 + $0xe8] sm:$0xff]
    %v1810 = vld [vmem:[%s6 + $0xf0] sm:$0xff]
    %v1811 = vld [vmem:[%s6 + $0xf8] sm:$0xff]
    %v1812 = vld [vmem:[%s6 + $0x100] sm:$0xff]
    %v1813 = vld [vmem:[%s6 + $0x108] sm:$0xff]
    %v1814 = vld [vmem:[%s6 + $0x110] sm:$0xff]
    %v1815 = vld [vmem:[%s6 + $0x118] sm:$0xff]
    %v1816 = vld [vmem:[%s6 + $0x120] sm:$0xff]
    %v1817 = vld [vmem:[%s6 + $0x128] sm:$0xff]
    %v1818 = vld [vmem:[%s6 + $0x130] sm:$0xff]
    %v1819 = vld [vmem:[%s6 + $0x138] sm:$0xff]
    %v1820 = vld [vmem:[%s6 + $0x140] sm:$0xff]
    %v1821 = vld [vmem:[%s6 + $0x148] sm:$0xff]
    %v1822 = vld [vmem:[%s6 + $0x150] sm:$0xff]
    %v1823 = vld [vmem:[%s6 + $0x158] sm:$0xff]
    %v1824 = vld [vmem:[%s6 + $0x160] sm:$0xff]
    %v1825 = vld [vmem:[%s6 + $0x168] sm:$0xff]
    %v1826 = vld [vmem:[%s6 + $0x170] sm:$0xff]
    %v1827 = vld [vmem:[%s6 + $0x178] sm:$0xff]
    %v1828 = vld [vmem:[%s6 + $0x180] sm:$0xff]
    %v1829 = vld [vmem:[%s6 + $0x188] sm:$0xff]
    %v1830 = vld [vmem:[%s6 + $0x190] sm:$0xff]
    %v1831 = vld [vmem:[%s6 + $0x198] sm:$0xff]
    %v1832 = vld [vmem:[%s6 + $0x1a0] sm:$0xff]
    %v1833 = vld [vmem:[%s6 + $0x1a8] sm:$0xff]
    %v1834 = vld [vmem:[%s6 + $0x1b0] sm:$0xff]
    %v1835 = vld [vmem:[%s6 + $0x1b8] sm:$0xff]
    %v1836 = vld [vmem:[%s6 + $0x1c0] sm:$0xff]
    %v1837 = vld [vmem:[%s6 + $0x1c8] sm:$0xff]
    %v1838 = vld [vmem:[%s6 + $0x1d0] sm:$0xff]
    %v1839 = vld [vmem:[%s6 + $0x1d8] sm:$0xff]
    %v1840 = vld [vmem:[%s6 + $0x1e0] sm:$0xff]
    %v1841 = vld [vmem:[%s6 + $0x1e8] sm:$0xff]
    %v1842 = vld [vmem:[%s6 + $0x1f0] sm:$0xff]
    %v1843 = vld [vmem:[%s6 + $0x1f8] sm:$0xff]
    %v1844 = vld [vmem:[%s6 + $0x200] sm:$0xff]
    %v1845 = vld [vmem:[%s6 + $0x208] sm:$0xff]
    %v1846 = vld [vmem:[%s6 + $0x210] sm:$0xff]
    %v1847 = vld [vmem:[%s6 + $0x218] sm:$0xff]
    %v1848 = vld [vmem:[%s6 + $0x220] sm:$0xff]
    %v1849 = vld [vmem:[%s6 + $0x228] sm:$0xff]
    %v1850 = vld [vmem:[%s6 + $0x230] sm:$0xff]
    %v1851 = vld [vmem:[%s6 + $0x238] sm:$0xff]
    %v1852 = vld [vmem:[%s6 + $0x240] sm:$0xff]
    %v1853 = vld [vmem:[%s6 + $0x248] sm:$0xff]
    %v1854 = vld [vmem:[%s6 + $0x250] sm:$0xff]
    %v1855 = vld [vmem:[%s6 + $0x258] sm:$0xff]
    %v1856 = vld [vmem:[%s6 + $0x260] sm:$0xff]
    %v1857 = vld [vmem:[%s6 + $0x268] sm:$0xff]
    %v1858 = vld [vmem:[%s6 + $0x270] sm:$0xff]
    %v1859 = vld [vmem:[%s6 + $0x278] sm:$0xff]
    %v1860 = vld [vmem:[%s6 + $0x280] sm:$0xff]
    %v1861 = vld [vmem:[%s6 + $0x288] sm:$0xff]
    %v1862 = vld [vmem:[%s6 + $0x290] sm:$0xff]
    %v1863 = vld [vmem:[%s6 + $0x298] sm:$0xff]
    %v1864 = vld [vmem:[%s6 + $0x2a0] sm:$0xff]
    %v1865 = vld [vmem:[%s6 + $0x2a8] sm:$0xff]
    %v1866 = vld [vmem:[%s6 + $0x2b0] sm:$0xff]
    %v1867 = vld [vmem:[%s6 + $0x2b8] sm:$0xff]
    %v1868 = vld [vmem:[%s6 + $0x2c0] sm:$0xff]
    %v1869 = vld [vmem:[%s6 + $0x2c8] sm:$0xff]
    %v1870 = vld [vmem:[%s6 + $0x2d0] sm:$0xff]
    %v1871 = vld [vmem:[%s6 + $0x2d8] sm:$0xff]
    %v1872 = vld [vmem:[%s6 + $0x2e0] sm:$0xff]
    %v1873 = vld [vmem:[%s6 + $0x2e8] sm:$0xff]
    %v1874 = vld [vmem:[%s6 + $0x2f0] sm:$0xff]
    %v1875 = vld [vmem:[%s6 + $0x2f8] sm:$0xff]
    %v1876 = vld [vmem:[%s6 + $0x300] sm:$0xff]
    %v1877 = vld [vmem:[%s6 + $0x308] sm:$0xff]
    %v1878 = vld [vmem:[%s6 + $0x310] sm:$0xff]
    %v1879 = vld [vmem:[%s6 + $0x318] sm:$0xff]
    %v1880 = vld [vmem:[%s6 + $0x320] sm:$0xff]
    %v1881 = vld [vmem:[%s6 + $0x328] sm:$0xff]
    %v1882 = vld [vmem:[%s6 + $0x330] sm:$0xff]
    %v1883 = vld [vmem:[%s6 + $0x338] sm:$0xff]
    %v1884 = vld [vmem:[%s6 + $0x340] sm:$0xff]
    %v1885 = vld [vmem:[%s6 + $0x348] sm:$0xff]
    %v1886 = vld [vmem:[%s6 + $0x350] sm:$0xff]
    %v1887 = vld [vmem:[%s6 + $0x358] sm:$0xff]
    %v1888 = vld [vmem:[%s6 + $0x360] sm:$0xff]
    %v1889 = vld [vmem:[%s6 + $0x368] sm:$0xff]
    %v1890 = vld [vmem:[%s6 + $0x370] sm:$0xff]
    %v1891 = vld [vmem:[%s6 + $0x378] sm:$0xff]
    %v1892 = vld [vmem:[%s6 + $0x380] sm:$0xff]
    %v1893 = vld [vmem:[%s6 + $0x388] sm:$0xff]
    %v1894 = vld [vmem:[%s6 + $0x390] sm:$0xff]
    %v1895 = vld [vmem:[%s6 + $0x398] sm:$0xff]
    %v1896 = vld [vmem:[%s6 + $0x3a0] sm:$0xff]
    %v1897 = vld [vmem:[%s6 + $0x3a8] sm:$0xff]
    %v1898 = vld [vmem:[%s6 + $0x3b0] sm:$0xff]
    %v1899 = vld [vmem:[%s6 + $0x3b8] sm:$0xff]
    %v1900 = vld [vmem:[%s6 + $0x3c0] sm:$0xff]
    %v1901 = vld [vmem:[%s6 + $0x3c8] sm:$0xff]
    %v1902 = vld [vmem:[%s6 + $0x3d0] sm:$0xff]
    %v1903 = vld [vmem:[%s6 + $0x3d8] sm:$0xff]
    %v1904 = vld [vmem:[%s6 + $0x3e0] sm:$0xff]
    %v1905 = vld [vmem:[%s6 + $0x3e8] sm:$0xff]
    %v1906 = vld [vmem:[%s6 + $0x3f0] sm:$0xff]
    %v1907 = vld [vmem:[%s6 + $0x3f8] sm:$0xff]
    %v1908 = vld [vmem:[%s6 + $0x400] sm:$0xff]
    %v1909 = vld [vmem:[%s6 + $0x408] sm:$0xff]
    %v1910 = vld [vmem:[%s6 + $0x410] sm:$0xff]
    %v1911 = vld [vmem:[%s6 + $0x418] sm:$0xff]
    %v1912 = vld [vmem:[%s6 + $0x420] sm:$0xff]
    %v1913 = vld [vmem:[%s6 + $0x428] sm:$0xff]
    %v1914 = vld [vmem:[%s6 + $0x430] sm:$0xff]
    %v1915 = vld [vmem:[%s6 + $0x438] sm:$0xff]
    %v1916 = vld [vmem:[%s6 + $0x440] sm:$0xff]
    %v1917 = vld [vmem:[%s6 + $0x448] sm:$0xff]
    %v1918 = vld [vmem:[%s6 + $0x450] sm:$0xff]
    %v1919 = vld [vmem:[%s6 + $0x458] sm:$0xff]
    %v1920 = vld [vmem:[%s6 + $0x460] sm:$0xff]
    %v1921 = vld [vmem:[%s6 + $0x468] sm:$0xff]
    %v1922 = vld [vmem:[%s6 + $0x470] sm:$0xff]
    %v1923 = vld [vmem:[%s6 + $0x478] sm:$0xff]
    %v1924 = vld [vmem:[%s6 + $0x480] sm:$0xff]
    %v1925 = vld [vmem:[%s6 + $0x488] sm:$0xff]
    %v1926 = vld [vmem:[%s6 + $0x490] sm:$0xff]
    %v1927 = vld [vmem:[%s6 + $0x498] sm:$0xff]
    %v1928 = vld [vmem:[%s6 + $0x4a0] sm:$0xff]
    %v1929 = vld [vmem:[%s6 + $0x4a8] sm:$0xff]
    %v1930 = vld [vmem:[%s6 + $0x4b0] sm:$0xff]
    %v1931 = vld [vmem:[%s6 + $0x4b8] sm:$0xff]
    %v1932 = vld [vmem:[%s6 + $0x4c0] sm:$0xff]
    %v1933 = vld [vmem:[%s6 + $0x4c8] sm:$0xff]
    %v1934 = vld [vmem:[%s6 + $0x4d0] sm:$0xff]
    %v1935 = vld [vmem:[%s6 + $0x4d8] sm:$0xff]
    %v1936 = vld [vmem:[%s6 + $0x4e0] sm:$0xff]
    %v1937 = vld [vmem:[%s6 + $0x4e8] sm:$0xff]
    %v1938 = vld [vmem:[%s6 + $0x4f0] sm:$0xff]
    %v1939 = vld [vmem:[%s6 + $0x4f8] sm:$0xff]
    %v1940 = vld [vmem:[%s6 + $0x500] sm:$0xff]
    %v1941 = vld [vmem:[%s6 + $0x508] sm:$0xff]
    %v1942 = vld [vmem:[%s6 + $0x510] sm:$0xff]
    %v1943 = vld [vmem:[%s6 + $0x518] sm:$0xff]
    %v1944 = vld [vmem:[%s6 + $0x520] sm:$0xff]
    %v1945 = vld [vmem:[%s6 + $0x528] sm:$0xff]
    %v1946 = vld [vmem:[%s6 + $0x530] sm:$0xff]
    %v1947 = vld [vmem:[%s6 + $0x538] sm:$0xff]
    %v1948 = vld [vmem:[%s6 + $0x540] sm:$0xff]
    %v1949 = vld [vmem:[%s6 + $0x548] sm:$0xff]
    %v1950 = vld [vmem:[%s6 + $0x550] sm:$0xff]
    %v1951 = vld [vmem:[%s6 + $0x558] sm:$0xff]
    %v1952 = vld [vmem:[%s6 + $0x560] sm:$0xff]
    %v1953 = vld [vmem:[%s6 + $0x568] sm:$0xff]
    %v1954 = vld [vmem:[%s6 + $0x570] sm:$0xff]
    %v1955 = vld [vmem:[%s6 + $0x578] sm:$0xff]
    %v1956 = vld [vmem:[%s6 + $0x580] sm:$0xff]
    %v1957 = vld [vmem:[%s6 + $0x588] sm:$0xff]
    %v1958 = vld [vmem:[%s6 + $0x590] sm:$0xff]
    %v1959 = vld [vmem:[%s6 + $0x598] sm:$0xff]
    %v1960 = vld [vmem:[%s6 + $0x5a0] sm:$0xff]
    %v1961 = vld [vmem:[%s6 + $0x5a8] sm:$0xff]
    %v1962 = vld [vmem:[%s6 + $0x5b0] sm:$0xff]
    %v1963 = vld [vmem:[%s6 + $0x5b8] sm:$0xff]
    %v1964 = vld [vmem:[%s6 + $0x5c0] sm:$0xff]
    %v1965 = vld [vmem:[%s6 + $0x5c8] sm:$0xff]
    %v1966 = vld [vmem:[%s6 + $0x5d0] sm:$0xff]
    %v1967 = vld [vmem:[%s6 + $0x5d8] sm:$0xff]
    %v1968 = vld [vmem:[%s6 + $0x5e0] sm:$0xff]
    %v1969 = vld [vmem:[%s6 + $0x5e8] sm:$0xff]
    %v1970 = vld [vmem:[%s6 + $0x5f0] sm:$0xff]
    %v1971 = vld [vmem:[%s6 + $0x5f8] sm:$0xff]
    %v1975 = vcombine.high %v1777, %v1777
    %v1977 = vunpack.c.l.s4 1983009808
    %v1978 = vunpack.c.0.s8 %v1977
    %v1979 = vlaneseq
    %v1980 = vshrl.u32 %v1979, 7
    %v1981 = vsub.s32 %v1978, %v1980
    %v1982 = vrot.slane %v1777, %v1981
    %v1984 = vunpack.c.l.s4 1983009808
    %v1985 = vunpack.c.0.s8 %v1984
    %v1986 = vlaneseq
    %v1987 = vshrl.u32 %v1986, 7
    %v1988 = vsub.s32 %v1985, %v1987
    %v1989 = vrot.slane %v1975, %v1988
    %v1990 = vcombine.high %v1982, %v1982
    %v1991 = vcombine.high %v1989, %v1989
    %v1992 = vcombine.high %v1778, %v1778
    %v1994 = vunpack.c.l.s4 1983009808
    %v1995 = vunpack.c.0.s8 %v1994
    %v1996 = vlaneseq
    %v1997 = vshrl.u32 %v1996, 7
    %v1998 = vsub.s32 %v1995, %v1997
    %v1999 = vrot.slane %v1778, %v1998
    %v2001 = vunpack.c.l.s4 1983009808
    %v2002 = vunpack.c.0.s8 %v2001
    %v2003 = vlaneseq
    %v2004 = vshrl.u32 %v2003, 7
    %v2005 = vsub.s32 %v2002, %v2004
    %v2006 = vrot.slane %v1992, %v2005
    %v2007 = vcombine.high %v1999, %v1999
    %v2008 = vcombine.high %v2006, %v2006
    %v2009 = vcombine.high %v1779, %v1779
    %v2011 = vunpack.c.l.s4 1983009808
    %v2012 = vunpack.c.0.s8 %v2011
    %v2013 = vlaneseq
    %v2014 = vshrl.u32 %v2013, 7
    %v2015 = vsub.s32 %v2012, %v2014
    %v2016 = vrot.slane %v1779, %v2015
    %v2018 = vunpack.c.l.s4 1983009808
    %v2019 = vunpack.c.0.s8 %v2018
    %v2020 = vlaneseq
    %v2021 = vshrl.u32 %v2020, 7
    %v2022 = vsub.s32 %v2019, %v2021
    %v2023 = vrot.slane %v2009, %v2022
    %v2024 = vcombine.high %v2016, %v2016
    %v2025 = vcombine.high %v2023, %v2023
    %v2230 = vunpack.c.l.b16 %v1780
    %v2231 = vunpack.c.h.b16 %v1780
    %v2232 = vunpack.c.l.b16 %v1781
    %v2233 = vunpack.c.h.b16 %v1781
    %v2234 = vunpack.c.l.b16 %v1782
    %v2235 = vunpack.c.h.b16 %v1782
    %v2236 = vunpack.c.l.b16 %v1783
    %v2237 = vunpack.c.h.b16 %v1783
    %v2238 = vunpack.c.l.b16 %v1784
    %v2239 = vunpack.c.h.b16 %v1784
    %v2240 = vunpack.c.l.b16 %v1785
    %v2241 = vunpack.c.h.b16 %v1785
    %v2242 = vunpack.c.l.b16 %v1786
    %v2243 = vunpack.c.h.b16 %v1786
    %v2244 = vunpack.c.l.b16 %v1787
    %v2245 = vunpack.c.h.b16 %v1787
    %v2246 = vunpack.c.l.b16 %v1788
    %v2247 = vunpack.c.h.b16 %v1788
    %v2248 = vunpack.c.l.b16 %v1789
    %v2249 = vunpack.c.h.b16 %v1789
    %v2250 = vunpack.c.l.b16 %v1790
    %v2251 = vunpack.c.h.b16 %v1790
    %v2252 = vunpack.c.l.b16 %v1791
    %v2253 = vunpack.c.h.b16 %v1791
    %v2254 = vunpack.c.l.b16 %v1792
    %v2255 = vunpack.c.h.b16 %v1792
    %v2256 = vunpack.c.l.b16 %v1793
    %v2257 = vunpack.c.h.b16 %v1793
    %v2258 = vunpack.c.l.b16 %v1794
    %v2259 = vunpack.c.h.b16 %v1794
    %v2260 = vunpack.c.l.b16 %v1795
    %v2261 = vunpack.c.h.b16 %v1795
    %v2262 = vunpack.c.l.b16 %v1796
    %v2263 = vunpack.c.h.b16 %v1796
    %v2264 = vunpack.c.l.b16 %v1797
    %v2265 = vunpack.c.h.b16 %v1797
    %v2266 = vunpack.c.l.b16 %v1798
    %v2267 = vunpack.c.h.b16 %v1798
    %v2268 = vunpack.c.l.b16 %v1799
    %v2269 = vunpack.c.h.b16 %v1799
    %v2270 = vunpack.c.l.b16 %v1800
    %v2271 = vunpack.c.h.b16 %v1800
    %v2272 = vunpack.c.l.b16 %v1801
    %v2273 = vunpack.c.h.b16 %v1801
    %v2274 = vunpack.c.l.b16 %v1802
    %v2275 = vunpack.c.h.b16 %v1802
    %v2276 = vunpack.c.l.b16 %v1803
    %v2277 = vunpack.c.h.b16 %v1803
    %v2278 = vunpack.c.l.b16 %v1804
    %v2279 = vunpack.c.h.b16 %v1804
    %v2280 = vunpack.c.l.b16 %v1805
    %v2281 = vunpack.c.h.b16 %v1805
    %v2282 = vunpack.c.l.b16 %v1806
    %v2283 = vunpack.c.h.b16 %v1806
    %v2284 = vunpack.c.l.b16 %v1807
    %v2285 = vunpack.c.h.b16 %v1807
    %v2286 = vunpack.c.l.b16 %v1808
    %v2287 = vunpack.c.h.b16 %v1808
    %v2288 = vunpack.c.l.b16 %v1809
    %v2289 = vunpack.c.h.b16 %v1809
    %v2290 = vunpack.c.l.b16 %v1810
    %v2291 = vunpack.c.h.b16 %v1810
    %v2292 = vunpack.c.l.b16 %v1811
    %v2293 = vunpack.c.h.b16 %v1811
    %v2294 = vunpack.c.l.b16 %v1812
    %v2295 = vunpack.c.h.b16 %v1812
    %v2296 = vunpack.c.l.b16 %v1813
    %v2297 = vunpack.c.h.b16 %v1813
    %v2298 = vunpack.c.l.b16 %v1814
    %v2299 = vunpack.c.h.b16 %v1814
    %v2300 = vunpack.c.l.b16 %v1815
    %v2301 = vunpack.c.h.b16 %v1815
    %v2302 = vunpack.c.l.b16 %v1816
    %v2303 = vunpack.c.h.b16 %v1816
    %v2304 = vunpack.c.l.b16 %v1817
    %v2305 = vunpack.c.h.b16 %v1817
    %v2306 = vunpack.c.l.b16 %v1818
    %v2307 = vunpack.c.h.b16 %v1818
    %v2308 = vunpack.c.l.b16 %v1819
    %v2309 = vunpack.c.h.b16 %v1819
    %v2310 = vunpack.c.l.b16 %v1820
    %v2311 = vunpack.c.h.b16 %v1820
    %v2312 = vunpack.c.l.b16 %v1821
    %v2313 = vunpack.c.h.b16 %v1821
    %v2314 = vunpack.c.l.b16 %v1822
    %v2315 = vunpack.c.h.b16 %v1822
    %v2316 = vunpack.c.l.b16 %v1823
    %v2317 = vunpack.c.h.b16 %v1823
    %v2318 = vunpack.c.l.b16 %v1824
    %v2319 = vunpack.c.h.b16 %v1824
    %v2320 = vunpack.c.l.b16 %v1825
    %v2321 = vunpack.c.h.b16 %v1825
    %v2322 = vunpack.c.l.b16 %v1826
    %v2323 = vunpack.c.h.b16 %v1826
    %v2324 = vunpack.c.l.b16 %v1827
    %v2325 = vunpack.c.h.b16 %v1827
    %v2326 = vunpack.c.l.b16 %v1828
    %v2327 = vunpack.c.h.b16 %v1828
    %v2328 = vunpack.c.l.b16 %v1829
    %v2329 = vunpack.c.h.b16 %v1829
    %v2330 = vunpack.c.l.b16 %v1830
    %v2331 = vunpack.c.h.b16 %v1830
    %v2332 = vunpack.c.l.b16 %v1831
    %v2333 = vunpack.c.h.b16 %v1831
    %v2334 = vunpack.c.l.b16 %v1832
    %v2335 = vunpack.c.h.b16 %v1832
    %v2336 = vunpack.c.l.b16 %v1833
    %v2337 = vunpack.c.h.b16 %v1833
    %v2338 = vunpack.c.l.b16 %v1834
    %v2339 = vunpack.c.h.b16 %v1834
    %v2340 = vunpack.c.l.b16 %v1835
    %v2341 = vunpack.c.h.b16 %v1835
    %v2342 = vunpack.c.l.b16 %v1836
    %v2343 = vunpack.c.h.b16 %v1836
    %v2344 = vunpack.c.l.b16 %v1837
    %v2345 = vunpack.c.h.b16 %v1837
    %v2346 = vunpack.c.l.b16 %v1838
    %v2347 = vunpack.c.h.b16 %v1838
    %v2348 = vunpack.c.l.b16 %v1839
    %v2349 = vunpack.c.h.b16 %v1839
    %v2350 = vunpack.c.l.b16 %v1840
    %v2351 = vunpack.c.h.b16 %v1840
    %v2352 = vunpack.c.l.b16 %v1841
    %v2353 = vunpack.c.h.b16 %v1841
    %v2354 = vunpack.c.l.b16 %v1842
    %v2355 = vunpack.c.h.b16 %v1842
    %v2356 = vunpack.c.l.b16 %v1843
    %v2357 = vunpack.c.h.b16 %v1843
    %v2358 = vunpack.c.l.b16 %v1844
    %v2359 = vunpack.c.h.b16 %v1844
    %v2360 = vunpack.c.l.b16 %v1845
    %v2361 = vunpack.c.h.b16 %v1845
    %v2362 = vunpack.c.l.b16 %v1846
    %v2363 = vunpack.c.h.b16 %v1846
    %v2364 = vunpack.c.l.b16 %v1847
    %v2365 = vunpack.c.h.b16 %v1847
    %v2366 = vunpack.c.l.b16 %v1848
    %v2367 = vunpack.c.h.b16 %v1848
    %v2368 = vunpack.c.l.b16 %v1849
    %v2369 = vunpack.c.h.b16 %v1849
    %v2370 = vunpack.c.l.b16 %v1850
    %v2371 = vunpack.c.h.b16 %v1850
    %v2372 = vunpack.c.l.b16 %v1851
    %v2373 = vunpack.c.h.b16 %v1851
    %v2374 = vunpack.c.l.b16 %v1852
    %v2375 = vunpack.c.h.b16 %v1852
    %v2376 = vunpack.c.l.b16 %v1853
    %v2377 = vunpack.c.h.b16 %v1853
    %v2378 = vunpack.c.l.b16 %v1854
    %v2379 = vunpack.c.h.b16 %v1854
    %v2380 = vunpack.c.l.b16 %v1855
    %v2381 = vunpack.c.h.b16 %v1855
    %v2382 = vunpack.c.l.b16 %v1856
    %v2383 = vunpack.c.h.b16 %v1856
    %v2384 = vunpack.c.l.b16 %v1857
    %v2385 = vunpack.c.h.b16 %v1857
    %v2386 = vunpack.c.l.b16 %v1858
    %v2387 = vunpack.c.h.b16 %v1858
    %v2388 = vunpack.c.l.b16 %v1859
    %v2389 = vunpack.c.h.b16 %v1859
    %v2390 = vunpack.c.l.b16 %v1860
    %v2391 = vunpack.c.h.b16 %v1860
    %v2392 = vunpack.c.l.b16 %v1861
    %v2393 = vunpack.c.h.b16 %v1861
    %v2394 = vunpack.c.l.b16 %v1862
    %v2395 = vunpack.c.h.b16 %v1862
    %v2396 = vunpack.c.l.b16 %v1863
    %v2397 = vunpack.c.h.b16 %v1863
    %v2398 = vunpack.c.l.b16 %v1864
    %v2399 = vunpack.c.h.b16 %v1864
    %v2400 = vunpack.c.l.b16 %v1865
    %v2401 = vunpack.c.h.b16 %v1865
    %v2402 = vunpack.c.l.b16 %v1866
    %v2403 = vunpack.c.h.b16 %v1866
    %v2404 = vunpack.c.l.b16 %v1867
    %v2405 = vunpack.c.h.b16 %v1867
    %v2406 = vunpack.c.l.b16 %v1868
    %v2407 = vunpack.c.h.b16 %v1868
    %v2408 = vunpack.c.l.b16 %v1869
    %v2409 = vunpack.c.h.b16 %v1869
    %v2410 = vunpack.c.l.b16 %v1870
    %v2411 = vunpack.c.h.b16 %v1870
    %v2412 = vunpack.c.l.b16 %v1871
    %v2413 = vunpack.c.h.b16 %v1871
    %v2414 = vunpack.c.l.b16 %v1872
    %v2415 = vunpack.c.h.b16 %v1872
    %v2416 = vunpack.c.l.b16 %v1873
    %v2417 = vunpack.c.h.b16 %v1873
    %v2418 = vunpack.c.l.b16 %v1874
    %v2419 = vunpack.c.h.b16 %v1874
    %v2420 = vunpack.c.l.b16 %v1875
    %v2421 = vunpack.c.h.b16 %v1875
    %v2422 = vunpack.c.l.b16 %v1876
    %v2423 = vunpack.c.h.b16 %v1876
    %v2424 = vunpack.c.l.b16 %v1877
    %v2425 = vunpack.c.h.b16 %v1877
    %v2426 = vunpack.c.l.b16 %v1878
    %v2427 = vunpack.c.h.b16 %v1878
    %v2428 = vunpack.c.l.b16 %v1879
    %v2429 = vunpack.c.h.b16 %v1879
    %v2430 = vunpack.c.l.b16 %v1880
    %v2431 = vunpack.c.h.b16 %v1880
    %v2432 = vunpack.c.l.b16 %v1881
    %v2433 = vunpack.c.h.b16 %v1881
    %v2434 = vunpack.c.l.b16 %v1882
    %v2435 = vunpack.c.h.b16 %v1882
    %v2436 = vunpack.c.l.b16 %v1883
    %v2437 = vunpack.c.h.b16 %v1883
    %v2438 = vunpack.c.l.b16 %v1884
    %v2439 = vunpack.c.h.b16 %v1884
    %v2440 = vunpack.c.l.b16 %v1885
    %v2441 = vunpack.c.h.b16 %v1885
    %v2442 = vunpack.c.l.b16 %v1886
    %v2443 = vunpack.c.h.b16 %v1886
    %v2444 = vunpack.c.l.b16 %v1887
    %v2445 = vunpack.c.h.b16 %v1887
    %v2446 = vunpack.c.l.b16 %v1888
    %v2447 = vunpack.c.h.b16 %v1888
    %v2448 = vunpack.c.l.b16 %v1889
    %v2449 = vunpack.c.h.b16 %v1889
    %v2450 = vunpack.c.l.b16 %v1890
    %v2451 = vunpack.c.h.b16 %v1890
    %v2452 = vunpack.c.l.b16 %v1891
    %v2453 = vunpack.c.h.b16 %v1891
    %v2454 = vunpack.c.l.b16 %v1892
    %v2455 = vunpack.c.h.b16 %v1892
    %v2456 = vunpack.c.l.b16 %v1893
    %v2457 = vunpack.c.h.b16 %v1893
    %v2458 = vunpack.c.l.b16 %v1894
    %v2459 = vunpack.c.h.b16 %v1894
    %v2460 = vunpack.c.l.b16 %v1895
    %v2461 = vunpack.c.h.b16 %v1895
    %v2462 = vunpack.c.l.b16 %v1896
    %v2463 = vunpack.c.h.b16 %v1896
    %v2464 = vunpack.c.l.b16 %v1897
    %v2465 = vunpack.c.h.b16 %v1897
    %v2466 = vunpack.c.l.b16 %v1898
    %v2467 = vunpack.c.h.b16 %v1898
    %v2468 = vunpack.c.l.b16 %v1899
    %v2469 = vunpack.c.h.b16 %v1899
    %v2470 = vunpack.c.l.b16 %v1900
    %v2471 = vunpack.c.h.b16 %v1900
    %v2472 = vunpack.c.l.b16 %v1901
    %v2473 = vunpack.c.h.b16 %v1901
    %v2474 = vunpack.c.l.b16 %v1902
    %v2475 = vunpack.c.h.b16 %v1902
    %v2476 = vunpack.c.l.b16 %v1903
    %v2477 = vunpack.c.h.b16 %v1903
    %v2478 = vunpack.c.l.b16 %v1904
    %v2479 = vunpack.c.h.b16 %v1904
    %v2480 = vunpack.c.l.b16 %v1905
    %v2481 = vunpack.c.h.b16 %v1905
    %v2482 = vunpack.c.l.b16 %v1906
    %v2483 = vunpack.c.h.b16 %v1906
    %v2484 = vunpack.c.l.b16 %v1907
    %v2485 = vunpack.c.h.b16 %v1907
    %v2486 = vunpack.c.l.b16 %v1908
    %v2487 = vunpack.c.h.b16 %v1908
    %v2488 = vunpack.c.l.b16 %v1909
    %v2489 = vunpack.c.h.b16 %v1909
    %v2490 = vunpack.c.l.b16 %v1910
    %v2491 = vunpack.c.h.b16 %v1910
    %v2492 = vunpack.c.l.b16 %v1911
    %v2493 = vunpack.c.h.b16 %v1911
    %v2494 = vunpack.c.l.b16 %v1912
    %v2495 = vunpack.c.h.b16 %v1912
    %v2496 = vunpack.c.l.b16 %v1913
    %v2497 = vunpack.c.h.b16 %v1913
    %v2498 = vunpack.c.l.b16 %v1914
    %v2499 = vunpack.c.h.b16 %v1914
    %v2500 = vunpack.c.l.b16 %v1915
    %v2501 = vunpack.c.h.b16 %v1915
    %v2502 = vunpack.c.l.b16 %v1916
    %v2503 = vunpack.c.h.b16 %v1916
    %v2504 = vunpack.c.l.b16 %v1917
    %v2505 = vunpack.c.h.b16 %v1917
    %v2506 = vunpack.c.l.b16 %v1918
    %v2507 = vunpack.c.h.b16 %v1918
    %v2508 = vunpack.c.l.b16 %v1919
    %v2509 = vunpack.c.h.b16 %v1919
    %v2510 = vunpack.c.l.b16 %v1920
    %v2511 = vunpack.c.h.b16 %v1920
    %v2512 = vunpack.c.l.b16 %v1921
    %v2513 = vunpack.c.h.b16 %v1921
    %v2514 = vunpack.c.l.b16 %v1922
    %v2515 = vunpack.c.h.b16 %v1922
    %v2516 = vunpack.c.l.b16 %v1923
    %v2517 = vunpack.c.h.b16 %v1923
    %v2518 = vunpack.c.l.b16 %v1924
    %v2519 = vunpack.c.h.b16 %v1924
    %v2520 = vunpack.c.l.b16 %v1925
    %v2521 = vunpack.c.h.b16 %v1925
    %v2522 = vunpack.c.l.b16 %v1926
    %v2523 = vunpack.c.h.b16 %v1926
    %v2524 = vunpack.c.l.b16 %v1927
    %v2525 = vunpack.c.h.b16 %v1927
    %v2526 = vunpack.c.l.b16 %v1928
    %v2527 = vunpack.c.h.b16 %v1928
    %v2528 = vunpack.c.l.b16 %v1929
    %v2529 = vunpack.c.h.b16 %v1929
    %v2530 = vunpack.c.l.b16 %v1930
    %v2531 = vunpack.c.h.b16 %v1930
    %v2532 = vunpack.c.l.b16 %v1931
    %v2533 = vunpack.c.h.b16 %v1931
    %v2534 = vunpack.c.l.b16 %v1932
    %v2535 = vunpack.c.h.b16 %v1932
    %v2536 = vunpack.c.l.b16 %v1933
    %v2537 = vunpack.c.h.b16 %v1933
    %v2538 = vunpack.c.l.b16 %v1934
    %v2539 = vunpack.c.h.b16 %v1934
    %v2540 = vunpack.c.l.b16 %v1935
    %v2541 = vunpack.c.h.b16 %v1935
    %v2542 = vunpack.c.l.b16 %v1936
    %v2543 = vunpack.c.h.b16 %v1936
    %v2544 = vunpack.c.l.b16 %v1937
    %v2545 = vunpack.c.h.b16 %v1937
    %v2546 = vunpack.c.l.b16 %v1938
    %v2547 = vunpack.c.h.b16 %v1938
    %v2548 = vunpack.c.l.b16 %v1939
    %v2549 = vunpack.c.h.b16 %v1939
    %v2550 = vunpack.c.l.b16 %v1940
    %v2551 = vunpack.c.h.b16 %v1940
    %v2552 = vunpack.c.l.b16 %v1941
    %v2553 = vunpack.c.h.b16 %v1941
    %v2554 = vunpack.c.l.b16 %v1942
    %v2555 = vunpack.c.h.b16 %v1942
    %v2556 = vunpack.c.l.b16 %v1943
    %v2557 = vunpack.c.h.b16 %v1943
    %v2558 = vunpack.c.l.b16 %v1944
    %v2559 = vunpack.c.h.b16 %v1944
    %v2560 = vunpack.c.l.b16 %v1945
    %v2561 = vunpack.c.h.b16 %v1945
    %v2562 = vunpack.c.l.b16 %v1946
    %v2563 = vunpack.c.h.b16 %v1946
    %v2564 = vunpack.c.l.b16 %v1947
    %v2565 = vunpack.c.h.b16 %v1947
    %v2566 = vunpack.c.l.b16 %v1948
    %v2567 = vunpack.c.h.b16 %v1948
    %v2568 = vunpack.c.l.b16 %v1949
    %v2569 = vunpack.c.h.b16 %v1949
    %v2570 = vunpack.c.l.b16 %v1950
    %v2571 = vunpack.c.h.b16 %v1950
    %v2572 = vunpack.c.l.b16 %v1951
    %v2573 = vunpack.c.h.b16 %v1951
    %v2574 = vunpack.c.l.b16 %v1952
    %v2575 = vunpack.c.h.b16 %v1952
    %v2576 = vunpack.c.l.b16 %v1953
    %v2577 = vunpack.c.h.b16 %v1953
    %v2578 = vunpack.c.l.b16 %v1954
    %v2579 = vunpack.c.h.b16 %v1954
    %v2580 = vunpack.c.l.b16 %v1955
    %v2581 = vunpack.c.h.b16 %v1955
    %v2582 = vunpack.c.l.b16 %v1956
    %v2583 = vunpack.c.h.b16 %v1956
    %v2584 = vunpack.c.l.b16 %v1957
    %v2585 = vunpack.c.h.b16 %v1957
    %v2586 = vunpack.c.l.b16 %v1958
    %v2587 = vunpack.c.h.b16 %v1958
    %v2588 = vunpack.c.l.b16 %v1959
    %v2589 = vunpack.c.h.b16 %v1959
    %v2590 = vunpack.c.l.b16 %v1960
    %v2591 = vunpack.c.h.b16 %v1960
    %v2592 = vunpack.c.l.b16 %v1961
    %v2593 = vunpack.c.h.b16 %v1961
    %v2594 = vunpack.c.l.b16 %v1962
    %v2595 = vunpack.c.h.b16 %v1962
    %v2596 = vunpack.c.l.b16 %v1963
    %v2597 = vunpack.c.h.b16 %v1963
    %v2598 = vunpack.c.l.b16 %v1964
    %v2599 = vunpack.c.h.b16 %v1964
    %v2600 = vunpack.c.l.b16 %v1965
    %v2601 = vunpack.c.h.b16 %v1965
    %v2602 = vunpack.c.l.b16 %v1966
    %v2603 = vunpack.c.h.b16 %v1966
    %v2604 = vunpack.c.l.b16 %v1967
    %v2605 = vunpack.c.h.b16 %v1967
    %v2606 = vunpack.c.l.b16 %v1968
    %v2607 = vunpack.c.h.b16 %v1968
    %v2608 = vunpack.c.l.b16 %v1969
    %v2609 = vunpack.c.h.b16 %v1969
    %v2610 = vunpack.c.l.b16 %v1970
    %v2611 = vunpack.c.h.b16 %v1970
    %v2612 = vunpack.c.l.b16 %v1971
    %v2613 = vunpack.c.h.b16 %v1971
    %v2614 = vpack.c.b16 %v2232, %v2230
    %v2615 = vpack.c.b16 %v2233, %v2231
    %v2616 = vpack.c.b16 %v2236, %v2234
    %v2617 = vpack.c.b16 %v2237, %v2235
    %v2618 = vpack.c.b16 %v2240, %v2238
    %v2619 = vpack.c.b16 %v2241, %v2239
    %v2620 = vpack.c.b16 %v2244, %v2242
    %v2621 = vpack.c.b16 %v2245, %v2243
    %v2622 = vpack.c.b16 %v2248, %v2246
    %v2623 = vpack.c.b16 %v2249, %v2247
    %v2624 = vpack.c.b16 %v2252, %v2250
    %v2625 = vpack.c.b16 %v2253, %v2251
    %v2626 = vpack.c.b16 %v2256, %v2254
    %v2627 = vpack.c.b16 %v2257, %v2255
    %v2628 = vpack.c.b16 %v2260, %v2258
    %v2629 = vpack.c.b16 %v2261, %v2259
    %v2630 = vpack.c.b16 %v2264, %v2262
    %v2631 = vpack.c.b16 %v2265, %v2263
    %v2632 = vpack.c.b16 %v2268, %v2266
    %v2633 = vpack.c.b16 %v2269, %v2267
    %v2634 = vpack.c.b16 %v2272, %v2270
    %v2635 = vpack.c.b16 %v2273, %v2271
    %v2636 = vpack.c.b16 %v2276, %v2274
    %v2637 = vpack.c.b16 %v2277, %v2275
    %v2638 = vpack.c.b16 %v2280, %v2278
    %v2639 = vpack.c.b16 %v2281, %v2279
    %v2640 = vpack.c.b16 %v2284, %v2282
    %v2641 = vpack.c.b16 %v2285, %v2283
    %v2642 = vpack.c.b16 %v2288, %v2286
    %v2643 = vpack.c.b16 %v2289, %v2287
    %v2644 = vpack.c.b16 %v2292, %v2290
    %v2645 = vpack.c.b16 %v2293, %v2291
    %v2646 = vpack.c.b16 %v2296, %v2294
    %v2647 = vpack.c.b16 %v2297, %v2295
    %v2648 = vpack.c.b16 %v2300, %v2298
    %v2649 = vpack.c.b16 %v2301, %v2299
    %v2650 = vpack.c.b16 %v2304, %v2302
    %v2651 = vpack.c.b16 %v2305, %v2303
    %v2652 = vpack.c.b16 %v2308, %v2306
    %v2653 = vpack.c.b16 %v2309, %v2307
    %v2654 = vpack.c.b16 %v2312, %v2310
    %v2655 = vpack.c.b16 %v2313, %v2311
    %v2656 = vpack.c.b16 %v2316, %v2314
    %v2657 = vpack.c.b16 %v2317, %v2315
    %v2658 = vpack.c.b16 %v2320, %v2318
    %v2659 = vpack.c.b16 %v2321, %v2319
    %v2660 = vpack.c.b16 %v2324, %v2322
    %v2661 = vpack.c.b16 %v2325, %v2323
    %v2662 = vpack.c.b16 %v2328, %v2326
    %v2663 = vpack.c.b16 %v2329, %v2327
    %v2664 = vpack.c.b16 %v2332, %v2330
    %v2665 = vpack.c.b16 %v2333, %v2331
    %v2666 = vpack.c.b16 %v2336, %v2334
    %v2667 = vpack.c.b16 %v2337, %v2335
    %v2668 = vpack.c.b16 %v2340, %v2338
    %v2669 = vpack.c.b16 %v2341, %v2339
    %v2670 = vpack.c.b16 %v2344, %v2342
    %v2671 = vpack.c.b16 %v2345, %v2343
    %v2672 = vpack.c.b16 %v2348, %v2346
    %v2673 = vpack.c.b16 %v2349, %v2347
    %v2674 = vpack.c.b16 %v2352, %v2350
    %v2675 = vpack.c.b16 %v2353, %v2351
    %v2676 = vpack.c.b16 %v2356, %v2354
    %v2677 = vpack.c.b16 %v2357, %v2355
    %v2678 = vpack.c.b16 %v2360, %v2358
    %v2679 = vpack.c.b16 %v2361, %v2359
    %v2680 = vpack.c.b16 %v2364, %v2362
    %v2681 = vpack.c.b16 %v2365, %v2363
    %v2682 = vpack.c.b16 %v2368, %v2366
    %v2683 = vpack.c.b16 %v2369, %v2367
    %v2684 = vpack.c.b16 %v2372, %v2370
    %v2685 = vpack.c.b16 %v2373, %v2371
    %v2686 = vpack.c.b16 %v2376, %v2374
    %v2687 = vpack.c.b16 %v2377, %v2375
    %v2688 = vpack.c.b16 %v2380, %v2378
    %v2689 = vpack.c.b16 %v2381, %v2379
    %v2690 = vpack.c.b16 %v2384, %v2382
    %v2691 = vpack.c.b16 %v2385, %v2383
    %v2692 = vpack.c.b16 %v2388, %v2386
    %v2693 = vpack.c.b16 %v2389, %v2387
    %v2694 = vpack.c.b16 %v2392, %v2390
    %v2695 = vpack.c.b16 %v2393, %v2391
    %v2696 = vpack.c.b16 %v2396, %v2394
    %v2697 = vpack.c.b16 %v2397, %v2395
    %v2698 = vpack.c.b16 %v2400, %v2398
    %v2699 = vpack.c.b16 %v2401, %v2399
    %v2700 = vpack.c.b16 %v2404, %v2402
    %v2701 = vpack.c.b16 %v2405, %v2403
    %v2702 = vpack.c.b16 %v2408, %v2406
    %v2703 = vpack.c.b16 %v2409, %v2407
    %v2704 = vpack.c.b16 %v2412, %v2410
    %v2705 = vpack.c.b16 %v2413, %v2411
    %v2706 = vpack.c.b16 %v2416, %v2414
    %v2707 = vpack.c.b16 %v2417, %v2415
    %v2708 = vpack.c.b16 %v2420, %v2418
    %v2709 = vpack.c.b16 %v2421, %v2419
    %v2710 = vpack.c.b16 %v2424, %v2422
    %v2711 = vpack.c.b16 %v2425, %v2423
    %v2712 = vpack.c.b16 %v2428, %v2426
    %v2713 = vpack.c.b16 %v2429, %v2427
    %v2714 = vpack.c.b16 %v2432, %v2430
    %v2715 = vpack.c.b16 %v2433, %v2431
    %v2716 = vpack.c.b16 %v2436, %v2434
    %v2717 = vpack.c.b16 %v2437, %v2435
    %v2718 = vpack.c.b16 %v2440, %v2438
    %v2719 = vpack.c.b16 %v2441, %v2439
    %v2720 = vpack.c.b16 %v2444, %v2442
    %v2721 = vpack.c.b16 %v2445, %v2443
    %v2722 = vpack.c.b16 %v2448, %v2446
    %v2723 = vpack.c.b16 %v2449, %v2447
    %v2724 = vpack.c.b16 %v2452, %v2450
    %v2725 = vpack.c.b16 %v2453, %v2451
    %v2726 = vpack.c.b16 %v2456, %v2454
    %v2727 = vpack.c.b16 %v2457, %v2455
    %v2728 = vpack.c.b16 %v2460, %v2458
    %v2729 = vpack.c.b16 %v2461, %v2459
    %v2730 = vpack.c.b16 %v2464, %v2462
    %v2731 = vpack.c.b16 %v2465, %v2463
    %v2732 = vpack.c.b16 %v2468, %v2466
    %v2733 = vpack.c.b16 %v2469, %v2467
    %v2734 = vpack.c.b16 %v2472, %v2470
    %v2735 = vpack.c.b16 %v2473, %v2471
    %v2736 = vpack.c.b16 %v2476, %v2474
    %v2737 = vpack.c.b16 %v2477, %v2475
    %v2738 = vpack.c.b16 %v2480, %v2478
    %v2739 = vpack.c.b16 %v2481, %v2479
    %v2740 = vpack.c.b16 %v2484, %v2482
    %v2741 = vpack.c.b16 %v2485, %v2483
    %v2742 = vpack.c.b16 %v2488, %v2486
    %v2743 = vpack.c.b16 %v2489, %v2487
    %v2744 = vpack.c.b16 %v2492, %v2490
    %v2745 = vpack.c.b16 %v2493, %v2491
    %v2746 = vpack.c.b16 %v2496, %v2494
    %v2747 = vpack.c.b16 %v2497, %v2495
    %v2748 = vpack.c.b16 %v2500, %v2498
    %v2749 = vpack.c.b16 %v2501, %v2499
    %v2750 = vpack.c.b16 %v2504, %v2502
    %v2751 = vpack.c.b16 %v2505, %v2503
    %v2752 = vpack.c.b16 %v2508, %v2506
    %v2753 = vpack.c.b16 %v2509, %v2507
    %v2754 = vpack.c.b16 %v2512, %v2510
    %v2755 = vpack.c.b16 %v2513, %v2511
    %v2756 = vpack.c.b16 %v2516, %v2514
    %v2757 = vpack.c.b16 %v2517, %v2515
    %v2758 = vpack.c.b16 %v2520, %v2518
    %v2759 = vpack.c.b16 %v2521, %v2519
    %v2760 = vpack.c.b16 %v2524, %v2522
    %v2761 = vpack.c.b16 %v2525, %v2523
    %v2762 = vpack.c.b16 %v2528, %v2526
    %v2763 = vpack.c.b16 %v2529, %v2527
    %v2764 = vpack.c.b16 %v2532, %v2530
    %v2765 = vpack.c.b16 %v2533, %v2531
    %v2766 = vpack.c.b16 %v2536, %v2534
    %v2767 = vpack.c.b16 %v2537, %v2535
    %v2768 = vpack.c.b16 %v2540, %v2538
    %v2769 = vpack.c.b16 %v2541, %v2539
    %v2770 = vpack.c.b16 %v2544, %v2542
    %v2771 = vpack.c.b16 %v2545, %v2543
    %v2772 = vpack.c.b16 %v2548, %v2546
    %v2773 = vpack.c.b16 %v2549, %v2547
    %v2774 = vpack.c.b16 %v2552, %v2550
    %v2775 = vpack.c.b16 %v2553, %v2551
    %v2776 = vpack.c.b16 %v2556, %v2554
    %v2777 = vpack.c.b16 %v2557, %v2555
    %v2778 = vpack.c.b16 %v2560, %v2558
    %v2779 = vpack.c.b16 %v2561, %v2559
    %v2780 = vpack.c.b16 %v2564, %v2562
    %v2781 = vpack.c.b16 %v2565, %v2563
    %v2782 = vpack.c.b16 %v2568, %v2566
    %v2783 = vpack.c.b16 %v2569, %v2567
    %v2784 = vpack.c.b16 %v2572, %v2570
    %v2785 = vpack.c.b16 %v2573, %v2571
    %v2786 = vpack.c.b16 %v2576, %v2574
    %v2787 = vpack.c.b16 %v2577, %v2575
    %v2788 = vpack.c.b16 %v2580, %v2578
    %v2789 = vpack.c.b16 %v2581, %v2579
    %v2790 = vpack.c.b16 %v2584, %v2582
    %v2791 = vpack.c.b16 %v2585, %v2583
    %v2792 = vpack.c.b16 %v2588, %v2586
    %v2793 = vpack.c.b16 %v2589, %v2587
    %v2794 = vpack.c.b16 %v2592, %v2590
    %v2795 = vpack.c.b16 %v2593, %v2591
    %v2796 = vpack.c.b16 %v2596, %v2594
    %v2797 = vpack.c.b16 %v2597, %v2595
    %v2798 = vpack.c.b16 %v2600, %v2598
    %v2799 = vpack.c.b16 %v2601, %v2599
    %v2800 = vpack.c.b16 %v2604, %v2602
    %v2801 = vpack.c.b16 %v2605, %v2603
    %v2802 = vpack.c.b16 %v2608, %v2606
    %v2803 = vpack.c.b16 %v2609, %v2607
    %v2804 = vpack.c.b16 %v2612, %v2610
    %v2805 = vpack.c.b16 %v2613, %v2611
    %2998 = vmatprep.subr.bf16.mxu0 %v2629
    %2999 = vmatpush1.bf16.msra.mxu0 %v2628
    %3000 = vmatprep.subr.bf16.mxu0 %v2627
    %3001 = vmatpush1.bf16.msra.mxu0 %v2626
    %3002 = vmatprep.subr.bf16.mxu0 %v2625
    %3003 = vmatpush1.bf16.msra.mxu0 %v2624
    %3004 = vmatprep.subr.bf16.mxu0 %v2623
    %3005 = vmatpush1.bf16.msra.mxu0 %v2622
    %3006 = vmatprep.subr.bf16.mxu0 %v2621
    %3007 = vmatpush1.bf16.msra.mxu0 %v2620
    %3008 = vmatprep.subr.bf16.mxu0 %v2619
    %3009 = vmatpush1.bf16.msra.mxu0 %v2618
    %3010 = vmatprep.subr.bf16.mxu0 %v2617
    %3011 = vmatpush1.bf16.msra.mxu0 %v2616
    %3012 = vmatprep.subr.bf16.mxu0 %v2615
    %3013 = vmatpush1.bf16.msra.mxu0 %v2614
    %3014 = vmatprep.subr.bf16.mxu0 %v2645
    %3015 = vmatpush2.bf16.msra.mxu0 %v2644
    %3016 = vmatprep.subr.bf16.mxu0 %v2643
    %3017 = vmatpush2.bf16.msra.mxu0 %v2642
    %3018 = vmatprep.subr.bf16.mxu0 %v2641
    %3019 = vmatpush2.bf16.msra.mxu0 %v2640
    %3020 = vmatprep.subr.bf16.mxu0 %v2639
    %3021 = vmatpush2.bf16.msra.mxu0 %v2638
    %3022 = vmatprep.subr.bf16.mxu0 %v2637
    %3023 = vmatpush2.bf16.msra.mxu0 %v2636
    %3024 = vmatprep.subr.bf16.mxu0 %v2635
    %3025 = vmatpush2.bf16.msra.mxu0 %v2634
    %3026 = vmatprep.subr.bf16.mxu0 %v2633
    %3027 = vmatpush2.bf16.msra.mxu0 %v2632
    %3028 = vmatprep.subr.bf16.mxu0 %v2631
    %3029 = vmatpush2.bf16.msra.mxu0 %v2630
    %3030 = vmatprep.mubr.bf16.mxu0 %v1990
    %3031 = vmatmul.mubr.bf16.gmra.mxu0 %v1982
    %v3032 = vpop.f32.mrf.mxu0
    %v3033 = vadd.f32 0.0, %v3032
    %v3034 = vpop.f32.mrf.mxu0
    %v3035 = vadd.f32 0.0, %v3034
    %v3036 = vpop.f32.mrf.mxu0
    %v3037 = vpop.f32.mrf.mxu0
    %3038 = vdwg.mxu0
    %3039 = vmatprep.subr.bf16.mxu0 %v2661
    %3040 = vmatpush1.bf16.msra.mxu0 %v2660
    %3041 = vmatprep.subr.bf16.mxu0 %v2659
    %3042 = vmatpush1.bf16.msra.mxu0 %v2658
    %3043 = vmatprep.subr.bf16.mxu0 %v2657
    %3044 = vmatpush1.bf16.msra.mxu0 %v2656
    %3045 = vmatprep.subr.bf16.mxu0 %v2655
    %3046 = vmatpush1.bf16.msra.mxu0 %v2654
    %3047 = vmatprep.subr.bf16.mxu0 %v2653
    %3048 = vmatpush1.bf16.msra.mxu0 %v2652
    %3049 = vmatprep.subr.bf16.mxu0 %v2651
    %3050 = vmatpush1.bf16.msra.mxu0 %v2650
    %3051 = vmatprep.subr.bf16.mxu0 %v2649
    %3052 = vmatpush1.bf16.msra.mxu0 %v2648
    %3053 = vmatprep.subr.bf16.mxu0 %v2647
    %3054 = vmatpush1.bf16.msra.mxu0 %v2646
    %3055 = vmatprep.subr.bf16.mxu0 %v2677
    %3056 = vmatpush2.bf16.msra.mxu0 %v2676
    %3057 = vmatprep.subr.bf16.mxu0 %v2675
    %3058 = vmatpush2.bf16.msra.mxu0 %v2674
    %3059 = vmatprep.subr.bf16.mxu0 %v2673
    %3060 = vmatpush2.bf16.msra.mxu0 %v2672
    %3061 = vmatprep.subr.bf16.mxu0 %v2671
    %3062 = vmatpush2.bf16.msra.mxu0 %v2670
    %3063 = vmatprep.subr.bf16.mxu0 %v2669
    %3064 = vmatpush2.bf16.msra.mxu0 %v2668
    %3065 = vmatprep.subr.bf16.mxu0 %v2667
    %3066 = vmatpush2.bf16.msra.mxu0 %v2666
    %3067 = vmatprep.subr.bf16.mxu0 %v2665
    %3068 = vmatpush2.bf16.msra.mxu0 %v2664
    %3069 = vmatprep.subr.bf16.mxu0 %v2663
    %3070 = vmatpush2.bf16.msra.mxu0 %v2662
    %3071 = vmatprep.mubr.bf16.mxu0 %v1991
    %3072 = vmatmul.mubr.bf16.gmra.mxu0 %v1989
    %v3073 = vpop.f32.mrf.mxu0
    %v3074 = vadd.f32 %v3033, %v3073
    %v3075 = vpop.f32.mrf.mxu0
    %v3076 = vadd.f32 %v3035, %v3075
    %v3077 = vpop.f32.mrf.mxu0
    %v3078 = vpop.f32.mrf.mxu0
    %3079 = vdwg.mxu0
    %3080 = vmatprep.subr.bf16.mxu0 %v2693
    %3081 = vmatpush1.bf16.msra.mxu0 %v2692
    %3082 = vmatprep.subr.bf16.mxu0 %v2691
    %3083 = vmatpush1.bf16.msra.mxu0 %v2690
    %3084 = vmatprep.subr.bf16.mxu0 %v2689
    %3085 = vmatpush1.bf16.msra.mxu0 %v2688
    %3086 = vmatprep.subr.bf16.mxu0 %v2687
    %3087 = vmatpush1.bf16.msra.mxu0 %v2686
    %3088 = vmatprep.subr.bf16.mxu0 %v2685
    %3089 = vmatpush1.bf16.msra.mxu0 %v2684
    %3090 = vmatprep.subr.bf16.mxu0 %v2683
    %3091 = vmatpush1.bf16.msra.mxu0 %v2682
    %3092 = vmatprep.subr.bf16.mxu0 %v2681
    %3093 = vmatpush1.bf16.msra.mxu0 %v2680
    %3094 = vmatprep.subr.bf16.mxu0 %v2679
    %3095 = vmatpush1.bf16.msra.mxu0 %v2678
    %3096 = vmatprep.subr.bf16.mxu0 %v2709
    %3097 = vmatpush2.bf16.msra.mxu0 %v2708
    %3098 = vmatprep.subr.bf16.mxu0 %v2707
    %3099 = vmatpush2.bf16.msra.mxu0 %v2706
    %3100 = vmatprep.subr.bf16.mxu0 %v2705
    %3101 = vmatpush2.bf16.msra.mxu0 %v2704
    %3102 = vmatprep.subr.bf16.mxu0 %v2703
    %3103 = vmatpush2.bf16.msra.mxu0 %v2702
    %3104 = vmatprep.subr.bf16.mxu0 %v2701
    %3105 = vmatpush2.bf16.msra.mxu0 %v2700
    %3106 = vmatprep.subr.bf16.mxu0 %v2699
    %3107 = vmatpush2.bf16.msra.mxu0 %v2698
    %3108 = vmatprep.subr.bf16.mxu0 %v2697
    %3109 = vmatpush2.bf16.msra.mxu0 %v2696
    %3110 = vmatprep.subr.bf16.mxu0 %v2695
    %3111 = vmatpush2.bf16.msra.mxu0 %v2694
    %3112 = vmatprep.mubr.bf16.mxu0 %v2007
    %3113 = vmatmul.mubr.bf16.gmra.mxu0 %v1999
    %v3114 = vpop.f32.mrf.mxu0
    %v3115 = vadd.f32 %v3074, %v3114
    %v3116 = vpop.f32.mrf.mxu0
    %v3117 = vadd.f32 %v3076, %v3116
    %v3118 = vpop.f32.mrf.mxu0
    %v3119 = vpop.f32.mrf.mxu0
    %3120 = vdwg.mxu0
    %3121 = vmatprep.subr.bf16.mxu0 %v2725
    %3122 = vmatpush1.bf16.msra.mxu0 %v2724
    %3123 = vmatprep.subr.bf16.mxu0 %v2723
    %3124 = vmatpush1.bf16.msra.mxu0 %v2722
    %3125 = vmatprep.subr.bf16.mxu0 %v2721
    %3126 = vmatpush1.bf16.msra.mxu0 %v2720
    %3127 = vmatprep.subr.bf16.mxu0 %v2719
    %3128 = vmatpush1.bf16.msra.mxu0 %v2718
    %3129 = vmatprep.subr.bf16.mxu0 %v2717
    %3130 = vmatpush1.bf16.msra.mxu0 %v2716
    %3131 = vmatprep.subr.bf16.mxu0 %v2715
    %3132 = vmatpush1.bf16.msra.mxu0 %v2714
    %3133 = vmatprep.subr.bf16.mxu0 %v2713
    %3134 = vmatpush1.bf16.msra.mxu0 %v2712
    %3135 = vmatprep.subr.bf16.mxu0 %v2711
    %3136 = vmatpush1.bf16.msra.mxu0 %v2710
    %3137 = vmatprep.subr.bf16.mxu0 %v2741
    %3138 = vmatpush2.bf16.msra.mxu0 %v2740
    %3139 = vmatprep.subr.bf16.mxu0 %v2739
    %3140 = vmatpush2.bf16.msra.mxu0 %v2738
    %3141 = vmatprep.subr.bf16.mxu0 %v2737
    %3142 = vmatpush2.bf16.msra.mxu0 %v2736
    %3143 = vmatprep.subr.bf16.mxu0 %v2735
    %3144 = vmatpush2.bf16.msra.mxu0 %v2734
    %3145 = vmatprep.subr.bf16.mxu0 %v2733
    %3146 = vmatpush2.bf16.msra.mxu0 %v2732
    %3147 = vmatprep.subr.bf16.mxu0 %v2731
    %3148 = vmatpush2.bf16.msra.mxu0 %v2730
    %3149 = vmatprep.subr.bf16.mxu0 %v2729
    %3150 = vmatpush2.bf16.msra.mxu0 %v2728
    %3151 = vmatprep.subr.bf16.mxu0 %v2727
    %3152 = vmatpush2.bf16.msra.mxu0 %v2726
    %3153 = vmatprep.mubr.bf16.mxu0 %v2008
    %3154 = vmatmul.mubr.bf16.gmra.mxu0 %v2006
    %v3155 = vpop.f32.mrf.mxu0
    %v3156 = vadd.f32 %v3115, %v3155
    %v3157 = vpop.f32.mrf.mxu0
    %v3158 = vadd.f32 %v3117, %v3157
    %v3159 = vpop.f32.mrf.mxu0
    %v3160 = vpop.f32.mrf.mxu0
    %3161 = vdwg.mxu0
    %3162 = vmatprep.subr.bf16.mxu0 %v2757
    %3163 = vmatpush1.bf16.msra.mxu0 %v2756
    %3164 = vmatprep.subr.bf16.mxu0 %v2755
    %3165 = vmatpush1.bf16.msra.mxu0 %v2754
    %3166 = vmatprep.subr.bf16.mxu0 %v2753
    %3167 = vmatpush1.bf16.msra.mxu0 %v2752
    %3168 = vmatprep.subr.bf16.mxu0 %v2751
    %3169 = vmatpush1.bf16.msra.mxu0 %v2750
    %3170 = vmatprep.subr.bf16.mxu0 %v2749
    %3171 = vmatpush1.bf16.msra.mxu0 %v2748
    %3172 = vmatprep.subr.bf16.mxu0 %v2747
    %3173 = vmatpush1.bf16.msra.mxu0 %v2746
    %3174 = vmatprep.subr.bf16.mxu0 %v2745
    %3175 = vmatpush1.bf16.msra.mxu0 %v2744
    %3176 = vmatprep.subr.bf16.mxu0 %v2743
    %3177 = vmatpush1.bf16.msra.mxu0 %v2742
    %3178 = vmatprep.subr.bf16.mxu0 %v2773
    %3179 = vmatpush2.bf16.msra.mxu0 %v2772
    %3180 = vmatprep.subr.bf16.mxu0 %v2771
    %3181 = vmatpush2.bf16.msra.mxu0 %v2770
    %3182 = vmatprep.subr.bf16.mxu0 %v2769
    %3183 = vmatpush2.bf16.msra.mxu0 %v2768
    %3184 = vmatprep.subr.bf16.mxu0 %v2767
    %3185 = vmatpush2.bf16.msra.mxu0 %v2766
    %3186 = vmatprep.subr.bf16.mxu0 %v2765
    %3187 = vmatpush2.bf16.msra.mxu0 %v2764
    %3188 = vmatprep.subr.bf16.mxu0 %v2763
    %3189 = vmatpush2.bf16.msra.mxu0 %v2762
    %3190 = vmatprep.subr.bf16.mxu0 %v2761
    %3191 = vmatpush2.bf16.msra.mxu0 %v2760
    %3192 = vmatprep.subr.bf16.mxu0 %v2759
    %3193 = vmatpush2.bf16.msra.mxu0 %v2758
    %3194 = vmatprep.mubr.bf16.mxu0 %v2024
    %3195 = vmatmul.mubr.bf16.gmra.mxu0 %v2016
    %v3196 = vpop.f32.mrf.mxu0
    %v3197 = vadd.f32 %v3156, %v3196
    %v3198 = vpop.f32.mrf.mxu0
    %v3199 = vadd.f32 %v3158, %v3198
    %v3200 = vpop.f32.mrf.mxu0
    %v3201 = vpop.f32.mrf.mxu0
    %3202 = vdwg.mxu0
    %3203 = vmatprep.subr.bf16.mxu0 %v2789
    %3204 = vmatpush1.bf16.msra.mxu0 %v2788
    %3205 = vmatprep.subr.bf16.mxu0 %v2787
    %3206 = vmatpush1.bf16.msra.mxu0 %v2786
    %3207 = vmatprep.subr.bf16.mxu0 %v2785
    %3208 = vmatpush1.bf16.msra.mxu0 %v2784
    %3209 = vmatprep.subr.bf16.mxu0 %v2783
    %3210 = vmatpush1.bf16.msra.mxu0 %v2782
    %3211 = vmatprep.subr.bf16.mxu0 %v2781
    %3212 = vmatpush1.bf16.msra.mxu0 %v2780
    %3213 = vmatprep.subr.bf16.mxu0 %v2779
    %3214 = vmatpush1.bf16.msra.mxu0 %v2778
    %3215 = vmatprep.subr.bf16.mxu0 %v2777
    %3216 = vmatpush1.bf16.msra.mxu0 %v2776
    %3217 = vmatprep.subr.bf16.mxu0 %v2775
    %3218 = vmatpush1.bf16.msra.mxu0 %v2774
    %3219 = vmatprep.subr.bf16.mxu0 %v2805
    %3220 = vmatpush2.bf16.msra.mxu0 %v2804
    %3221 = vmatprep.subr.bf16.mxu0 %v2803
    %3222 = vmatpush2.bf16.msra.mxu0 %v2802
    %3223 = vmatprep.subr.bf16.mxu0 %v2801
    %3224 = vmatpush2.bf16.msra.mxu0 %v2800
    %3225 = vmatprep.subr.bf16.mxu0 %v2799
    %3226 = vmatpush2.bf16.msra.mxu0 %v2798
    %3227 = vmatprep.subr.bf16.mxu0 %v2797
    %3228 = vmatpush2.bf16.msra.mxu0 %v2796
    %3229 = vmatprep.subr.bf16.mxu0 %v2795
    %3230 = vmatpush2.bf16.msra.mxu0 %v2794
    %3231 = vmatprep.subr.bf16.mxu0 %v2793
    %3232 = vmatpush2.bf16.msra.mxu0 %v2792
    %3233 = vmatprep.subr.bf16.mxu0 %v2791
    %3234 = vmatpush2.bf16.msra.mxu0 %v2790
    %3235 = vmatprep.mubr.bf16.mxu0 %v2025
    %3236 = vmatmul.mubr.bf16.gmra.mxu0 %v2023
    %v3237 = vpop.f32.mrf.mxu0
    %v3238 = vadd.f32 %v3197, %v3237
    %v3239 = vpop.f32.mrf.mxu0
    %v3240 = vadd.f32 %v3199, %v3239
    %v3241 = vpop.f32.mrf.mxu0
    %v3242 = vpop.f32.mrf.mxu0
    %3243 = vdwg.mxu0
    %vm3244 = vcmask 1043456
    %v3245 = vsel %vm3244, %v3238, 0.0
    %v3246 = vrot.slane %v3245, 4
    %v3247 = vadd.f32 %v3245, %v3246
    %v3248 = vrot.slane %v3247, 2
    %v3249 = vadd.f32 %v3247, %v3248
    %v3250 = vrot.slane %v3249, 1
    %v3251 = vadd.f32 %v3249, %v3250
    %v3252 = vsel %vm3244, %v3240, 0.0
    %v3253 = vrot.slane %v3252, 4
    %v3254 = vadd.f32 %v3252, %v3253
    %v3255 = vrot.slane %v3254, 2
    %v3256 = vadd.f32 %v3254, %v3255
    %v3257 = vrot.slane %v3256, 1
    %v3258 = vadd.f32 %v3256, %v3257
    %v3259 = vrcp.pop 4.0
    %v3260 = vmul.f32 %v3251, %v3259
    %v3261 = vmul.f32 %v3258, %v3259
    %v3262 = vmul.f32 %v3238, %v3238
    %v3263 = vmul.f32 %v3240, %v3240
    %v3264 = vsel %vm3244, %v3262, 0.0
    %v3265 = vrot.slane %v3264, 4
    %v3266 = vadd.f32 %v3264, %v3265
    %v3267 = vrot.slane %v3266, 2
    %v3268 = vadd.f32 %v3266, %v3267
    %v3269 = vrot.slane %v3268, 1
    %v3270 = vadd.f32 %v3268, %v3269
    %v3271 = vsel %vm3244, %v3263, 0.0
    %v3272 = vrot.slane %v3271, 4
    %v3273 = vadd.f32 %v3271, %v3272
    %v3274 = vrot.slane %v3273, 2
    %v3275 = vadd.f32 %v3273, %v3274
    %v3276 = vrot.slane %v3275, 1
    %v3277 = vadd.f32 %v3275, %v3276
    %v3278 = vmul.f32 %v3270, %v3259
    %v3279 = vmul.f32 %v3277, %v3259
    %v3280 = vmul.f32 %v3260, %v3260
    %v3281 = vmul.f32 %v3261, %v3261
    %v3282 = vsub.f32 %v3278, %v3280
    %v3283 = vsub.f32 %v3279, %v3281
    %v3284 = vmax.f32 %v3282, 0.0
    %v3285 = vmax.f32 %v3283, 0.0
    %v3286 = vld [vmem:[%s7] sm:$0x3]
    %v3287 = vadd.f32 %v3284, 1e-05
    %v3288 = vadd.f32 %v3285, 1e-05
    %v3289 = vrsqrt.pop %v3287
    %v3290 = vrsqrt.pop %v3288
    %v3293 = vcombine.low %v3289, %v3290
    %v3295 = vunpack.c.l.s4 1966171168
    %v3296 = vunpack.c.0.s8 %v3295
    %v3297 = vlaneseq
    %v3298 = vshrl.u32 %v3297, 7
    %v3299 = vsub.s32 %v3296, %v3298
    %v3300 = vrot.slane %v3293, %v3299
    %v3302 = vunpack.c.l.s4 1966171168
    %v3303 = vunpack.c.0.s8 %v3302
    %v3304 = vlaneseq
    %v3305 = vshrl.u32 %v3304, 7
    %v3306 = vsub.s32 %v3303, %v3305
    %v3307 = vrot.slane %v3300, %v3306
    %v3309 = vmul.f32 %v3286, %v3307
    %v3310 = vld [vmem:[%s8] sm:$0x3]
    %v3312 = vlaneseq
    %v3313 = vshrl.u32 %v3312, 7
    %v3314 = vsub.s32 0, %v3313
    %v3315 = vrot.slane %v3309, %v3314
    %v3316 = vlaneseq
    %v3317 = vshrl.u32 %v3316, 7
    %v3318 = vsub.s32 1, %v3317
    %v3319 = vrot.slane %v3309, %v3318
    %v3322 = vmul.f32 %v3260, %v3315
    %v3323 = vmul.f32 %v3261, %v3319
    %v3326 = vcombine.low %v3322, %v3323
    %v3328 = vunpack.c.l.s4 1966171168
    %v3329 = vunpack.c.0.s8 %v3328
    %v3330 = vlaneseq
    %v3331 = vshrl.u32 %v3330, 7
    %v3332 = vsub.s32 %v3329, %v3331
    %v3333 = vrot.slane %v3326, %v3332
    %v3335 = vunpack.c.l.s4 1966171168
    %v3336 = vunpack.c.0.s8 %v3335
    %v3337 = vlaneseq
    %v3338 = vshrl.u32 %v3337, 7
    %v3339 = vsub.s32 %v3336, %v3338
    %v3340 = vrot.slane %v3333, %v3339
    %v3342 = vsub.f32 %v3310, %v3340
    %v3343 = vmul.f32 %v3238, %v3315
    %v3344 = vmul.f32 %v3240, %v3319
    %v3346 = vlaneseq
    %v3347 = vshrl.u32 %v3346, 7
    %v3348 = vsub.s32 0, %v3347
    %v3349 = vrot.slane %v3342, %v3348
    %v3350 = vlaneseq
    %v3351 = vshrl.u32 %v3350, 7
    %v3352 = vsub.s32 1, %v3351
    %v3353 = vrot.slane %v3342, %v3352
    %v3356 = vadd.f32 %v3343, %v3349
    %v3357 = vadd.f32 %v3344, %v3353
    %vm3358 = vcmp.ge.f32.partialorder %v3356, 0.0
    %vm3359 = vcmp.ge.f32.partialorder %v3357, 0.0
    %v3360 = vmul.f32 %v3356, 0.01
    %v3361 = vmul.f32 %v3357, 0.01
    %v3362 = vsel %vm3358, %v3356, %v3360
    %v3363 = vsel %vm3359, %v3357, %v3361
    %v3364 = vld [vmem:[%s9] sm:$0x3]
    %vm3365 = vcmask 31744
    %v3367 = vsel %vm3365, %v3364, 0
    %v3370 = vsel %vm3244, %v3362, 0
    %v3373 = vsel %vm3244, %v3363, 0
    %3375 = vmatprep.subr.mxu0 0.0
    %3376 = vmatpush1.msra.mxu0 0.0
    %3377 = vmatprep.subr.mxu0 0.0
    %3378 = vmatpush1.msra.mxu0 0.0
    %3379 = vmatprep.subr.mxu0 0.0
    %3380 = vmatpush1.msra.mxu0 0.0
    %3381 = vmatprep.subr.mxu0 0.0
    %3382 = vmatpush1.msra.mxu0 0.0
    %3383 = vmatprep.subr.mxu0 0.0
    %3384 = vmatpush1.msra.mxu0 0.0
    %3385 = vmatprep.subr.mxu0 0.0
    %3386 = vmatpush1.msra.mxu0 0.0
    %3387 = vmatprep.subr.mxu0 0.0
    %3388 = vmatpush1.msra.mxu0 0.0
    %3389 = vmatprep.subr.mxu0 0.0
    %3390 = vmatpush1.msra.mxu0 0.0
    %3391 = vmatprep.subr.mxu0 0.0
    %3392 = vmatpush1.msra.mxu0 0.0
    %3393 = vmatprep.subr.mxu0 0.0
    %3394 = vmatpush1.msra.mxu0 0.0
    %3395 = vmatprep.subr.mxu0 0.0
    %3396 = vmatpush1.msra.mxu0 0.0
    %3397 = vmatprep.subr.mxu0 0.0
    %3398 = vmatpush1.msra.mxu0 0.0
    %3399 = vmatprep.subr.mxu0 0.0
    %3400 = vmatpush1.msra.mxu0 0.0
    %3401 = vmatprep.subr.mxu0 0.0
    %3402 = vmatpush1.msra.mxu0 0.0
    %3403 = vmatprep.subr.mxu0 0.0
    %3404 = vmatpush1.msra.mxu0 0.0
    %3405 = vmatprep.subr.mxu0 %v3373
    %3406 = vmatpush1.msra.mxu0 %v3370
    %3407 = vmatprep.subr.mxu0 0.0
    %3408 = vmatpush2.msra.mxu0 0.0
    %3409 = vmatprep.subr.mxu0 0.0
    %3410 = vmatpush2.msra.mxu0 0.0
    %3411 = vmatprep.subr.mxu0 0.0
    %3412 = vmatpush2.msra.mxu0 0.0
    %3413 = vmatprep.subr.mxu0 0.0
    %3414 = vmatpush2.msra.mxu0 0.0
    %3415 = vmatprep.subr.mxu0 0.0
    %3416 = vmatpush2.msra.mxu0 0.0
    %3417 = vmatprep.subr.mxu0 0.0
    %3418 = vmatpush2.msra.mxu0 0.0
    %3419 = vmatprep.subr.mxu0 0.0
    %3420 = vmatpush2.msra.mxu0 0.0
    %3421 = vmatprep.subr.mxu0 0.0
    %3422 = vmatpush2.msra.mxu0 0.0
    %3423 = vmatprep.subr.mxu0 0.0
    %3424 = vmatpush2.msra.mxu0 0.0
    %3425 = vmatprep.subr.mxu0 0.0
    %3426 = vmatpush2.msra.mxu0 0.0
    %3427 = vmatprep.subr.mxu0 0.0
    %3428 = vmatpush2.msra.mxu0 0.0
    %3429 = vmatprep.subr.mxu0 0.0
    %3430 = vmatpush2.msra.mxu0 0.0
    %3431 = vmatprep.subr.mxu0 0.0
    %3432 = vmatpush2.msra.mxu0 0.0
    %3433 = vmatprep.subr.mxu0 0.0
    %3434 = vmatpush2.msra.mxu0 0.0
    %3435 = vmatprep.subr.mxu0 0.0
    %3436 = vmatpush2.msra.mxu0 0.0
    %3437 = vmatprep.subr.mxu0 0.0
    %3438 = vmatpush2.msra.mxu0 0.0
    %3439 = vmatprep.mubr.f32.mxu0 0.0
    %3440 = vmatmul.mubr.f32.gmra.mxu0 %v3367
    %v3441 = vpop.f32.mrf.mxu0
    %v3442 = vadd.f32 0.0, %v3441
    %v3443 = vpop.f32.mrf.mxu0
    %v3444 = vadd.f32 0.0, %v3443
    %3445 = vdwg.mxu0
    %v3446 = vpack.c.bf16 %v3442, %v3442
    %v3447 = vpack.c.bf16 %v3444, %v3444
    %v3450 = vcombine.low %v3446, %v3447
    %v3452 = vunpack.c.l.s4 1966171168
    %v3453 = vunpack.c.0.s8 %v3452
    %v3454 = vlaneseq
    %v3455 = vshrl.u32 %v3454, 7
    %v3456 = vsub.s32 %v3453, %v3455
    %v3457 = vrot.slane %v3450, %v3456
    %v3459 = vunpack.c.l.s4 1966171168
    %v3460 = vunpack.c.0.s8 %v3459
    %v3461 = vlaneseq
    %v3462 = vshrl.u32 %v3461, 7
    %v3463 = vsub.s32 %v3460, %v3462
    %v3464 = vrot.slane %v3457, %v3463
    %3466 = vst [vmem:[#allocation4] sm:$0x3] %v3464
    %s3467 = scalar_lea.vmem %s9, 2
    %v3468 = vld [vmem:[%s3467] sm:$0x3]
    %v3470 = vsel %vm3365, %v3468, 0
    %3472 = vmatprep.subr.mxu0 0.0
    %3473 = vmatpush1.msra.mxu0 0.0
    %3474 = vmatprep.subr.mxu0 0.0
    %3475 = vmatpush1.msra.mxu0 0.0
    %3476 = vmatprep.subr.mxu0 0.0
    %3477 = vmatpush1.msra.mxu0 0.0
    %3478 = vmatprep.subr.mxu0 0.0
    %3479 = vmatpush1.msra.mxu0 0.0
    %3480 = vmatprep.subr.mxu0 0.0
    %3481 = vmatpush1.msra.mxu0 0.0
    %3482 = vmatprep.subr.mxu0 0.0
    %3483 = vmatpush1.msra.mxu0 0.0
    %3484 = vmatprep.subr.mxu0 0.0
    %3485 = vmatpush1.msra.mxu0 0.0
    %3486 = vmatprep.subr.mxu0 0.0
    %3487 = vmatpush1.msra.mxu0 0.0
    %3488 = vmatprep.subr.mxu0 0.0
    %3489 = vmatpush1.msra.mxu0 0.0
    %3490 = vmatprep.subr.mxu0 0.0
    %3491 = vmatpush1.msra.mxu0 0.0
    %3492 = vmatprep.subr.mxu0 0.0
    %3493 = vmatpush1.msra.mxu0 0.0
    %3494 = vmatprep.subr.mxu0 0.0
    %3495 = vmatpush1.msra.mxu0 0.0
    %3496 = vmatprep.subr.mxu0 0.0
    %3497 = vmatpush1.msra.mxu0 0.0
    %3498 = vmatprep.subr.mxu0 0.0
    %3499 = vmatpush1.msra.mxu0 0.0
    %3500 = vmatprep.subr.mxu0 0.0
    %3501 = vmatpush1.msra.mxu0 0.0
    %3502 = vmatprep.subr.mxu0 %v3373
    %3503 = vmatpush1.msra.mxu0 %v3370
    %3504 = vmatprep.subr.mxu0 0.0
    %3505 = vmatpush2.msra.mxu0 0.0
    %3506 = vmatprep.subr.mxu0 0.0
    %3507 = vmatpush2.msra.mxu0 0.0
    %3508 = vmatprep.subr.mxu0 0.0
    %3509 = vmatpush2.msra.mxu0 0.0
    %3510 = vmatprep.subr.mxu0 0.0
    %3511 = vmatpush2.msra.mxu0 0.0
    %3512 = vmatprep.subr.mxu0 0.0
    %3513 = vmatpush2.msra.mxu0 0.0
    %3514 = vmatprep.subr.mxu0 0.0
    %3515 = vmatpush2.msra.mxu0 0.0
    %3516 = vmatprep.subr.mxu0 0.0
    %3517 = vmatpush2.msra.mxu0 0.0
    %3518 = vmatprep.subr.mxu0 0.0
    %3519 = vmatpush2.msra.mxu0 0.0
    %3520 = vmatprep.subr.mxu0 0.0
    %3521 = vmatpush2.msra.mxu0 0.0
    %3522 = vmatprep.subr.mxu0 0.0
    %3523 = vmatpush2.msra.mxu0 0.0
    %3524 = vmatprep.subr.mxu0 0.0
    %3525 = vmatpush2.msra.mxu0 0.0
    %3526 = vmatprep.subr.mxu0 0.0
    %3527 = vmatpush2.msra.mxu0 0.0
    %3528 = vmatprep.subr.mxu0 0.0
    %3529 = vmatpush2.msra.mxu0 0.0
    %3530 = vmatprep.subr.mxu0 0.0
    %3531 = vmatpush2.msra.mxu0 0.0
    %3532 = vmatprep.subr.mxu0 0.0
    %3533 = vmatpush2.msra.mxu0 0.0
    %3534 = vmatprep.subr.mxu0 0.0
    %3535 = vmatpush2.msra.mxu0 0.0
    %3536 = vmatprep.mubr.f32.mxu0 0.0
    %3537 = vmatmul.mubr.f32.gmra.mxu0 %v3470
    %v3538 = vpop.f32.mrf.mxu0
    %v3539 = vadd.f32 0.0, %v3538
    %v3540 = vpop.f32.mrf.mxu0
    %v3541 = vadd.f32 0.0, %v3540
    %3542 = vdwg.mxu0
    %v3543 = vpack.c.bf16 %v3539, %v3539
    %v3544 = vpack.c.bf16 %v3541, %v3541
    %v3547 = vcombine.low %v3543, %v3544
    %v3549 = vunpack.c.l.s4 1966171168
    %v3550 = vunpack.c.0.s8 %v3549
    %v3551 = vlaneseq
    %v3552 = vshrl.u32 %v3551, 7
    %v3553 = vsub.s32 %v3550, %v3552
    %v3554 = vrot.slane %v3547, %v3553
    %v3556 = vunpack.c.l.s4 1966171168
    %v3557 = vunpack.c.0.s8 %v3556
    %v3558 = vlaneseq
    %v3559 = vshrl.u32 %v3558, 7
    %v3560 = vsub.s32 %v3557, %v3559
    %v3561 = vrot.slane %v3554, %v3560
    %3563 = vst [vmem:[#allocation4 + $0x2] sm:$0x3] %v3561
    %s3564 = scalar_lea.vmem %s9, 4
    %v3565 = vld [vmem:[%s3564] sm:$0x3]
    %v3567 = vsel %vm3365, %v3565, 0
    %3569 = vmatprep.subr.mxu0 0.0
    %3570 = vmatpush1.msra.mxu0 0.0
    %3571 = vmatprep.subr.mxu0 0.0
    %3572 = vmatpush1.msra.mxu0 0.0
    %3573 = vmatprep.subr.mxu0 0.0
    %3574 = vmatpush1.msra.mxu0 0.0
    %3575 = vmatprep.subr.mxu0 0.0
    %3576 = vmatpush1.msra.mxu0 0.0
    %3577 = vmatprep.subr.mxu0 0.0
    %3578 = vmatpush1.msra.mxu0 0.0
    %3579 = vmatprep.subr.mxu0 0.0
    %3580 = vmatpush1.msra.mxu0 0.0
    %3581 = vmatprep.subr.mxu0 0.0
    %3582 = vmatpush1.msra.mxu0 0.0
    %3583 = vmatprep.subr.mxu0 0.0
    %3584 = vmatpush1.msra.mxu0 0.0
    %3585 = vmatprep.subr.mxu0 0.0
    %3586 = vmatpush1.msra.mxu0 0.0
    %3587 = vmatprep.subr.mxu0 0.0
    %3588 = vmatpush1.msra.mxu0 0.0
    %3589 = vmatprep.subr.mxu0 0.0
    %3590 = vmatpush1.msra.mxu0 0.0
    %3591 = vmatprep.subr.mxu0 0.0
    %3592 = vmatpush1.msra.mxu0 0.0
    %3593 = vmatprep.subr.mxu0 0.0
    %3594 = vmatpush1.msra.mxu0 0.0
    %3595 = vmatprep.subr.mxu0 0.0
    %3596 = vmatpush1.msra.mxu0 0.0
    %3597 = vmatprep.subr.mxu0 0.0
    %3598 = vmatpush1.msra.mxu0 0.0
    %3599 = vmatprep.subr.mxu0 %v3373
    %3600 = vmatpush1.msra.mxu0 %v3370
    %3601 = vmatprep.subr.mxu0 0.0
    %3602 = vmatpush2.msra.mxu0 0.0
    %3603 = vmatprep.subr.mxu0 0.0
    %3604 = vmatpush2.msra.mxu0 0.0
    %3605 = vmatprep.subr.mxu0 0.0
    %3606 = vmatpush2.msra.mxu0 0.0
    %3607 = vmatprep.subr.mxu0 0.0
    %3608 = vmatpush2.msra.mxu0 0.0
    %3609 = vmatprep.subr.mxu0 0.0
    %3610 = vmatpush2.msra.mxu0 0.0
    %3611 = vmatprep.subr.mxu0 0.0
    %3612 = vmatpush2.msra.mxu0 0.0
    %3613 = vmatprep.subr.mxu0 0.0
    %3614 = vmatpush2.msra.mxu0 0.0
    %3615 = vmatprep.subr.mxu0 0.0
    %3616 = vmatpush2.msra.mxu0 0.0
    %3617 = vmatprep.subr.mxu0 0.0
    %3618 = vmatpush2.msra.mxu0 0.0
    %3619 = vmatprep.subr.mxu0 0.0
    %3620 = vmatpush2.msra.mxu0 0.0
    %3621 = vmatprep.subr.mxu0 0.0
    %3622 = vmatpush2.msra.mxu0 0.0
    %3623 = vmatprep.subr.mxu0 0.0
    %3624 = vmatpush2.msra.mxu0 0.0
    %3625 = vmatprep.subr.mxu0 0.0
    %3626 = vmatpush2.msra.mxu0 0.0
    %3627 = vmatprep.subr.mxu0 0.0
    %3628 = vmatpush2.msra.mxu0 0.0
    %3629 = vmatprep.subr.mxu0 0.0
    %3630 = vmatpush2.msra.mxu0 0.0
    %3631 = vmatprep.subr.mxu0 0.0
    %3632 = vmatpush2.msra.mxu0 0.0
    %3633 = vmatprep.mubr.f32.mxu0 0.0
    %3634 = vmatmul.mubr.f32.gmra.mxu0 %v3567
    %v3635 = vpop.f32.mrf.mxu0
    %v3636 = vadd.f32 0.0, %v3635
    %v3637 = vpop.f32.mrf.mxu0
    %v3638 = vadd.f32 0.0, %v3637
    %3639 = vdwg.mxu0
    %v3640 = vpack.c.bf16 %v3636, %v3636
    %v3641 = vpack.c.bf16 %v3638, %v3638
    %v3644 = vcombine.low %v3640, %v3641
    %v3646 = vunpack.c.l.s4 1966171168
    %v3647 = vunpack.c.0.s8 %v3646
    %v3648 = vlaneseq
    %v3649 = vshrl.u32 %v3648, 7
    %v3650 = vsub.s32 %v3647, %v3649
    %v3651 = vrot.slane %v3644, %v3650
    %v3653 = vunpack.c.l.s4 1966171168
    %v3654 = vunpack.c.0.s8 %v3653
    %v3655 = vlaneseq
    %v3656 = vshrl.u32 %v3655, 7
    %v3657 = vsub.s32 %v3654, %v3656
    %v3658 = vrot.slane %v3651, %v3657
    %3660 = vst [vmem:[#allocation4 + $0x4] sm:$0x3] %v3658
    %v3661 = vld [vmem:[#allocation4] sm:$0x3f]
    %v3662 = vld [vmem:[%s10] sm:$0xf]
    %v3663 = vld [vmem:[%s10 + $0x4] sm:$0xf]
    %v3664 = vld [vmem:[%s10 + $0x8] sm:$0xf]
    %v3665 = vld [vmem:[%s10 + $0xc] sm:$0xf]
    %v3666 = vld [vmem:[%s10 + $0x10] sm:$0xf]
    %v3667 = vld [vmem:[%s10 + $0x14] sm:$0xf]
    %v3668 = vld [vmem:[%s10 + $0x18] sm:$0xf]
    %v3669 = vld [vmem:[%s10 + $0x1c] sm:$0xf]
    %v3670 = vld [vmem:[%s10 + $0x20] sm:$0xf]
    %v3671 = vld [vmem:[%s10 + $0x24] sm:$0xf]
    %v3672 = vld [vmem:[%s10 + $0x28] sm:$0xf]
    %v3673 = vld [vmem:[%s10 + $0x2c] sm:$0xf]
    %v3674 = vld [vmem:[%s10 + $0x30] sm:$0xf]
    %v3675 = vld [vmem:[%s10 + $0x34] sm:$0xf]
    %v3676 = vld [vmem:[%s10 + $0x38] sm:$0xf]
    %v3677 = vld [vmem:[%s10 + $0x3c] sm:$0xf]
    %v3678 = vld [vmem:[%s10 + $0x40] sm:$0xf]
    %v3679 = vld [vmem:[%s10 + $0x44] sm:$0xf]
    %v3680 = vld [vmem:[%s10 + $0x48] sm:$0xf]
    %v3681 = vld [vmem:[%s10 + $0x4c] sm:$0xf]
    %v3682 = vld [vmem:[%s10 + $0x50] sm:$0xf]
    %v3683 = vld [vmem:[%s10 + $0x54] sm:$0xf]
    %v3684 = vld [vmem:[%s10 + $0x58] sm:$0xf]
    %v3685 = vld [vmem:[%s10 + $0x5c] sm:$0xf]
    %v3686 = vld [vmem:[%s10 + $0x60] sm:$0xf]
    %v3687 = vld [vmem:[%s10 + $0x64] sm:$0xf]
    %v3688 = vld [vmem:[%s10 + $0x68] sm:$0xf]
    %v3689 = vld [vmem:[%s10 + $0x6c] sm:$0xf]
    %v3690 = vld [vmem:[%s10 + $0x70] sm:$0xf]
    %v3691 = vld [vmem:[%s10 + $0x74] sm:$0xf]
    %v3692 = vld [vmem:[%s10 + $0x78] sm:$0xf]
    %v3693 = vld [vmem:[%s10 + $0x7c] sm:$0xf]
    %v3694 = vld [vmem:[%s10 + $0x80] sm:$0xf]
    %v3695 = vld [vmem:[%s10 + $0x84] sm:$0xf]
    %v3696 = vld [vmem:[%s10 + $0x88] sm:$0xf]
    %v3697 = vld [vmem:[%s10 + $0x8c] sm:$0xf]
    %v3698 = vld [vmem:[%s10 + $0x90] sm:$0xf]
    %v3699 = vld [vmem:[%s10 + $0x94] sm:$0xf]
    %v3700 = vld [vmem:[%s10 + $0x98] sm:$0xf]
    %v3701 = vld [vmem:[%s10 + $0x9c] sm:$0xf]
    %v3702 = vld [vmem:[%s10 + $0xa0] sm:$0xf]
    %v3703 = vld [vmem:[%s10 + $0xa4] sm:$0xf]
    %v3704 = vld [vmem:[%s10 + $0xa8] sm:$0xf]
    %v3705 = vld [vmem:[%s10 + $0xac] sm:$0xf]
    %v3706 = vld [vmem:[%s10 + $0xb0] sm:$0xf]
    %v3707 = vld [vmem:[%s10 + $0xb4] sm:$0xf]
    %v3708 = vld [vmem:[%s10 + $0xb8] sm:$0xf]
    %v3709 = vld [vmem:[%s10 + $0xbc] sm:$0xf]
    %v3710 = vld [vmem:[%s10 + $0xc0] sm:$0xf]
    %v3711 = vld [vmem:[%s10 + $0xc4] sm:$0xf]
    %v3712 = vld [vmem:[%s10 + $0xc8] sm:$0xf]
    %v3713 = vld [vmem:[%s10 + $0xcc] sm:$0xf]
    %v3714 = vld [vmem:[%s10 + $0xd0] sm:$0xf]
    %v3715 = vld [vmem:[%s10 + $0xd4] sm:$0xf]
    %v3716 = vld [vmem:[%s10 + $0xd8] sm:$0xf]
    %v3717 = vld [vmem:[%s10 + $0xdc] sm:$0xf]
    %v3718 = vld [vmem:[%s10 + $0xe0] sm:$0xf]
    %v3719 = vld [vmem:[%s10 + $0xe4] sm:$0xf]
    %v3720 = vld [vmem:[%s10 + $0xe8] sm:$0xf]
    %v3721 = vld [vmem:[%s10 + $0xec] sm:$0xf]
    %v3722 = vld [vmem:[%s10 + $0xf0] sm:$0xf]
    %v3723 = vld [vmem:[%s10 + $0xf4] sm:$0xf]
    %v3724 = vld [vmem:[%s10 + $0xf8] sm:$0xf]
    %v3725 = vld [vmem:[%s10 + $0xfc] sm:$0xf]
    %v3726 = vld [vmem:[%s10 + $0x100] sm:$0xf]
    %v3727 = vld [vmem:[%s10 + $0x104] sm:$0xf]
    %v3728 = vld [vmem:[%s10 + $0x108] sm:$0xf]
    %v3729 = vld [vmem:[%s10 + $0x10c] sm:$0xf]
    %v3730 = vld [vmem:[%s10 + $0x110] sm:$0xf]
    %v3731 = vld [vmem:[%s10 + $0x114] sm:$0xf]
    %v3732 = vld [vmem:[%s10 + $0x118] sm:$0xf]
    %v3733 = vld [vmem:[%s10 + $0x11c] sm:$0xf]
    %v3734 = vld [vmem:[%s10 + $0x120] sm:$0xf]
    %v3735 = vld [vmem:[%s10 + $0x124] sm:$0xf]
    %v3736 = vld [vmem:[%s10 + $0x128] sm:$0xf]
    %v3737 = vld [vmem:[%s10 + $0x12c] sm:$0xf]
    %v3738 = vld [vmem:[%s10 + $0x130] sm:$0xf]
    %v3739 = vld [vmem:[%s10 + $0x134] sm:$0xf]
    %v3740 = vld [vmem:[%s10 + $0x138] sm:$0xf]
    %v3741 = vld [vmem:[%s10 + $0x13c] sm:$0xf]
    %v3742 = vld [vmem:[%s10 + $0x140] sm:$0xf]
    %v3743 = vld [vmem:[%s10 + $0x144] sm:$0xf]
    %v3744 = vld [vmem:[%s10 + $0x148] sm:$0xf]
    %v3745 = vld [vmem:[%s10 + $0x14c] sm:$0xf]
    %v3746 = vld [vmem:[%s10 + $0x150] sm:$0xf]
    %v3747 = vld [vmem:[%s10 + $0x154] sm:$0xf]
    %v3748 = vld [vmem:[%s10 + $0x158] sm:$0xf]
    %v3749 = vld [vmem:[%s10 + $0x15c] sm:$0xf]
    %v3750 = vld [vmem:[%s10 + $0x160] sm:$0xf]
    %v3751 = vld [vmem:[%s10 + $0x164] sm:$0xf]
    %v3752 = vld [vmem:[%s10 + $0x168] sm:$0xf]
    %v3753 = vld [vmem:[%s10 + $0x16c] sm:$0xf]
    %v3754 = vld [vmem:[%s10 + $0x170] sm:$0xf]
    %v3755 = vld [vmem:[%s10 + $0x174] sm:$0xf]
    %v3756 = vld [vmem:[%s10 + $0x178] sm:$0xf]
    %v3757 = vld [vmem:[%s10 + $0x17c] sm:$0xf]
    %v3759 = vcombine.high %v3661, %v3661
    %v3761 = vunpack.c.l.s4 1966171168
    %v3762 = vunpack.c.0.s8 %v3761
    %v3763 = vlaneseq
    %v3764 = vshrl.u32 %v3763, 7
    %v3765 = vsub.s32 %v3762, %v3764
    %v3766 = vrot.slane %v3661, %v3765
    %v3768 = vunpack.c.l.s4 1966171168
    %v3769 = vunpack.c.0.s8 %v3768
    %v3770 = vlaneseq
    %v3771 = vshrl.u32 %v3770, 7
    %v3772 = vsub.s32 %v3769, %v3771
    %v3773 = vrot.slane %v3759, %v3772
    %v3774 = vcombine.high %v3766, %v3766
    %v3775 = vcombine.high %v3773, %v3773
    %v3777 = vunpack.c.l.s4 1966171168
    %v3778 = vunpack.c.0.s8 %v3777
    %v3779 = vlaneseq
    %v3780 = vshrl.u32 %v3779, 7
    %v3781 = vsub.s32 %v3778, %v3780
    %v3782 = vrot.slane %v3766, %v3781
    %v3784 = vunpack.c.l.s4 1966171168
    %v3785 = vunpack.c.0.s8 %v3784
    %v3786 = vlaneseq
    %v3787 = vshrl.u32 %v3786, 7
    %v3788 = vsub.s32 %v3785, %v3787
    %v3789 = vrot.slane %v3773, %v3788
    %v3791 = vunpack.c.l.s4 1966171168
    %v3792 = vunpack.c.0.s8 %v3791
    %v3793 = vlaneseq
    %v3794 = vshrl.u32 %v3793, 7
    %v3795 = vsub.s32 %v3792, %v3794
    %v3796 = vrot.slane %v3774, %v3795
    %v3798 = vunpack.c.l.s4 1966171168
    %v3799 = vunpack.c.0.s8 %v3798
    %v3800 = vlaneseq
    %v3801 = vshrl.u32 %v3800, 7
    %v3802 = vsub.s32 %v3799, %v3801
    %v3803 = vrot.slane %v3775, %v3802
    %v3804 = vcombine.high %v3782, %v3782
    %v3805 = vcombine.high %v3796, %v3796
    %v3908 = vunpack.c.l.b16 %v3662
    %v3909 = vunpack.c.l.b16 %v3663
    %v3910 = vunpack.c.l.b16 %v3664
    %v3911 = vunpack.c.l.b16 %v3665
    %v3912 = vunpack.c.l.b16 %v3666
    %v3913 = vunpack.c.l.b16 %v3667
    %v3914 = vunpack.c.l.b16 %v3668
    %v3915 = vunpack.c.l.b16 %v3669
    %v3916 = vunpack.c.l.b16 %v3670
    %v3917 = vunpack.c.l.b16 %v3671
    %v3918 = vunpack.c.l.b16 %v3672
    %v3919 = vunpack.c.l.b16 %v3673
    %v3920 = vunpack.c.l.b16 %v3674
    %v3921 = vunpack.c.l.b16 %v3675
    %v3922 = vunpack.c.l.b16 %v3676
    %v3923 = vunpack.c.l.b16 %v3677
    %v3924 = vunpack.c.l.b16 %v3678
    %v3925 = vunpack.c.l.b16 %v3679
    %v3926 = vunpack.c.l.b16 %v3680
    %v3927 = vunpack.c.l.b16 %v3681
    %v3928 = vunpack.c.l.b16 %v3682
    %v3929 = vunpack.c.l.b16 %v3683
    %v3930 = vunpack.c.l.b16 %v3684
    %v3931 = vunpack.c.l.b16 %v3685
    %v3932 = vunpack.c.l.b16 %v3686
    %v3933 = vunpack.c.l.b16 %v3687
    %v3934 = vunpack.c.l.b16 %v3688
    %v3935 = vunpack.c.l.b16 %v3689
    %v3936 = vunpack.c.l.b16 %v3690
    %v3937 = vunpack.c.l.b16 %v3691
    %v3938 = vunpack.c.l.b16 %v3692
    %v3939 = vunpack.c.l.b16 %v3693
    %v3940 = vunpack.c.l.b16 %v3694
    %v3941 = vunpack.c.l.b16 %v3695
    %v3942 = vunpack.c.l.b16 %v3696
    %v3943 = vunpack.c.l.b16 %v3697
    %v3944 = vunpack.c.l.b16 %v3698
    %v3945 = vunpack.c.l.b16 %v3699
    %v3946 = vunpack.c.l.b16 %v3700
    %v3947 = vunpack.c.l.b16 %v3701
    %v3948 = vunpack.c.l.b16 %v3702
    %v3949 = vunpack.c.l.b16 %v3703
    %v3950 = vunpack.c.l.b16 %v3704
    %v3951 = vunpack.c.l.b16 %v3705
    %v3952 = vunpack.c.l.b16 %v3706
    %v3953 = vunpack.c.l.b16 %v3707
    %v3954 = vunpack.c.l.b16 %v3708
    %v3955 = vunpack.c.l.b16 %v3709
    %v3956 = vunpack.c.l.b16 %v3710
    %v3957 = vunpack.c.l.b16 %v3711
    %v3958 = vunpack.c.l.b16 %v3712
    %v3959 = vunpack.c.l.b16 %v3713
    %v3960 = vunpack.c.l.b16 %v3714
    %v3961 = vunpack.c.l.b16 %v3715
    %v3962 = vunpack.c.l.b16 %v3716
    %v3963 = vunpack.c.l.b16 %v3717
    %v3964 = vunpack.c.l.b16 %v3718
    %v3965 = vunpack.c.l.b16 %v3719
    %v3966 = vunpack.c.l.b16 %v3720
    %v3967 = vunpack.c.l.b16 %v3721
    %v3968 = vunpack.c.l.b16 %v3722
    %v3969 = vunpack.c.l.b16 %v3723
    %v3970 = vunpack.c.l.b16 %v3724
    %v3971 = vunpack.c.l.b16 %v3725
    %v3972 = vunpack.c.l.b16 %v3726
    %v3973 = vunpack.c.l.b16 %v3727
    %v3974 = vunpack.c.l.b16 %v3728
    %v3975 = vunpack.c.l.b16 %v3729
    %v3976 = vunpack.c.l.b16 %v3730
    %v3977 = vunpack.c.l.b16 %v3731
    %v3978 = vunpack.c.l.b16 %v3732
    %v3979 = vunpack.c.l.b16 %v3733
    %v3980 = vunpack.c.l.b16 %v3734
    %v3981 = vunpack.c.l.b16 %v3735
    %v3982 = vunpack.c.l.b16 %v3736
    %v3983 = vunpack.c.l.b16 %v3737
    %v3984 = vunpack.c.l.b16 %v3738
    %v3985 = vunpack.c.l.b16 %v3739
    %v3986 = vunpack.c.l.b16 %v3740
    %v3987 = vunpack.c.l.b16 %v3741
    %v3988 = vunpack.c.l.b16 %v3742
    %v3989 = vunpack.c.l.b16 %v3743
    %v3990 = vunpack.c.l.b16 %v3744
    %v3991 = vunpack.c.l.b16 %v3745
    %v3992 = vunpack.c.l.b16 %v3746
    %v3993 = vunpack.c.l.b16 %v3747
    %v3994 = vunpack.c.l.b16 %v3748
    %v3995 = vunpack.c.l.b16 %v3749
    %v3996 = vunpack.c.l.b16 %v3750
    %v3997 = vunpack.c.l.b16 %v3751
    %v3998 = vunpack.c.l.b16 %v3752
    %v3999 = vunpack.c.l.b16 %v3753
    %v4000 = vunpack.c.l.b16 %v3754
    %v4001 = vunpack.c.l.b16 %v3755
    %v4002 = vunpack.c.l.b16 %v3756
    %v4003 = vunpack.c.l.b16 %v3757
    %v4004 = vpack.c.b16 %v3909, %v3908
    %v4005 = vpack.c.b16 %v3911, %v3910
    %v4006 = vpack.c.b16 %v3913, %v3912
    %v4007 = vpack.c.b16 %v3915, %v3914
    %v4008 = vpack.c.b16 %v3917, %v3916
    %v4009 = vpack.c.b16 %v3919, %v3918
    %v4010 = vpack.c.b16 %v3921, %v3920
    %v4011 = vpack.c.b16 %v3923, %v3922
    %v4012 = vpack.c.b16 %v3925, %v3924
    %v4013 = vpack.c.b16 %v3927, %v3926
    %v4014 = vpack.c.b16 %v3929, %v3928
    %v4015 = vpack.c.b16 %v3931, %v3930
    %v4016 = vpack.c.b16 %v3933, %v3932
    %v4017 = vpack.c.b16 %v3935, %v3934
    %v4018 = vpack.c.b16 %v3937, %v3936
    %v4019 = vpack.c.b16 %v3939, %v3938
    %v4020 = vpack.c.b16 %v3941, %v3940
    %v4021 = vpack.c.b16 %v3943, %v3942
    %v4022 = vpack.c.b16 %v3945, %v3944
    %v4023 = vpack.c.b16 %v3947, %v3946
    %v4024 = vpack.c.b16 %v3949, %v3948
    %v4025 = vpack.c.b16 %v3951, %v3950
    %v4026 = vpack.c.b16 %v3953, %v3952
    %v4027 = vpack.c.b16 %v3955, %v3954
    %v4028 = vpack.c.b16 %v3957, %v3956
    %v4029 = vpack.c.b16 %v3959, %v3958
    %v4030 = vpack.c.b16 %v3961, %v3960
    %v4031 = vpack.c.b16 %v3963, %v3962
    %v4032 = vpack.c.b16 %v3965, %v3964
    %v4033 = vpack.c.b16 %v3967, %v3966
    %v4034 = vpack.c.b16 %v3969, %v3968
    %v4035 = vpack.c.b16 %v3971, %v3970
    %v4036 = vpack.c.b16 %v3973, %v3972
    %v4037 = vpack.c.b16 %v3975, %v3974
    %v4038 = vpack.c.b16 %v3977, %v3976
    %v4039 = vpack.c.b16 %v3979, %v3978
    %v4040 = vpack.c.b16 %v3981, %v3980
    %v4041 = vpack.c.b16 %v3983, %v3982
    %v4042 = vpack.c.b16 %v3985, %v3984
    %v4043 = vpack.c.b16 %v3987, %v3986
    %v4044 = vpack.c.b16 %v3989, %v3988
    %v4045 = vpack.c.b16 %v3991, %v3990
    %v4046 = vpack.c.b16 %v3993, %v3992
    %v4047 = vpack.c.b16 %v3995, %v3994
    %v4048 = vpack.c.b16 %v3997, %v3996
    %v4049 = vpack.c.b16 %v3999, %v3998
    %v4050 = vpack.c.b16 %v4001, %v4000
    %v4051 = vpack.c.b16 %v4003, %v4002
    %4100 = vmatprep.subr.bf16.mxu0 0
    %4101 = vmatpush1.bf16.msra.mxu0 %v4011
    %4102 = vmatprep.subr.bf16.mxu0 0
    %4103 = vmatpush1.bf16.msra.mxu0 %v4010
    %4104 = vmatprep.subr.bf16.mxu0 0
    %4105 = vmatpush1.bf16.msra.mxu0 %v4009
    %4106 = vmatprep.subr.bf16.mxu0 0
    %4107 = vmatpush1.bf16.msra.mxu0 %v4008
    %4108 = vmatprep.subr.bf16.mxu0 0
    %4109 = vmatpush1.bf16.msra.mxu0 %v4007
    %4110 = vmatprep.subr.bf16.mxu0 0
    %4111 = vmatpush1.bf16.msra.mxu0 %v4006
    %4112 = vmatprep.subr.bf16.mxu0 0
    %4113 = vmatpush1.bf16.msra.mxu0 %v4005
    %4114 = vmatprep.subr.bf16.mxu0 0
    %4115 = vmatpush1.bf16.msra.mxu0 %v4004
    %4116 = vmatprep.subr.bf16.mxu0 0
    %4117 = vmatpush2.bf16.msra.mxu0 %v4019
    %4118 = vmatprep.subr.bf16.mxu0 0
    %4119 = vmatpush2.bf16.msra.mxu0 %v4018
    %4120 = vmatprep.subr.bf16.mxu0 0
    %4121 = vmatpush2.bf16.msra.mxu0 %v4017
    %4122 = vmatprep.subr.bf16.mxu0 0
    %4123 = vmatpush2.bf16.msra.mxu0 %v4016
    %4124 = vmatprep.subr.bf16.mxu0 0
    %4125 = vmatpush2.bf16.msra.mxu0 %v4015
    %4126 = vmatprep.subr.bf16.mxu0 0
    %4127 = vmatpush2.bf16.msra.mxu0 %v4014
    %4128 = vmatprep.subr.bf16.mxu0 0
    %4129 = vmatpush2.bf16.msra.mxu0 %v4013
    %4130 = vmatprep.subr.bf16.mxu0 0
    %4131 = vmatpush2.bf16.msra.mxu0 %v4012
    %4132 = vmatprep.mubr.bf16.mxu0 %v3796
    %4133 = vmatmul.mubr.bf16.gmra.mxu0 %v3782
    %v4134 = vpop.f32.mrf.mxu0
    %v4135 = vadd.f32 0.0, %v4134
    %v4136 = vpop.f32.mrf.mxu0
    %v4137 = vpop.f32.mrf.mxu0
    %v4138 = vpop.f32.mrf.mxu0
    %4139 = vdwg.mxu0
    %4140 = vmatprep.subr.bf16.mxu0 0
    %4141 = vmatpush1.bf16.msra.mxu0 %v4027
    %4142 = vmatprep.subr.bf16.mxu0 0
    %4143 = vmatpush1.bf16.msra.mxu0 %v4026
    %4144 = vmatprep.subr.bf16.mxu0 0
    %4145 = vmatpush1.bf16.msra.mxu0 %v4025
    %4146 = vmatprep.subr.bf16.mxu0 0
    %4147 = vmatpush1.bf16.msra.mxu0 %v4024
    %4148 = vmatprep.subr.bf16.mxu0 0
    %4149 = vmatpush1.bf16.msra.mxu0 %v4023
    %4150 = vmatprep.subr.bf16.mxu0 0
    %4151 = vmatpush1.bf16.msra.mxu0 %v4022
    %4152 = vmatprep.subr.bf16.mxu0 0
    %4153 = vmatpush1.bf16.msra.mxu0 %v4021
    %4154 = vmatprep.subr.bf16.mxu0 0
    %4155 = vmatpush1.bf16.msra.mxu0 %v4020
    %4156 = vmatprep.subr.bf16.mxu0 0
    %4157 = vmatpush2.bf16.msra.mxu0 %v4035
    %4158 = vmatprep.subr.bf16.mxu0 0
    %4159 = vmatpush2.bf16.msra.mxu0 %v4034
    %4160 = vmatprep.subr.bf16.mxu0 0
    %4161 = vmatpush2.bf16.msra.mxu0 %v4033
    %4162 = vmatprep.subr.bf16.mxu0 0
    %4163 = vmatpush2.bf16.msra.mxu0 %v4032
    %4164 = vmatprep.subr.bf16.mxu0 0
    %4165 = vmatpush2.bf16.msra.mxu0 %v4031
    %4166 = vmatprep.subr.bf16.mxu0 0
    %4167 = vmatpush2.bf16.msra.mxu0 %v4030
    %4168 = vmatprep.subr.bf16.mxu0 0
    %4169 = vmatpush2.bf16.msra.mxu0 %v4029
    %4170 = vmatprep.subr.bf16.mxu0 0
    %4171 = vmatpush2.bf16.msra.mxu0 %v4028
    %4172 = vmatprep.mubr.bf16.mxu0 %v3805
    %4173 = vmatmul.mubr.bf16.gmra.mxu0 %v3804
    %v4174 = vpop.f32.mrf.mxu0
    %v4175 = vadd.f32 %v4135, %v4174
    %v4176 = vpop.f32.mrf.mxu0
    %v4177 = vpop.f32.mrf.mxu0
    %v4178 = vpop.f32.mrf.mxu0
    %4179 = vdwg.mxu0
    %4180 = vmatprep.subr.bf16.mxu0 0
    %4181 = vmatpush1.bf16.msra.mxu0 %v4043
    %4182 = vmatprep.subr.bf16.mxu0 0
    %4183 = vmatpush1.bf16.msra.mxu0 %v4042
    %4184 = vmatprep.subr.bf16.mxu0 0
    %4185 = vmatpush1.bf16.msra.mxu0 %v4041
    %4186 = vmatprep.subr.bf16.mxu0 0
    %4187 = vmatpush1.bf16.msra.mxu0 %v4040
    %4188 = vmatprep.subr.bf16.mxu0 0
    %4189 = vmatpush1.bf16.msra.mxu0 %v4039
    %4190 = vmatprep.subr.bf16.mxu0 0
    %4191 = vmatpush1.bf16.msra.mxu0 %v4038
    %4192 = vmatprep.subr.bf16.mxu0 0
    %4193 = vmatpush1.bf16.msra.mxu0 %v4037
    %4194 = vmatprep.subr.bf16.mxu0 0
    %4195 = vmatpush1.bf16.msra.mxu0 %v4036
    %4196 = vmatprep.subr.bf16.mxu0 0
    %4197 = vmatpush2.bf16.msra.mxu0 %v4051
    %4198 = vmatprep.subr.bf16.mxu0 0
    %4199 = vmatpush2.bf16.msra.mxu0 %v4050
    %4200 = vmatprep.subr.bf16.mxu0 0
    %4201 = vmatpush2.bf16.msra.mxu0 %v4049
    %4202 = vmatprep.subr.bf16.mxu0 0
    %4203 = vmatpush2.bf16.msra.mxu0 %v4048
    %4204 = vmatprep.subr.bf16.mxu0 0
    %4205 = vmatpush2.bf16.msra.mxu0 %v4047
    %4206 = vmatprep.subr.bf16.mxu0 0
    %4207 = vmatpush2.bf16.msra.mxu0 %v4046
    %4208 = vmatprep.subr.bf16.mxu0 0
    %4209 = vmatpush2.bf16.msra.mxu0 %v4045
    %4210 = vmatprep.subr.bf16.mxu0 0
    %4211 = vmatpush2.bf16.msra.mxu0 %v4044
    %4212 = vmatprep.mubr.bf16.mxu0 %v3803
    %4213 = vmatmul.mubr.bf16.gmra.mxu0 %v3789
    %v4214 = vpop.f32.mrf.mxu0
    %v4215 = vadd.f32 %v4175, %v4214
    %v4216 = vpop.f32.mrf.mxu0
    %v4217 = vpop.f32.mrf.mxu0
    %v4218 = vpop.f32.mrf.mxu0
    %4219 = vdwg.mxu0
    %vm4220 = vcmask 1041408
    %v4221 = vsel %vm4220, %v4215, 0.0
    %v4222 = vrot.slane %v4221, 4
    %v4223 = vadd.f32 %v4221, %v4222
    %v4224 = vrot.slane %v4223, 2
    %v4225 = vadd.f32 %v4223, %v4224
    %v4226 = vrot.slane %v4225, 1
    %v4227 = vadd.f32 %v4225, %v4226
    %v4228 = vrcp.pop 2.0
    %v4229 = vmul.f32 %v4227, %v4228
    %v4230 = vmul.f32 %v4215, %v4215
    %v4231 = vsel %vm4220, %v4230, 0.0
    %v4232 = vrot.slane %v4231, 4
    %v4233 = vadd.f32 %v4231, %v4232
    %v4234 = vrot.slane %v4233, 2
    %v4235 = vadd.f32 %v4233, %v4234
    %v4236 = vrot.slane %v4235, 1
    %v4237 = vadd.f32 %v4235, %v4236
    %v4238 = vmul.f32 %v4237, %v4228
    %v4239 = vmul.f32 %v4229, %v4229
    %v4240 = vsub.f32 %v4238, %v4239
    %v4241 = vmax.f32 %v4240, 0.0
    %v4242 = vld [vmem:[%s11] sm:$0x1]
    %v4243 = vadd.f32 %v4241, 1e-05
    %v4244 = vrsqrt.pop %v4243
    %v4245 = vmul.f32 %v4242, %v4244
    %v4246 = vld [vmem:[%s12] sm:$0x1]
    %v4247 = vmul.f32 %v4229, %v4245
    %v4248 = vsub.f32 %v4246, %v4247
    %v4250 = vlaneseq
    %v4251 = vshrl.u32 %v4250, 7
    %v4252 = vsub.s32 0, %v4251
    %v4253 = vrot.slane %v4245, %v4252
    %v4255 = vmul.f32 %v4215, %v4253
    %v4257 = vlaneseq
    %v4258 = vshrl.u32 %v4257, 7
    %v4259 = vsub.s32 0, %v4258
    %v4260 = vrot.slane %v4248, %v4259
    %v4262 = vadd.f32 %v4255, %v4260
    %vm4263 = vcmp.ge.f32.partialorder %v4262, 0.0
    %v4264 = vmul.f32 %v4262, 0.01
    %v4265 = vsel %vm4263, %v4262, %v4264
    %v4266 = vcombine.low %v3362, %v3363
    %4268 = vst [vmem:[%s19] sm:$0xff] %v4266
    %4269 = vst [vmem:[#allocation7] sm:$0x3] %v4265
    %v4270 = vpack.c.bf16 %v4265, %v4265
    %v4271 = vld [vmem:[%s13] sm:$0xff]
    %v4272 = vld [vmem:[%s13 + $0x8] sm:$0xff]
    %v4273 = vld [vmem:[%s13 + $0x10] sm:$0xff]
    %v4274 = vld [vmem:[%s13 + $0x18] sm:$0xff]
    %v4275 = vld [vmem:[%s13 + $0x20] sm:$0xff]
    %v4276 = vld [vmem:[%s13 + $0x28] sm:$0xff]
    %v4277 = vld [vmem:[%s13 + $0x30] sm:$0xff]
    %v4278 = vld [vmem:[%s13 + $0x38] sm:$0xff]
    %v4279 = vld [vmem:[%s13 + $0x40] sm:$0xff]
    %v4280 = vld [vmem:[%s13 + $0x48] sm:$0xff]
    %v4281 = vld [vmem:[%s13 + $0x50] sm:$0xff]
    %v4282 = vld [vmem:[%s13 + $0x58] sm:$0xff]
    %v4283 = vld [vmem:[%s13 + $0x60] sm:$0xff]
    %v4284 = vld [vmem:[%s13 + $0x68] sm:$0xff]
    %v4285 = vld [vmem:[%s13 + $0x70] sm:$0xff]
    %v4286 = vld [vmem:[%s13 + $0x78] sm:$0xff]
    %v4287 = vld [vmem:[%s14] sm:$0x3]
    %v4289 = vlaneseq
    %v4290 = vshrl.u32 %v4289, 7
    %v4291 = vsub.s32 0, %v4290
    %v4292 = vrot.slane %v4287, %v4291
    %v4293 = vlaneseq
    %v4294 = vshrl.u32 %v4293, 7
    %v4295 = vsub.s32 1, %v4294
    %v4296 = vrot.slane %v4287, %v4295
    %v4315 = vunpack.c.l.b16 %v4271
    %v4316 = vunpack.c.h.b16 %v4271
    %v4317 = vunpack.c.l.b16 %v4272
    %v4318 = vunpack.c.h.b16 %v4272
    %v4319 = vunpack.c.l.b16 %v4273
    %v4320 = vunpack.c.h.b16 %v4273
    %v4321 = vunpack.c.l.b16 %v4274
    %v4322 = vunpack.c.h.b16 %v4274
    %v4323 = vunpack.c.l.b16 %v4275
    %v4324 = vunpack.c.h.b16 %v4275
    %v4325 = vunpack.c.l.b16 %v4276
    %v4326 = vunpack.c.h.b16 %v4276
    %v4327 = vunpack.c.l.b16 %v4277
    %v4328 = vunpack.c.h.b16 %v4277
    %v4329 = vunpack.c.l.b16 %v4278
    %v4330 = vunpack.c.h.b16 %v4278
    %v4331 = vunpack.c.l.b16 %v4279
    %v4332 = vunpack.c.h.b16 %v4279
    %v4333 = vunpack.c.l.b16 %v4280
    %v4334 = vunpack.c.h.b16 %v4280
    %v4335 = vunpack.c.l.b16 %v4281
    %v4336 = vunpack.c.h.b16 %v4281
    %v4337 = vunpack.c.l.b16 %v4282
    %v4338 = vunpack.c.h.b16 %v4282
    %v4339 = vunpack.c.l.b16 %v4283
    %v4340 = vunpack.c.h.b16 %v4283
    %v4341 = vunpack.c.l.b16 %v4284
    %v4342 = vunpack.c.h.b16 %v4284
    %v4343 = vunpack.c.l.b16 %v4285
    %v4344 = vunpack.c.h.b16 %v4285
    %v4345 = vunpack.c.l.b16 %v4286
    %v4346 = vunpack.c.h.b16 %v4286
    %v4347 = vpack.c.b16 %v4317, %v4315
    %v4348 = vpack.c.b16 %v4318, %v4316
    %v4349 = vpack.c.b16 %v4321, %v4319
    %v4350 = vpack.c.b16 %v4322, %v4320
    %v4351 = vpack.c.b16 %v4325, %v4323
    %v4352 = vpack.c.b16 %v4326, %v4324
    %v4353 = vpack.c.b16 %v4329, %v4327
    %v4354 = vpack.c.b16 %v4330, %v4328
    %v4355 = vpack.c.b16 %v4333, %v4331
    %v4356 = vpack.c.b16 %v4334, %v4332
    %v4357 = vpack.c.b16 %v4337, %v4335
    %v4358 = vpack.c.b16 %v4338, %v4336
    %v4359 = vpack.c.b16 %v4341, %v4339
    %v4360 = vpack.c.b16 %v4342, %v4340
    %v4361 = vpack.c.b16 %v4345, %v4343
    %v4362 = vpack.c.b16 %v4346, %v4344
    %4379 = vmatprep.subr.bf16.mxu0 %v4362
    %4380 = vmatpush1.bf16.msra.mxu0 %v4361
    %4381 = vmatprep.subr.bf16.mxu0 %v4360
    %4382 = vmatpush1.bf16.msra.mxu0 %v4359
    %4383 = vmatprep.subr.bf16.mxu0 %v4358
    %4384 = vmatpush1.bf16.msra.mxu0 %v4357
    %4385 = vmatprep.subr.bf16.mxu0 %v4356
    %4386 = vmatpush1.bf16.msra.mxu0 %v4355
    %4387 = vmatprep.subr.bf16.mxu0 %v4354
    %4388 = vmatpush1.bf16.msra.mxu0 %v4353
    %4389 = vmatprep.subr.bf16.mxu0 %v4352
    %4390 = vmatpush1.bf16.msra.mxu0 %v4351
    %4391 = vmatprep.subr.bf16.mxu0 %v4350
    %4392 = vmatpush1.bf16.msra.mxu0 %v4349
    %4393 = vmatprep.subr.bf16.mxu0 %v4348
    %4394 = vmatpush1.bf16.msra.mxu0 %v4347
    %4395 = vmatprep.subr.bf16.mxu0 0
    %4396 = vmatpush2.bf16.msra.mxu0 0
    %4397 = vmatprep.subr.bf16.mxu0 0
    %4398 = vmatpush2.bf16.msra.mxu0 0
    %4399 = vmatprep.subr.bf16.mxu0 0
    %4400 = vmatpush2.bf16.msra.mxu0 0
    %4401 = vmatprep.subr.bf16.mxu0 0
    %4402 = vmatpush2.bf16.msra.mxu0 0
    %4403 = vmatprep.subr.bf16.mxu0 0
    %4404 = vmatpush2.bf16.msra.mxu0 0
    %4405 = vmatprep.subr.bf16.mxu0 0
    %4406 = vmatpush2.bf16.msra.mxu0 0
    %4407 = vmatprep.subr.bf16.mxu0 0
    %4408 = vmatpush2.bf16.msra.mxu0 0
    %4409 = vmatprep.subr.bf16.mxu0 0
    %4410 = vmatpush2.bf16.msra.mxu0 0
    %4411 = vmatprep.mubr.bf16.mxu0 0
    %4412 = vmatmul.mubr.bf16.gmra.mxu0 %v4270
    %v4413 = vpop.f32.mrf.mxu0
    %v4414 = vadd.f32 %v4292, %v4413
    %v4415 = vpop.f32.mrf.mxu0
    %v4416 = vadd.f32 %v4296, %v4415
    %v4417 = vpop.f32.mrf.mxu0
    %v4418 = vpop.f32.mrf.mxu0
    %4419 = vdwg.mxu0
    %v4420 = vmax.f32 %v4414, 0.0
    %v4421 = vmax.f32 %v4416, 0.0
    %v4422 = vpack.c.bf16 %v4420, %v4420
    %v4423 = vpack.c.bf16 %v4421, %v4421
    %v4424 = vld [vmem:[%s15] sm:$0xf]
    %v4425 = vld [vmem:[%s15 + $0x4] sm:$0xf]
    %v4426 = vld [vmem:[%s15 + $0x8] sm:$0xf]
    %v4427 = vld [vmem:[%s15 + $0xc] sm:$0xf]
    %v4428 = vld [vmem:[%s15 + $0x10] sm:$0xf]
    %v4429 = vld [vmem:[%s15 + $0x14] sm:$0xf]
    %v4430 = vld [vmem:[%s15 + $0x18] sm:$0xf]
    %v4431 = vld [vmem:[%s15 + $0x1c] sm:$0xf]
    %v4432 = vld [vmem:[%s15 + $0x20] sm:$0xf]
    %v4433 = vld [vmem:[%s15 + $0x24] sm:$0xf]
    %v4434 = vld [vmem:[%s15 + $0x28] sm:$0xf]
    %v4435 = vld [vmem:[%s15 + $0x2c] sm:$0xf]
    %v4436 = vld [vmem:[%s15 + $0x30] sm:$0xf]
    %v4437 = vld [vmem:[%s15 + $0x34] sm:$0xf]
    %v4438 = vld [vmem:[%s15 + $0x38] sm:$0xf]
    %v4439 = vld [vmem:[%s15 + $0x3c] sm:$0xf]
    %v4440 = vld [vmem:[%s15 + $0x40] sm:$0xf]
    %v4441 = vld [vmem:[%s15 + $0x44] sm:$0xf]
    %v4442 = vld [vmem:[%s15 + $0x48] sm:$0xf]
    %v4443 = vld [vmem:[%s15 + $0x4c] sm:$0xf]
    %v4444 = vld [vmem:[%s15 + $0x50] sm:$0xf]
    %v4445 = vld [vmem:[%s15 + $0x54] sm:$0xf]
    %v4446 = vld [vmem:[%s15 + $0x58] sm:$0xf]
    %v4447 = vld [vmem:[%s15 + $0x5c] sm:$0xf]
    %v4448 = vld [vmem:[%s15 + $0x60] sm:$0xf]
    %v4449 = vld [vmem:[%s15 + $0x64] sm:$0xf]
    %v4450 = vld [vmem:[%s15 + $0x68] sm:$0xf]
    %v4451 = vld [vmem:[%s15 + $0x6c] sm:$0xf]
    %v4452 = vld [vmem:[%s15 + $0x70] sm:$0xf]
    %v4453 = vld [vmem:[%s15 + $0x74] sm:$0xf]
    %v4454 = vld [vmem:[%s15 + $0x78] sm:$0xf]
    %v4455 = vld [vmem:[%s15 + $0x7c] sm:$0xf]
    %v4456 = vld [vmem:[%s16] sm:$0x1]
    %v4458 = vlaneseq
    %v4459 = vshrl.u32 %v4458, 7
    %v4460 = vsub.s32 0, %v4459
    %v4461 = vrot.slane %v4456, %v4460
    %v4495 = vunpack.c.l.b16 %v4424
    %v4496 = vunpack.c.l.b16 %v4425
    %v4497 = vunpack.c.l.b16 %v4426
    %v4498 = vunpack.c.l.b16 %v4427
    %v4499 = vunpack.c.l.b16 %v4428
    %v4500 = vunpack.c.l.b16 %v4429
    %v4501 = vunpack.c.l.b16 %v4430
    %v4502 = vunpack.c.l.b16 %v4431
    %v4503 = vunpack.c.l.b16 %v4432
    %v4504 = vunpack.c.l.b16 %v4433
    %v4505 = vunpack.c.l.b16 %v4434
    %v4506 = vunpack.c.l.b16 %v4435
    %v4507 = vunpack.c.l.b16 %v4436
    %v4508 = vunpack.c.l.b16 %v4437
    %v4509 = vunpack.c.l.b16 %v4438
    %v4510 = vunpack.c.l.b16 %v4439
    %v4511 = vunpack.c.l.b16 %v4440
    %v4512 = vunpack.c.l.b16 %v4441
    %v4513 = vunpack.c.l.b16 %v4442
    %v4514 = vunpack.c.l.b16 %v4443
    %v4515 = vunpack.c.l.b16 %v4444
    %v4516 = vunpack.c.l.b16 %v4445
    %v4517 = vunpack.c.l.b16 %v4446
    %v4518 = vunpack.c.l.b16 %v4447
    %v4519 = vunpack.c.l.b16 %v4448
    %v4520 = vunpack.c.l.b16 %v4449
    %v4521 = vunpack.c.l.b16 %v4450
    %v4522 = vunpack.c.l.b16 %v4451
    %v4523 = vunpack.c.l.b16 %v4452
    %v4524 = vunpack.c.l.b16 %v4453
    %v4525 = vunpack.c.l.b16 %v4454
    %v4526 = vunpack.c.l.b16 %v4455
    %v4527 = vpack.c.b16 %v4496, %v4495
    %v4528 = vpack.c.b16 %v4498, %v4497
    %v4529 = vpack.c.b16 %v4500, %v4499
    %v4530 = vpack.c.b16 %v4502, %v4501
    %v4531 = vpack.c.b16 %v4504, %v4503
    %v4532 = vpack.c.b16 %v4506, %v4505
    %v4533 = vpack.c.b16 %v4508, %v4507
    %v4534 = vpack.c.b16 %v4510, %v4509
    %v4535 = vpack.c.b16 %v4512, %v4511
    %v4536 = vpack.c.b16 %v4514, %v4513
    %v4537 = vpack.c.b16 %v4516, %v4515
    %v4538 = vpack.c.b16 %v4518, %v4517
    %v4539 = vpack.c.b16 %v4520, %v4519
    %v4540 = vpack.c.b16 %v4522, %v4521
    %v4541 = vpack.c.b16 %v4524, %v4523
    %v4542 = vpack.c.b16 %v4526, %v4525
    %4559 = vmatprep.subr.bf16.mxu0 0
    %4560 = vmatpush1.bf16.msra.mxu0 %v4534
    %4561 = vmatprep.subr.bf16.mxu0 0
    %4562 = vmatpush1.bf16.msra.mxu0 %v4533
    %4563 = vmatprep.subr.bf16.mxu0 0
    %4564 = vmatpush1.bf16.msra.mxu0 %v4532
    %4565 = vmatprep.subr.bf16.mxu0 0
    %4566 = vmatpush1.bf16.msra.mxu0 %v4531
    %4567 = vmatprep.subr.bf16.mxu0 0
    %4568 = vmatpush1.bf16.msra.mxu0 %v4530
    %4569 = vmatprep.subr.bf16.mxu0 0
    %4570 = vmatpush1.bf16.msra.mxu0 %v4529
    %4571 = vmatprep.subr.bf16.mxu0 0
    %4572 = vmatpush1.bf16.msra.mxu0 %v4528
    %4573 = vmatprep.subr.bf16.mxu0 0
    %4574 = vmatpush1.bf16.msra.mxu0 %v4527
    %4575 = vmatprep.subr.bf16.mxu0 0
    %4576 = vmatpush2.bf16.msra.mxu0 %v4542
    %4577 = vmatprep.subr.bf16.mxu0 0
    %4578 = vmatpush2.bf16.msra.mxu0 %v4541
    %4579 = vmatprep.subr.bf16.mxu0 0
    %4580 = vmatpush2.bf16.msra.mxu0 %v4540
    %4581 = vmatprep.subr.bf16.mxu0 0
    %4582 = vmatpush2.bf16.msra.mxu0 %v4539
    %4583 = vmatprep.subr.bf16.mxu0 0
    %4584 = vmatpush2.bf16.msra.mxu0 %v4538
    %4585 = vmatprep.subr.bf16.mxu0 0
    %4586 = vmatpush2.bf16.msra.mxu0 %v4537
    %4587 = vmatprep.subr.bf16.mxu0 0
    %4588 = vmatpush2.bf16.msra.mxu0 %v4536
    %4589 = vmatprep.subr.bf16.mxu0 0
    %4590 = vmatpush2.bf16.msra.mxu0 %v4535
    %4591 = vmatprep.mubr.bf16.mxu0 %v4423
    %4592 = vmatmul.mubr.bf16.gmra.mxu0 %v4422
    %v4593 = vpop.f32.mrf.mxu0
    %v4594 = vadd.f32 %v4461, %v4593
    %v4595 = vpop.f32.mrf.mxu0
    %v4596 = vpop.f32.mrf.mxu0
    %v4597 = vpop.f32.mrf.mxu0
    %4598 = vdwg.mxu0
    %4599 = vst [vmem:[#allocation5] sm:$0x3] %v4594
    // Predicated region
    $region70: #{gripper_fe_forward.1} parent=1 // pred_check
      _
    $region71: #{gripper_fe_forward.1} parent=1 // pred_check_branch
      %4601 = sbr.rel (0) target = $region73
    $region72: #{gripper_fe_forward.1} parent=1 // pred_region
      %s4603 = ssub.s32 32, 32
      %4604 = vsyncadd [#allocation6], %s4603
      %s4606 = sshll.u32 [#allocation5], 4
      %s4607 = int_to_ptr.vmem [resolvable:$true] %s4606
      %4609 = dma.vmem_to_hbm [thread:$0]  %s4607, 32, %s17, [#allocation6]
    $region73: #{gripper_fe_forward.1} parent=1 // pred_fallthru
      _
    // Predicated region
    $region74: #{gripper_fe_forward.1} parent=1 // pred_check
      _
    $region75: #{gripper_fe_forward.1} parent=1 // pred_check_branch
      %4611 = sbr.rel (0) target = $region77
    $region76: #{gripper_fe_forward.1} parent=1 // pred_region
      %s4613 = ssub.s32 32, 32
      %4614 = vsyncadd [#allocation8], %s4613
      %s4616 = sshll.u32 [#allocation7], 4
      %s4617 = int_to_ptr.vmem [resolvable:$true] %s4616
      %4619 = dma.vmem_to_hbm [thread:$0]  %s4617, 32, %s18, [#allocation8]
    $region77: #{gripper_fe_forward.1} parent=1 // pred_fallthru
      _
    // Predicated region
    $region78: #{gripper_fe_forward.1} parent=1 // pred_check
      _
    $region79: #{gripper_fe_forward.1} parent=1 // pred_check_branch
      %4621 = sbr.rel (0) target = $region81
    $region80: #{gripper_fe_forward.1} parent=1 // pred_region
      _
    $region81: #{gripper_fe_forward.1} parent=1 // pred_fallthru
      _
    // Predicated region
    $region82: #{gripper_fe_forward.1} parent=1 // pred_check
      _
    $region83: #{gripper_fe_forward.1} parent=1 // pred_check_branch
      %4623 = sbr.rel (0) target = $region85
    $region84: #{gripper_fe_forward.1} parent=1 // pred_region
      %4624 = dma.done [#allocation6], 32
    $region85: #{gripper_fe_forward.1} parent=1 // pred_fallthru
      _
    // Predicated region
    $region86: #{gripper_fe_forward.1} parent=1 // pred_check
      _
    $region87: #{gripper_fe_forward.1} parent=1 // pred_check_branch
      %4626 = sbr.rel (0) target = $region89
    $region88: #{gripper_fe_forward.1} parent=1 // pred_region
      %4627 = dma.done [#allocation8], 32
    $region89: #{gripper_fe_forward.1} parent=1 // pred_fallthru
      _
    // Predicated region
    $region90: #{gripper_fe_forward.1} parent=1 // pred_check
      _
    $region91: #{gripper_fe_forward.1} parent=1 // pred_check_branch
      %4629 = sbr.rel (0) target = $region93
    $region92: #{gripper_fe_forward.1} parent=1 // pred_region
      _
    $region93: #{gripper_fe_forward.1} parent=1 // pred_fallthru
      _
    %4630 = vsyncpa [#allocation6], 1
    %4631 = vsyncpa [#allocation8], 1

</llo_original>
